<compile_context>
chip_gen: v5e
topology: v5e:2x2
jax: 0.10.0
libtpu: 0.0.40
codegen_flags: <defaults>
</compile_context>

<pallas_src>
import jax
import jax.numpy as jnp
from jax.experimental import pallas as pl
from jax.experimental.pallas import tpu as pltpu

F_IN, F1, F2, F3, F4 = 1024, 256, 64, 16, 1
TILE_B = 512  # batch tile: fits comfortably in VMEM on v5e/v6e/v7x


# ----------------------------- kernel -------------------------------------

def cmlp_kernel(xr_ref, xi_ref,                    # (tb, F_IN) bf16 each
                w1r_ref, w1i_ref, w1s_ref,         # (F_IN, F1) bf16  (w1s = w1r + w1i)
                b1r_ref, b1i_ref,                  # (1, F1)    f32
                w2t_ref, w2b_ref, b2_ref,          # (F1, 2*F2) bf16 x2 / (1, 2*F2) f32
                w3_ref, b3_ref,                    # (2*F2, 2*F3) bf16 / (1, 2*F3) f32
                w4_ref, b4_ref,                    # (2, 2*F3) f32 / (1, 2) f32
                out_ref):                          # (tb, 2)    f32   [real | imag]
    xr = xr_ref[...]
    xi = xi_ref[...]
    xs = xr + xi

    # ---- layer 1: Karatsuba/Gauss 3-matmul complex product (MXU, bf16 -> f32 acc)
    p1 = jnp.dot(xr, w1r_ref[...], preferred_element_type=jnp.float32)
    p2 = jnp.dot(xi, w1i_ref[...], preferred_element_type=jnp.float32)
    p3 = jnp.dot(xs, w1s_ref[...], preferred_element_type=jnp.float32)
    hr = jnp.maximum(p1 - p2 + b1r_ref[...], 0.0).astype(jnp.bfloat16)        # ComplexReLU
    hi = jnp.maximum(p3 - p1 - p2 + b1i_ref[...], 0.0).astype(jnp.bfloat16)

    # ---- layer 2: two matmuls on the real/imag halves (no (tb,512) concat)
    h = (jnp.dot(hr, w2t_ref[...], preferred_element_type=jnp.float32)
         + jnp.dot(hi, w2b_ref[...], preferred_element_type=jnp.float32)
         + b2_ref[...])                                                       # (tb, 128)
    h = jnp.maximum(h, 0.0).astype(jnp.bfloat16)

    # ---- layer 3: one block-matrix matmul acting on [real | imag]
    h = jnp.dot(h, w3_ref[...], preferred_element_type=jnp.float32) + b3_ref[...]
    h = jnp.maximum(h, 0.0)                                                   # (tb, 32) f32

    # ---- layer 4 (16 -> 1): VPU multiply + lane reduction, no MXU call
    w4 = w4_ref[...]                                                          # (2, 32) f32
    real = jnp.sum(h * w4[0:1, :], axis=-1, keepdims=True)                    # (tb, 1)
    imag = jnp.sum(h * w4[1:2, :], axis=-1, keepdims=True)                    # (tb, 1)
    out_ref[...] = jnp.concatenate([real, imag], axis=-1) + b4_ref[...]


# ----------------------------- host-side prep -------------------------------

def init_params(key):
    """Deterministic params matching nn.Linear(in, out, dtype=complex64) shapes."""
    dims = [(F_IN, F1), (F1, F2), (F2, F3), (F3, F4)]
    params = []
    for li, (fan_in, fan_out) in enumerate(dims):
        kwr, kwi, kbr, kbi = jax.random.split(jax.random.fold_in(key, li), 4)
        bound = 1.0 / (float(fan_in) ** 0.5)
        # PyTorch convention: weight stored as (out, in).
        wr = jax.random.uniform(kwr, (fan_out, fan_in), jnp.float32, -bound, bound)
        wi = jax.random.uniform(kwi, (fan_out, fan_in), jnp.float32, -bound, bound)
        br = jax.random.uniform(kbr, (fan_out,), jnp.float32, -bound, bound)
        bi = jax.random.uniform(kbi, (fan_out,), jnp.float32, -bound, bound)
        params.append((wr, wi, br, bi))
    return params


def _block_weight(wr, wi):
    """Real block matrix [[Wr^T, Wi^T], [-Wi^T, Wr^T]]: [hr|hi] @ blk = [real|imag]."""
    wrt, wit = wr.T, wi.T
    top = jnp.concatenate([wrt, wit], axis=1)
    bot = jnp.concatenate([-wit, wrt], axis=1)
    return jnp.concatenate([top, bot], axis=0)


def _prepare_operands(params):
    (w1r, w1i, b1r, b1i), (w2r, w2i, b2r, b2i), l3, (w4r, w4i, b4r, b4i) = params
    w1rt, w1it = w1r.T, w1i.T
    w2rt, w2it = w2r.T, w2i.T
    return [
        w1rt.astype(jnp.bfloat16),                                       # w1r   (1024, 256)
        w1it.astype(jnp.bfloat16),                                       # w1i   (1024, 256)
        (w1rt + w1it).astype(jnp.bfloat16),                              # w1s   (1024, 256)
        b1r.reshape(1, -1).astype(jnp.float32),                          # b1r   (1, 256)
        b1i.reshape(1, -1).astype(jnp.float32),                          # b1i   (1, 256)
        jnp.concatenate([w2rt, w2it], axis=1).astype(jnp.bfloat16),      # w2t   (256, 128)
        jnp.concatenate([-w2it, w2rt], axis=1).astype(jnp.bfloat16),     # w2b   (256, 128)
        jnp.concatenate([b2r, b2i]).reshape(1, -1).astype(jnp.float32),  # b2    (1, 128)
        _block_weight(l3[0], l3[1]).astype(jnp.bfloat16),                # w3    (128, 32)
        jnp.concatenate([l3[2], l3[3]]).reshape(1, -1).astype(jnp.float32),  # b3 (1, 32)
        jnp.stack([jnp.concatenate([w4r[0], -w4i[0]]),
                   jnp.concatenate([w4i[0], w4r[0]])]).astype(jnp.float32),  # w4 (2, 32)
        jnp.concatenate([b4r, b4i]).reshape(1, 2).astype(jnp.float32),       # b4 (1, 2)
    ]


# ----------------------------- forward -------------------------------------

def fmcw_cmlp_forward(x_complex, params):
    """x_complex: complex64, shape (B, ...) flattening to (B, 1024)."""
    B = x_complex.shape[0]
    x_flat = x_complex.reshape(B, -1)                    # nn.Flatten()
    assert x_flat.shape[1] == F_IN

    xr = jnp.real(x_flat).astype(jnp.bfloat16)           # (B, 1024)
    xi = jnp.imag(x_flat).astype(jnp.bfloat16)           # (B, 1024)

    tb = B if B <= TILE_B else TILE_B
    n_blocks = pl.cdiv(B, tb)
    b_pad = n_blocks * tb
    if b_pad != B:
        xr = jnp.pad(xr, ((0, b_pad - B), (0, 0)))
        xi = jnp.pad(xi, ((0, b_pad - B), (0, 0)))

    operands = _prepare_operands(params)

    def resident(shape):
        # constant index_map -> block never changes -> stays VMEM-resident
        return pl.BlockSpec(shape, lambda i: (0, 0))

    in_specs = [pl.BlockSpec((tb, F_IN), lambda i: (i, 0)),
                pl.BlockSpec((tb, F_IN), lambda i: (i, 0))]
    in_specs += [resident(tuple(op.shape)) for op in operands]

    flops = 2 * b_pad * (3 * F_IN * F1 + 2 * F1 * (2 * F2)
                         + (2 * F2) * (2 * F3) + (2 * F3) * 2)
    bytes_accessed = (xr.size * 2 + xi.size * 2 + b_pad * 2 * 4
                      + sum(int(op.size) * op.dtype.itemsize for op in operands))

    out = pl.pallas_call(
        cmlp_kernel,
        out_shape=jax.ShapeDtypeStruct((b_pad, 2), jnp.float32),
        grid=(n_blocks,),
        in_specs=in_specs,
        out_specs=pl.BlockSpec((tb, 2), lambda i: (i, 0)),
        compiler_params=pltpu.CompilerParams(
            dimension_semantics=("parallel",),
            vmem_limit_bytes=32 * 1024 * 1024,
        ),
        cost_estimate=pl.CostEstimate(
            flops=int(flops), transcendentals=0, bytes_accessed=int(bytes_accessed)),
    )(xr, xi, *operands)

    out = out[:B]
    return jax.lax.complex(out[:, 0:1], out[:, 1:2])     # complex64, shape (B, 1)


def reference_forward(x_complex, params):
    """Pure-JAX complex64 reference for validation."""
    B = x_complex.shape[0]
    h = x_complex.reshape(B, -1).astype(jnp.complex64)
    for li, (wr, wi, br, bi) in enumerate(params):
        w = (wr + 1j * wi).astype(jnp.complex64)
        b = (br + 1j * bi).astype(jnp.complex64)
        h = h @ w.T + b
        if li < len(params) - 1:
            h = jax.lax.complex(jnp.maximum(jnp.real(h), 0.0),
                                jnp.maximum(jnp.imag(h), 0.0))
    return h


# ----------------------------- main -----------------------------------------

if __name__ == "__main__":
    key = jax.random.PRNGKey(0)
    k_x, k_p = jax.random.split(key)

    # small example input: batch=4, spatial 32x32 -> flattens to 1024 features
    B = 4
    xr0 = jax.random.normal(jax.random.fold_in(k_x, 0), (B, 32, 32), jnp.float32)
    xi0 = jax.random.normal(jax.random.fold_in(k_x, 1), (B, 32, 32), jnp.float32)
    x = jax.lax.complex(xr0, xi0)                         # complex64, (4, 32, 32)

    params = init_params(k_p)

    logits = jax.jit(fmcw_cmlp_forward)(x, params)
    jax.block_until_ready(logits)

    ref = reference_forward(x, params)
    assert logits.shape == (B, 1) and logits.dtype == jnp.complex64

    # bf16 MXU operands (f32 accumulation) -> relaxed tolerance vs. f32 reference.
    rel_err = jnp.linalg.norm(logits - ref) / (jnp.linalg.norm(ref) + 1e-12)
    assert float(rel_err) < 5e-2, f"relative error too large: {float(rel_err)}"

    print("KERNEL_OK")
</pallas_src>

<mosaic_0001>
module attributes {stable_mosaic.version = 11 : i64} {
  func.func @cmlp_kernel(%arg0: i32, %arg1: memref<4x1024xbf16, #tpu.memory_space<vmem>>, %arg2: memref<4x1024xbf16, #tpu.memory_space<vmem>>, %arg3: memref<1024x256xbf16, #tpu.memory_space<vmem>>, %arg4: memref<1024x256xbf16, #tpu.memory_space<vmem>>, %arg5: memref<1024x256xbf16, #tpu.memory_space<vmem>>, %arg6: memref<1x256xf32, #tpu.memory_space<vmem>>, %arg7: memref<1x256xf32, #tpu.memory_space<vmem>>, %arg8: memref<256x128xbf16, #tpu.memory_space<vmem>>, %arg9: memref<256x128xbf16, #tpu.memory_space<vmem>>, %arg10: memref<1x128xf32, #tpu.memory_space<vmem>>, %arg11: memref<128x32xbf16, #tpu.memory_space<vmem>>, %arg12: memref<1x32xf32, #tpu.memory_space<vmem>>, %arg13: memref<2x32xf32, #tpu.memory_space<vmem>>, %arg14: memref<1x2xf32, #tpu.memory_space<vmem>>, %arg15: memref<4x2xf32, #tpu.memory_space<vmem>>) attributes {dimension_semantics = [#tpu.dimension_semantics<parallel>], iteration_bounds = array<i64: 1>, scalar_prefetch = 0 : i64, scratch_operands = 0 : i64, tpu.core_type = #tpu.core_type<tc>, window_params = [{transform_indices = @transform_0, window_bounds = array<i64: 4, 1024>}, {transform_indices = @transform_1, window_bounds = array<i64: 4, 1024>}, {pipeline_mode = #tpu.pipeline_mode<synchronous>, transform_indices = @transform_2, window_bounds = array<i64: 1024, 256>}, {pipeline_mode = #tpu.pipeline_mode<synchronous>, transform_indices = @transform_3, window_bounds = array<i64: 1024, 256>}, {pipeline_mode = #tpu.pipeline_mode<synchronous>, transform_indices = @transform_4, window_bounds = array<i64: 1024, 256>}, {pipeline_mode = #tpu.pipeline_mode<synchronous>, transform_indices = @transform_5, window_bounds = array<i64: 1, 256>}, {pipeline_mode = #tpu.pipeline_mode<synchronous>, transform_indices = @transform_6, window_bounds = array<i64: 1, 256>}, {pipeline_mode = #tpu.pipeline_mode<synchronous>, transform_indices = @transform_7, window_bounds = array<i64: 256, 128>}, {pipeline_mode = #tpu.pipeline_mode<synchronous>, transform_indices = @transform_8, window_bounds = array<i64: 256, 128>}, {pipeline_mode = #tpu.pipeline_mode<synchronous>, transform_indices = @transform_9, window_bounds = array<i64: 1, 128>}, {pipeline_mode = #tpu.pipeline_mode<synchronous>, transform_indices = @transform_10, window_bounds = array<i64: 128, 32>}, {pipeline_mode = #tpu.pipeline_mode<synchronous>, transform_indices = @transform_11, window_bounds = array<i64: 1, 32>}, {pipeline_mode = #tpu.pipeline_mode<synchronous>, transform_indices = @transform_12, window_bounds = array<i64: 2, 32>}, {pipeline_mode = #tpu.pipeline_mode<synchronous>, transform_indices = @transform_13, window_bounds = array<i64: 1, 2>}, {transform_indices = @transform_14, window_bounds = array<i64: 4, 2>}]} {
    %c0 = arith.constant 0 : index
    %c0_0 = arith.constant 0 : index
    %0 = vector.load %arg1[%c0, %c0_0] : memref<4x1024xbf16, #tpu.memory_space<vmem>>, vector<4x1024xbf16>
    %c0_1 = arith.constant 0 : index
    %c0_2 = arith.constant 0 : index
    %1 = vector.load %arg2[%c0_1, %c0_2] : memref<4x1024xbf16, #tpu.memory_space<vmem>>, vector<4x1024xbf16>
    %2 = arith.addf %0, %1 : vector<4x1024xbf16>
    %c0_3 = arith.constant 0 : index
    %c0_4 = arith.constant 0 : index
    %3 = vector.load %arg3[%c0_3, %c0_4] : memref<1024x256xbf16, #tpu.memory_space<vmem>>, vector<1024x256xbf16>
    %cst = arith.constant dense<0.000000e+00> : vector<4x256xf32>
    %4 = tpu.matmul %0, %3, %cst {dimension_numbers = #tpu.dot_dimension_numbers<[1], [0], [0], [1], [0, 0, 1, 1], [], []>} : vector<4x1024xbf16>, vector<1024x256xbf16>, vector<4x256xf32> -> vector<4x256xf32>
    %c0_5 = arith.constant 0 : index
    %c0_6 = arith.constant 0 : index
    %5 = vector.load %arg4[%c0_5, %c0_6] : memref<1024x256xbf16, #tpu.memory_space<vmem>>, vector<1024x256xbf16>
    %cst_7 = arith.constant dense<0.000000e+00> : vector<4x256xf32>
    %6 = tpu.matmul %1, %5, %cst_7 {dimension_numbers = #tpu.dot_dimension_numbers<[1], [0], [0], [1], [0, 0, 1, 1], [], []>} : vector<4x1024xbf16>, vector<1024x256xbf16>, vector<4x256xf32> -> vector<4x256xf32>
    %c0_8 = arith.constant 0 : index
    %c0_9 = arith.constant 0 : index
    %7 = vector.load %arg5[%c0_8, %c0_9] : memref<1024x256xbf16, #tpu.memory_space<vmem>>, vector<1024x256xbf16>
    %cst_10 = arith.constant dense<0.000000e+00> : vector<4x256xf32>
    %8 = tpu.matmul %2, %7, %cst_10 {dimension_numbers = #tpu.dot_dimension_numbers<[1], [0], [0], [1], [0, 0, 1, 1], [], []>} : vector<4x1024xbf16>, vector<1024x256xbf16>, vector<4x256xf32> -> vector<4x256xf32>
    %9 = arith.subf %4, %6 : vector<4x256xf32>
    %c0_11 = arith.constant 0 : index
    %c0_12 = arith.constant 0 : index
    %10 = vector.load %arg6[%c0_11, %c0_12] : memref<1x256xf32, #tpu.memory_space<vmem>>, vector<1x256xf32>
    %11 = vector.broadcast %10 : vector<1x256xf32> to vector<4x256xf32>
    %12 = arith.addf %9, %11 : vector<4x256xf32>
    %cst_13 = arith.constant 0.000000e+00 : f32
    %13 = vector.broadcast %cst_13 : f32 to vector<4x256xf32>
    %14 = arith.maximumf %12, %13 : vector<4x256xf32>
    %15 = arith.truncf %14 : vector<4x256xf32> to vector<4x256xbf16>
    %16 = arith.subf %8, %4 : vector<4x256xf32>
    %17 = arith.subf %16, %6 : vector<4x256xf32>
    %c0_14 = arith.constant 0 : index
    %c0_15 = arith.constant 0 : index
    %18 = vector.load %arg7[%c0_14, %c0_15] : memref<1x256xf32, #tpu.memory_space<vmem>>, vector<1x256xf32>
    %19 = vector.broadcast %18 : vector<1x256xf32> to vector<4x256xf32>
    %20 = arith.addf %17, %19 : vector<4x256xf32>
    %cst_16 = arith.constant 0.000000e+00 : f32
    %21 = vector.broadcast %cst_16 : f32 to vector<4x256xf32>
    %22 = arith.maximumf %20, %21 : vector<4x256xf32>
    %23 = arith.truncf %22 : vector<4x256xf32> to vector<4x256xbf16>
    %c0_17 = arith.constant 0 : index
    %c0_18 = arith.constant 0 : index
    %24 = vector.load %arg8[%c0_17, %c0_18] : memref<256x128xbf16, #tpu.memory_space<vmem>>, vector<256x128xbf16>
    %cst_19 = arith.constant dense<0.000000e+00> : vector<4x128xf32>
    %25 = tpu.matmul %15, %24, %cst_19 {dimension_numbers = #tpu.dot_dimension_numbers<[1], [0], [0], [1], [0, 0, 1, 1], [], []>} : vector<4x256xbf16>, vector<256x128xbf16>, vector<4x128xf32> -> vector<4x128xf32>
    %c0_20 = arith.constant 0 : index
    %c0_21 = arith.constant 0 : index
    %26 = vector.load %arg9[%c0_20, %c0_21] : memref<256x128xbf16, #tpu.memory_space<vmem>>, vector<256x128xbf16>
    %cst_22 = arith.constant dense<0.000000e+00> : vector<4x128xf32>
    %27 = tpu.matmul %23, %26, %cst_22 {dimension_numbers = #tpu.dot_dimension_numbers<[1], [0], [0], [1], [0, 0, 1, 1], [], []>} : vector<4x256xbf16>, vector<256x128xbf16>, vector<4x128xf32> -> vector<4x128xf32>
    %28 = arith.addf %25, %27 : vector<4x128xf32>
    %c0_23 = arith.constant 0 : index
    %c0_24 = arith.constant 0 : index
    %29 = vector.load %arg10[%c0_23, %c0_24] : memref<1x128xf32, #tpu.memory_space<vmem>>, vector<1x128xf32>
    %30 = vector.broadcast %29 : vector<1x128xf32> to vector<4x128xf32>
    %31 = arith.addf %28, %30 : vector<4x128xf32>
    %cst_25 = arith.constant 0.000000e+00 : f32
    %32 = vector.broadcast %cst_25 : f32 to vector<4x128xf32>
    %33 = arith.maximumf %31, %32 : vector<4x128xf32>
    %34 = arith.truncf %33 : vector<4x128xf32> to vector<4x128xbf16>
    %c0_26 = arith.constant 0 : index
    %c0_27 = arith.constant 0 : index
    %35 = vector.load %arg11[%c0_26, %c0_27] : memref<128x32xbf16, #tpu.memory_space<vmem>>, vector<128x32xbf16>
    %cst_28 = arith.constant dense<0.000000e+00> : vector<4x32xf32>
    %36 = tpu.matmul %34, %35, %cst_28 {dimension_numbers = #tpu.dot_dimension_numbers<[1], [0], [0], [1], [0, 0, 1, 1], [], []>} : vector<4x128xbf16>, vector<128x32xbf16>, vector<4x32xf32> -> vector<4x32xf32>
    %c0_29 = arith.constant 0 : index
    %c0_30 = arith.constant 0 : index
    %37 = vector.load %arg12[%c0_29, %c0_30] : memref<1x32xf32, #tpu.memory_space<vmem>>, vector<1x32xf32>
    %38 = vector.broadcast %37 : vector<1x32xf32> to vector<4x32xf32>
    %39 = arith.addf %36, %38 : vector<4x32xf32>
    %cst_31 = arith.constant 0.000000e+00 : f32
    %40 = vector.broadcast %cst_31 : f32 to vector<4x32xf32>
    %41 = arith.maximumf %39, %40 : vector<4x32xf32>
    %c0_32 = arith.constant 0 : index
    %c0_33 = arith.constant 0 : index
    %42 = vector.load %arg13[%c0_32, %c0_33] : memref<2x32xf32, #tpu.memory_space<vmem>>, vector<2x32xf32>
    %43 = vector.extract_strided_slice %42 {offsets = [0, 0], sizes = [1, 32], strides = [1, 1]} : vector<2x32xf32> to vector<1x32xf32>
    %44 = vector.broadcast %43 : vector<1x32xf32> to vector<4x32xf32>
    %45 = arith.mulf %41, %44 : vector<4x32xf32>
    %cst_34 = arith.constant dense<0.000000e+00> : vector<4xf32>
    %46 = vector.multi_reduction <add>, %45, %cst_34 [1] : vector<4x32xf32> to vector<4xf32>
    %47 = vector.shape_cast %46 : vector<4xf32> to vector<4x1xf32>
    %48 = vector.extract_strided_slice %42 {offsets = [1, 0], sizes = [1, 32], strides = [1, 1]} : vector<2x32xf32> to vector<1x32xf32>
    %49 = vector.broadcast %48 : vector<1x32xf32> to vector<4x32xf32>
    %50 = arith.mulf %41, %49 : vector<4x32xf32>
    %cst_35 = arith.constant dense<0.000000e+00> : vector<4xf32>
    %51 = vector.multi_reduction <add>, %50, %cst_35 [1] : vector<4x32xf32> to vector<4xf32>
    %52 = vector.shape_cast %51 : vector<4xf32> to vector<4x1xf32>
    %53 = tpu.concatenate %47, %52 in 1 : vector<4x1xf32>, vector<4x1xf32> -> vector<4x2xf32>
    %c0_36 = arith.constant 0 : index
    %c0_37 = arith.constant 0 : index
    %54 = vector.load %arg14[%c0_36, %c0_37] : memref<1x2xf32, #tpu.memory_space<vmem>>, vector<1x2xf32>
    %55 = vector.broadcast %54 : vector<1x2xf32> to vector<4x2xf32>
    %56 = arith.addf %53, %55 : vector<4x2xf32>
    %c0_38 = arith.constant 0 : index
    %c0_39 = arith.constant 0 : index
    %57 = vector.load %arg15[%c0_38, %c0_39] : memref<4x2xf32, #tpu.memory_space<vmem>>, vector<4x2xf32>
    tpu.vector_store %arg15[%c0_38, %c0_39], %56 {strides = array<i32>} : memref<4x2xf32, #tpu.memory_space<vmem>>, vector<4x2xf32>,
    return
  }
  func.func @transform_0(%arg0: i32) -> (i32, i32) {
    %c0_i32 = arith.constant 0 : i32
    %c0_i32_0 = arith.constant 0 : i32
    return %arg0, %c0_i32 : i32, i32
  }
  func.func @transform_1(%arg0: i32) -> (i32, i32) {
    %c0_i32 = arith.constant 0 : i32
    %c0_i32_0 = arith.constant 0 : i32
    return %arg0, %c0_i32 : i32, i32
  }
  func.func @transform_2(%arg0: i32) -> (i32, i32) {
    %c0_i32 = arith.constant 0 : i32
    %c0_i32_0 = arith.constant 0 : i32
    %c0_i32_1 = arith.constant 0 : i32
    return %c0_i32, %c0_i32_0 : i32, i32
  }
  func.func @transform_3(%arg0: i32) -> (i32, i32) {
    %c0_i32 = arith.constant 0 : i32
    %c0_i32_0 = arith.constant 0 : i32
    %c0_i32_1 = arith.constant 0 : i32
    return %c0_i32, %c0_i32_0 : i32, i32
  }
  func.func @transform_4(%arg0: i32) -> (i32, i32) {
    %c0_i32 = arith.constant 0 : i32
    %c0_i32_0 = arith.constant 0 : i32
    %c0_i32_1 = arith.constant 0 : i32
    return %c0_i32, %c0_i32_0 : i32, i32
  }
  func.func @transform_5(%arg0: i32) -> (i32, i32) {
    %c0_i32 = arith.constant 0 : i32
    %c0_i32_0 = arith.constant 0 : i32
    %c0_i32_1 = arith.constant 0 : i32
    return %c0_i32, %c0_i32_0 : i32, i32
  }
  func.func @transform_6(%arg0: i32) -> (i32, i32) {
    %c0_i32 = arith.constant 0 : i32
    %c0_i32_0 = arith.constant 0 : i32
    %c0_i32_1 = arith.constant 0 : i32
    return %c0_i32, %c0_i32_0 : i32, i32
  }
  func.func @transform_7(%arg0: i32) -> (i32, i32) {
    %c0_i32 = arith.constant 0 : i32
    %c0_i32_0 = arith.constant 0 : i32
    %c0_i32_1 = arith.constant 0 : i32
    return %c0_i32, %c0_i32_0 : i32, i32
  }
  func.func @transform_8(%arg0: i32) -> (i32, i32) {
    %c0_i32 = arith.constant 0 : i32
    %c0_i32_0 = arith.constant 0 : i32
    %c0_i32_1 = arith.constant 0 : i32
    return %c0_i32, %c0_i32_0 : i32, i32
  }
  func.func @transform_9(%arg0: i32) -> (i32, i32) {
    %c0_i32 = arith.constant 0 : i32
    %c0_i32_0 = arith.constant 0 : i32
    %c0_i32_1 = arith.constant 0 : i32
    return %c0_i32, %c0_i32_0 : i32, i32
  }
  func.func @transform_10(%arg0: i32) -> (i32, i32) {
    %c0_i32 = arith.constant 0 : i32
    %c0_i32_0 = arith.constant 0 : i32
    %c0_i32_1 = arith.constant 0 : i32
    return %c0_i32, %c0_i32_0 : i32, i32
  }
  func.func @transform_11(%arg0: i32) -> (i32, i32) {
    %c0_i32 = arith.constant 0 : i32
    %c0_i32_0 = arith.constant 0 : i32
    %c0_i32_1 = arith.constant 0 : i32
    return %c0_i32, %c0_i32_0 : i32, i32
  }
  func.func @transform_12(%arg0: i32) -> (i32, i32) {
    %c0_i32 = arith.constant 0 : i32
    %c0_i32_0 = arith.constant 0 : i32
    %c0_i32_1 = arith.constant 0 : i32
    return %c0_i32, %c0_i32_0 : i32, i32
  }
  func.func @transform_13(%arg0: i32) -> (i32, i32) {
    %c0_i32 = arith.constant 0 : i32
    %c0_i32_0 = arith.constant 0 : i32
    %c0_i32_1 = arith.constant 0 : i32
    return %c0_i32, %c0_i32_0 : i32, i32
  }
  func.func @transform_14(%arg0: i32) -> (i32, i32) {
    %c0_i32 = arith.constant 0 : i32
    %c0_i32_0 = arith.constant 0 : i32
    return %arg0, %c0_i32 : i32, i32
  }
}

</mosaic_0001>

<llo_original>
// kernel: neg.0
$region0: #{neg.0}
  #allocation0 [shape = 's32[1]{0}', space=sflag, size = 0x4, scoped, tag = 'scoped memory for neg.0']
  %s0 = inlined_call_operand.vmem [shape: f32[64,256], index: 0, kind: input, shape index: {}]
  %s1 = inlined_call_operand.vmem [shape: bf16[64,256], index: 1, kind: output, shape index: {}]
  %v2 = vld [vmem:[%s0] sm:$0xff]
  %3 = xla_tuple %v2
  %4 = xla_tuple %3
  %v5 = vxor.u32 %v2, 2147483648
  %6 = xla_tuple %v5
  %s7 = scalar_lea.vmem %s0, 16
  %v8 = vld [vmem:[%s7] sm:$0xff]
  %9 = xla_tuple %v8
  %10 = xla_tuple %9
  %v11 = vxor.u32 %v8, 2147483648
  %12 = xla_tuple %v11
  %s13 = scalar_lea.vmem %s1, 8
  %s14 = scalar_lea.vmem %s0, 32
  %v15 = vld [vmem:[%s14] sm:$0xff]
  %16 = xla_tuple %v15
  %17 = xla_tuple %16
  %v18 = vxor.u32 %v15, 2147483648
  %19 = xla_tuple %v18
  %s20 = scalar_lea.vmem %s1, 16
  %s21 = scalar_lea.vmem %s0, 48
  %v22 = vld [vmem:[%s21] sm:$0xff]
  %23 = xla_tuple %v22
  %24 = xla_tuple %23
  %v25 = vxor.u32 %v22, 2147483648
  %26 = xla_tuple %v25
  %s27 = scalar_lea.vmem %s1, 24
  %s28 = scalar_lea.vmem %s0, 64
  %v29 = vld [vmem:[%s28] sm:$0xff]
  %30 = xla_tuple %v29
  %31 = xla_tuple %30
  %v32 = vxor.u32 %v29, 2147483648
  %33 = xla_tuple %v32
  %s34 = scalar_lea.vmem %s1, 32
  %s35 = scalar_lea.vmem %s0, 80
  %v36 = vld [vmem:[%s35] sm:$0xff]
  %37 = xla_tuple %v36
  %38 = xla_tuple %37
  %v39 = vxor.u32 %v36, 2147483648
  %40 = xla_tuple %v39
  %s41 = scalar_lea.vmem %s1, 40
  %s42 = scalar_lea.vmem %s0, 96
  %v43 = vld [vmem:[%s42] sm:$0xff]
  %44 = xla_tuple %v43
  %45 = xla_tuple %44
  %v46 = vxor.u32 %v43, 2147483648
  %47 = xla_tuple %v46
  %s48 = scalar_lea.vmem %s1, 48
  %s49 = scalar_lea.vmem %s0, 112
  %v50 = vld [vmem:[%s49] sm:$0xff]
  %51 = xla_tuple %v50
  %52 = xla_tuple %51
  %v53 = vxor.u32 %v50, 2147483648
  %54 = xla_tuple %v53
  %s55 = scalar_lea.vmem %s1, 56
  %s56 = scalar_lea.vmem %s0, 8
  %v57 = vld [vmem:[%s56] sm:$0xff]
  %58 = xla_tuple %v57
  %59 = xla_tuple %58
  %v60 = vxor.u32 %v57, 2147483648
  %61 = xla_tuple %v60
  %s62 = scalar_lea.vmem %s1, 4
  %s63 = scalar_lea.vmem %s62, 4294967292
  %v64 = vpack.c.bf16 %v60, %v5
  %65 = vst [vmem:[%s63] sm:$0xff] %v64
  %s66 = scalar_lea.vmem %s0, 24
  %v67 = vld [vmem:[%s66] sm:$0xff]
  %68 = xla_tuple %v67
  %69 = xla_tuple %68
  %v70 = vxor.u32 %v67, 2147483648
  %71 = xla_tuple %v70
  %s72 = scalar_lea.vmem %s1, 12
  %s73 = scalar_lea.vmem %s72, 4294967292
  %v74 = vpack.c.bf16 %v70, %v11
  %75 = vst [vmem:[%s73] sm:$0xff] %v74
  %s76 = scalar_lea.vmem %s0, 40
  %v77 = vld [vmem:[%s76] sm:$0xff]
  %78 = xla_tuple %v77
  %79 = xla_tuple %78
  %v80 = vxor.u32 %v77, 2147483648
  %81 = xla_tuple %v80
  %s82 = scalar_lea.vmem %s1, 20
  %s83 = scalar_lea.vmem %s82, 4294967292
  %v84 = vpack.c.bf16 %v80, %v18
  %85 = vst [vmem:[%s83] sm:$0xff] %v84
  %s86 = scalar_lea.vmem %s0, 56
  %v87 = vld [vmem:[%s86] sm:$0xff]
  %88 = xla_tuple %v87
  %89 = xla_tuple %88
  %v90 = vxor.u32 %v87, 2147483648
  %91 = xla_tuple %v90
  %s92 = scalar_lea.vmem %s1, 28
  %s93 = scalar_lea.vmem %s92, 4294967292
  %v94 = vpack.c.bf16 %v90, %v25
  %95 = vst [vmem:[%s93] sm:$0xff] %v94
  %s96 = scalar_lea.vmem %s0, 72
  %v97 = vld [vmem:[%s96] sm:$0xff]
  %98 = xla_tuple %v97
  %99 = xla_tuple %98
  %v100 = vxor.u32 %v97, 2147483648
  %101 = xla_tuple %v100
  %s102 = scalar_lea.vmem %s1, 36
  %s103 = scalar_lea.vmem %s102, 4294967292
  %v104 = vpack.c.bf16 %v100, %v32
  %105 = vst [vmem:[%s103] sm:$0xff] %v104
  %s106 = scalar_lea.vmem %s0, 88
  %v107 = vld [vmem:[%s106] sm:$0xff]
  %108 = xla_tuple %v107
  %109 = xla_tuple %108
  %v110 = vxor.u32 %v107, 2147483648
  %111 = xla_tuple %v110
  %s112 = scalar_lea.vmem %s1, 44
  %s113 = scalar_lea.vmem %s112, 4294967292
  %v114 = vpack.c.bf16 %v110, %v39
  %115 = vst [vmem:[%s113] sm:$0xff] %v114
  %s116 = scalar_lea.vmem %s0, 104
  %v117 = vld [vmem:[%s116] sm:$0xff]
  %118 = xla_tuple %v117
  %119 = xla_tuple %118
  %v120 = vxor.u32 %v117, 2147483648
  %121 = xla_tuple %v120
  %s122 = scalar_lea.vmem %s1, 52
  %s123 = scalar_lea.vmem %s122, 4294967292
  %v124 = vpack.c.bf16 %v120, %v46
  %125 = vst [vmem:[%s123] sm:$0xff] %v124
  %s126 = scalar_lea.vmem %s0, 120
  %v127 = vld [vmem:[%s126] sm:$0xff]
  %128 = xla_tuple %v127
  %129 = xla_tuple %128
  %v130 = vxor.u32 %v127, 2147483648
  %131 = xla_tuple %v130
  %s132 = scalar_lea.vmem %s1, 60
  %s133 = scalar_lea.vmem %s132, 4294967292
  %v134 = vpack.c.bf16 %v130, %v53
  %135 = vst [vmem:[%s133] sm:$0xff] %v134

// kernel: custom-call
$region0: #{custom-call}
  %s0 = inlined_call_operand.hbm [shape: c64[4,32,32], index: 0, kind: input, shape index: {}]
  %s1 = inlined_call_operand.vmem [shape: f32[4,32,32], index: 1, kind: output, shape index: {}]
  $region1: #{custom-call} parent=0
    #allocation0 [shape = 's32[1]{0}', space=sflag, size = 0x4, scoped, tag = 'scoped memory for custom-call']
    %2 = vsyncpa [#allocation0], 0
    %s4 = sshll.u32 %s0, 4
    %s5 = int_to_ptr.hbm [resolvable:$true] %s4
    %s6 = sshll.u32 %s1, 4
    %s7 = int_to_ptr.vmem [resolvable:$true] %s6
    %9 = dma.hbm_to_vmem [thread:$0]  %s5, 2048, %s7, [#allocation0]
    %11 = dma.done [#allocation0], 2048
    %12 = vsyncpa [#allocation0], 1

// kernel: custom-call.1
$region0: #{custom-call.1}
  %s0 = inlined_call_operand.hbm [shape: c64[4,32,32], index: 0, kind: input, shape index: {}]
  %s1 = inlined_call_operand.vmem [shape: f32[4,32,32], index: 1, kind: output, shape index: {}]
  %s2 = scalar_lea.hbm %s0, 128
  $region1: #{custom-call.1} parent=0
    #allocation0 [shape = 's32[1]{0}', space=sflag, size = 0x4, scoped, tag = 'scoped memory for custom-call.1']
    %3 = vsyncpa [#allocation0], 0
    %s5 = sshll.u32 %s2, 4
    %s6 = int_to_ptr.hbm [resolvable:$true] %s5
    %s7 = sshll.u32 %s1, 4
    %s8 = int_to_ptr.vmem [resolvable:$true] %s7
    %10 = dma.hbm_to_vmem [thread:$0]  %s6, 2048, %s8, [#allocation0]
    %12 = dma.done [#allocation0], 2048
    %13 = vsyncpa [#allocation0], 1

// kernel: custom-call.2
$region0: #{custom-call.2}
  %s0 = inlined_call_operand.vmem [shape: f32[4,1], index: 0, kind: input, shape index: {}]
  %s1 = inlined_call_operand.vmem [shape: f32[4,1], index: 1, kind: input, shape index: {}]
  %s2 = inlined_call_operand.vmem [shape: c64[4,1], index: 2, kind: output, shape index: {}]
  %s3 = scalar_lea.vmem %s2, 4
  %v4 = vld [vmem:[%s0] sm:$0xf]
  %vm5 = vcmask 1043456
  %6 = vst.msk [vmem:[%s2] sm:$0xff] %vm5, %v4
  %v7 = vld [vmem:[%s1] sm:$0xf]
  %vm8 = vcmask 1043456
  %9 = vst.msk [vmem:[%s3] sm:$0xff] %vm8, %v7

// kernel: fmcw_cmlp_forward.1
$region0: #{fmcw_cmlp_forward.1}
  #allocation0 [shape = 'u32[]', space=smem, size = 0x4, offset = 0x4, fixed_abs, tag = 'smem constant byte address 0x4 - core index']
  #allocation1 [shape = 'u32[72,128]{1,0:T(1,128)}', space=vmem, size = 0x9000, scoped, tag = 'internal scratch']
  %s0 = inlined_call_operand.vmem [shape: bf16[4,1024], index: 0, kind: input, shape index: {}]
  %s1 = inlined_call_operand.vmem [shape: bf16[4,1024], index: 1, kind: input, shape index: {}]
  %s2 = inlined_call_operand.vmem [shape: bf16[1024,256], index: 2, kind: input, shape index: {}]
  %s3 = inlined_call_operand.vmem [shape: bf16[1024,256], index: 3, kind: input, shape index: {}]
  %s4 = inlined_call_operand.vmem [shape: bf16[1024,256], index: 4, kind: input, shape index: {}]
  %s5 = inlined_call_operand.vmem [shape: f32[1,256], index: 5, kind: input, shape index: {}]
  %s6 = inlined_call_operand.vmem [shape: f32[1,256], index: 6, kind: input, shape index: {}]
  %s7 = inlined_call_operand.vmem [shape: bf16[256,128], index: 7, kind: input, shape index: {}]
  %s8 = inlined_call_operand.vmem [shape: bf16[256,128], index: 8, kind: input, shape index: {}]
  %s9 = inlined_call_operand.vmem [shape: f32[1,128], index: 9, kind: input, shape index: {}]
  %s10 = inlined_call_operand.vmem [shape: bf16[128,32], index: 10, kind: input, shape index: {}]
  %s11 = inlined_call_operand.vmem [shape: f32[1,32], index: 11, kind: input, shape index: {}]
  %s12 = inlined_call_operand.vmem [shape: f32[2,32], index: 12, kind: input, shape index: {}]
  %s13 = inlined_call_operand.vmem [shape: f32[1,2], index: 13, kind: input, shape index: {}]
  %s14 = inlined_call_operand.vmem [shape: f32[4,2], index: 14, kind: output, shape index: {}]
  %s15 = sld [smem:[#allocation0]]
  $region66: #{fmcw_cmlp_forward.1} parent=0
    _
  %s17 = ssub.s32 1, %s15
  %s18 = scalar_select 0, %s17, %s15
  // Predicated region
  $region2: #{fmcw_cmlp_forward.1} parent=0 // pred_check
    _
  $region3: #{fmcw_cmlp_forward.1} parent=0 // pred_check_branch
    %20 = sbr.rel (0) target = $region5
  $region4: #{fmcw_cmlp_forward.1} parent=0 // pred_region
    _
  $region5: #{fmcw_cmlp_forward.1} parent=0 // pred_fallthru
    _
  // Predicated region
  $region6: #{fmcw_cmlp_forward.1} parent=0 // pred_check
    _
  $region7: #{fmcw_cmlp_forward.1} parent=0 // pred_check_branch
    %22 = sbr.rel (0) target = $region9
  $region8: #{fmcw_cmlp_forward.1} parent=0 // pred_region
    _
  $region9: #{fmcw_cmlp_forward.1} parent=0 // pred_fallthru
    _
  // Predicated region
  $region10: #{fmcw_cmlp_forward.1} parent=0 // pred_check
    _
  $region11: #{fmcw_cmlp_forward.1} parent=0 // pred_check_branch
    %24 = sbr.rel (0) target = $region13
  $region12: #{fmcw_cmlp_forward.1} parent=0 // pred_region
    _
  $region13: #{fmcw_cmlp_forward.1} parent=0 // pred_fallthru
    _
  // Predicated region
  $region14: #{fmcw_cmlp_forward.1} parent=0 // pred_check
    _
  $region15: #{fmcw_cmlp_forward.1} parent=0 // pred_check_branch
    %26 = sbr.rel (0) target = $region17
  $region16: #{fmcw_cmlp_forward.1} parent=0 // pred_region
    _
  $region17: #{fmcw_cmlp_forward.1} parent=0 // pred_fallthru
    _
  // Predicated region
  $region18: #{fmcw_cmlp_forward.1} parent=0 // pred_check
    _
  $region19: #{fmcw_cmlp_forward.1} parent=0 // pred_check_branch
    %28 = sbr.rel (0) target = $region21
  $region20: #{fmcw_cmlp_forward.1} parent=0 // pred_region
    _
  $region21: #{fmcw_cmlp_forward.1} parent=0 // pred_fallthru
    _
  // Predicated region
  $region22: #{fmcw_cmlp_forward.1} parent=0 // pred_check
    _
  $region23: #{fmcw_cmlp_forward.1} parent=0 // pred_check_branch
    %30 = sbr.rel (0) target = $region25
  $region24: #{fmcw_cmlp_forward.1} parent=0 // pred_region
    _
  $region25: #{fmcw_cmlp_forward.1} parent=0 // pred_fallthru
    _
  // Predicated region
  $region26: #{fmcw_cmlp_forward.1} parent=0 // pred_check
    _
  $region27: #{fmcw_cmlp_forward.1} parent=0 // pred_check_branch
    %32 = sbr.rel (0) target = $region29
  $region28: #{fmcw_cmlp_forward.1} parent=0 // pred_region
    _
  $region29: #{fmcw_cmlp_forward.1} parent=0 // pred_fallthru
    _
  // Predicated region
  $region30: #{fmcw_cmlp_forward.1} parent=0 // pred_check
    _
  $region31: #{fmcw_cmlp_forward.1} parent=0 // pred_check_branch
    %34 = sbr.rel (0) target = $region33
  $region32: #{fmcw_cmlp_forward.1} parent=0 // pred_region
    _
  $region33: #{fmcw_cmlp_forward.1} parent=0 // pred_fallthru
    _
  // Predicated region
  $region34: #{fmcw_cmlp_forward.1} parent=0 // pred_check
    _
  $region35: #{fmcw_cmlp_forward.1} parent=0 // pred_check_branch
    %36 = sbr.rel (0) target = $region37
  $region36: #{fmcw_cmlp_forward.1} parent=0 // pred_region
    _
  $region37: #{fmcw_cmlp_forward.1} parent=0 // pred_fallthru
    _
  // Predicated region
  $region38: #{fmcw_cmlp_forward.1} parent=0 // pred_check
    _
  $region39: #{fmcw_cmlp_forward.1} parent=0 // pred_check_branch
    %38 = sbr.rel (0) target = $region41
  $region40: #{fmcw_cmlp_forward.1} parent=0 // pred_region
    _
  $region41: #{fmcw_cmlp_forward.1} parent=0 // pred_fallthru
    _
  // Predicated region
  $region42: #{fmcw_cmlp_forward.1} parent=0 // pred_check
    _
  $region43: #{fmcw_cmlp_forward.1} parent=0 // pred_check_branch
    %40 = sbr.rel (0) target = $region45
  $region44: #{fmcw_cmlp_forward.1} parent=0 // pred_region
    _
  $region45: #{fmcw_cmlp_forward.1} parent=0 // pred_fallthru
    _
  // Predicated region
  $region46: #{fmcw_cmlp_forward.1} parent=0 // pred_check
    _
  $region47: #{fmcw_cmlp_forward.1} parent=0 // pred_check_branch
    %42 = sbr.rel (0) target = $region49
  $region48: #{fmcw_cmlp_forward.1} parent=0 // pred_region
    _
  $region49: #{fmcw_cmlp_forward.1} parent=0 // pred_fallthru
    _
  // Predicated region
  $region50: #{fmcw_cmlp_forward.1} parent=0 // pred_check
    _
  $region51: #{fmcw_cmlp_forward.1} parent=0 // pred_check_branch
    %44 = sbr.rel (0) target = $region53
  $region52: #{fmcw_cmlp_forward.1} parent=0 // pred_region
    _
  $region53: #{fmcw_cmlp_forward.1} parent=0 // pred_fallthru
    _
  // Predicated region
  $region54: #{fmcw_cmlp_forward.1} parent=0 // pred_check
    _
  $region55: #{fmcw_cmlp_forward.1} parent=0 // pred_check_branch
    %46 = sbr.rel (0) target = $region57
  $region56: #{fmcw_cmlp_forward.1} parent=0 // pred_region
    _
  $region57: #{fmcw_cmlp_forward.1} parent=0 // pred_fallthru
    _
  %v47 = vld [vmem:[%s0] sm:$0xff]
  %v48 = vld [vmem:[%s0 + $0x8] sm:$0xff]
  %v49 = vld [vmem:[%s1] sm:$0xff]
  %v50 = vld [vmem:[%s1 + $0x8] sm:$0xff]
  %v51 = vunpack.c.l.bf16 %v47
  %v52 = vunpack.c.h.bf16 %v47
  %v53 = vunpack.c.l.bf16 %v48
  %v54 = vunpack.c.h.bf16 %v48
  %v55 = vunpack.c.l.bf16 %v49
  %v56 = vunpack.c.h.bf16 %v49
  %v57 = vunpack.c.l.bf16 %v50
  %v58 = vunpack.c.h.bf16 %v50
  %v59 = vadd.f32 %v51, %v55
  %v60 = vadd.f32 %v52, %v56
  %v61 = vadd.f32 %v53, %v57
  %v62 = vadd.f32 %v54, %v58
  %67 = vst [vmem:[#allocation1] ss:$2 sm:$0xff] %v59
  %s68 = scalar_lea.vmem [#allocation1], 16
  %69 = vst [vmem:[%s68] ss:$2 sm:$0xff] %v60
  %s70 = scalar_lea.vmem [#allocation1], 32
  %71 = vst [vmem:[%s70] ss:$2 sm:$0xff] %v61
  %s72 = scalar_lea.vmem [#allocation1], 48
  %73 = vst [vmem:[%s72] ss:$2 sm:$0xff] %v62
  %v74 = vld.sshfl [vmem:[#allocation1] sm:$0xff pattern:$0x75316420]
  %v75 = vld.sshfl [vmem:[#allocation1 + $0x8] sm:$0xff pattern:$0x75316420]
  %v76 = vld.sshfl [vmem:[#allocation1 + $0x10] sm:$0xff pattern:$0x75316420]
  %v77 = vld.sshfl [vmem:[#allocation1 + $0x18] sm:$0xff pattern:$0x75316420]
  %v78 = vld.sshfl [vmem:[#allocation1 + $0x20] sm:$0xff pattern:$0x75316420]
  %v79 = vld.sshfl [vmem:[#allocation1 + $0x28] sm:$0xff pattern:$0x75316420]
  %v80 = vld.sshfl [vmem:[#allocation1 + $0x30] sm:$0xff pattern:$0x75316420]
  %v81 = vld.sshfl [vmem:[#allocation1 + $0x38] sm:$0xff pattern:$0x75316420]
  %v90 = vpack.c.bf16 %v74, %v74
  %v91 = vpack.c.bf16 %v75, %v75
  %v92 = vpack.c.bf16 %v76, %v76
  %v93 = vpack.c.bf16 %v77, %v77
  %v94 = vpack.c.bf16 %v78, %v78
  %v95 = vpack.c.bf16 %v79, %v79
  %v96 = vpack.c.bf16 %v80, %v80
  %v97 = vpack.c.bf16 %v81, %v81
  %v98 = vld [vmem:[%s2] sm:$0xff]
  %v99 = vld [vmem:[%s2 + $0x8] sm:$0xff]
  %v100 = vld [vmem:[%s2 + $0x10] sm:$0xff]
  %v101 = vld [vmem:[%s2 + $0x18] sm:$0xff]
  %v102 = vld [vmem:[%s2 + $0x20] sm:$0xff]
  %v103 = vld [vmem:[%s2 + $0x28] sm:$0xff]
  %v104 = vld [vmem:[%s2 + $0x30] sm:$0xff]
  %v105 = vld [vmem:[%s2 + $0x38] sm:$0xff]
  %v106 = vld [vmem:[%s2 + $0x40] sm:$0xff]
  %v107 = vld [vmem:[%s2 + $0x48] sm:$0xff]
  %v108 = vld [vmem:[%s2 + $0x50] sm:$0xff]
  %v109 = vld [vmem:[%s2 + $0x58] sm:$0xff]
  %v110 = vld [vmem:[%s2 + $0x60] sm:$0xff]
  %v111 = vld [vmem:[%s2 + $0x68] sm:$0xff]
  %v112 = vld [vmem:[%s2 + $0x70] sm:$0xff]
  %v113 = vld [vmem:[%s2 + $0x78] sm:$0xff]
  %v114 = vld [vmem:[%s2 + $0x80] sm:$0xff]
  %v115 = vld [vmem:[%s2 + $0x88] sm:$0xff]
  %v116 = vld [vmem:[%s2 + $0x90] sm:$0xff]
  %v117 = vld [vmem:[%s2 + $0x98] sm:$0xff]
  %v118 = vld [vmem:[%s2 + $0xa0] sm:$0xff]
  %v119 = vld [vmem:[%s2 + $0xa8] sm:$0xff]
  %v120 = vld [vmem:[%s2 + $0xb0] sm:$0xff]
  %v121 = vld [vmem:[%s2 + $0xb8] sm:$0xff]
  %v122 = vld [vmem:[%s2 + $0xc0] sm:$0xff]
  %v123 = vld [vmem:[%s2 + $0xc8] sm:$0xff]
  %v124 = vld [vmem:[%s2 + $0xd0] sm:$0xff]
  %v125 = vld [vmem:[%s2 + $0xd8] sm:$0xff]
  %v126 = vld [vmem:[%s2 + $0xe0] sm:$0xff]
  %v127 = vld [vmem:[%s2 + $0xe8] sm:$0xff]
  %v128 = vld [vmem:[%s2 + $0xf0] sm:$0xff]
  %v129 = vld [vmem:[%s2 + $0xf8] sm:$0xff]
  %v130 = vld [vmem:[%s2 + $0x100] sm:$0xff]
  %v131 = vld [vmem:[%s2 + $0x108] sm:$0xff]
  %v132 = vld [vmem:[%s2 + $0x110] sm:$0xff]
  %v133 = vld [vmem:[%s2 + $0x118] sm:$0xff]
  %v134 = vld [vmem:[%s2 + $0x120] sm:$0xff]
  %v135 = vld [vmem:[%s2 + $0x128] sm:$0xff]
  %v136 = vld [vmem:[%s2 + $0x130] sm:$0xff]
  %v137 = vld [vmem:[%s2 + $0x138] sm:$0xff]
  %v138 = vld [vmem:[%s2 + $0x140] sm:$0xff]
  %v139 = vld [vmem:[%s2 + $0x148] sm:$0xff]
  %v140 = vld [vmem:[%s2 + $0x150] sm:$0xff]
  %v141 = vld [vmem:[%s2 + $0x158] sm:$0xff]
  %v142 = vld [vmem:[%s2 + $0x160] sm:$0xff]
  %v143 = vld [vmem:[%s2 + $0x168] sm:$0xff]
  %v144 = vld [vmem:[%s2 + $0x170] sm:$0xff]
  %v145 = vld [vmem:[%s2 + $0x178] sm:$0xff]
  %v146 = vld [vmem:[%s2 + $0x180] sm:$0xff]
  %v147 = vld [vmem:[%s2 + $0x188] sm:$0xff]
  %v148 = vld [vmem:[%s2 + $0x190] sm:$0xff]
  %v149 = vld [vmem:[%s2 + $0x198] sm:$0xff]
  %v150 = vld [vmem:[%s2 + $0x1a0] sm:$0xff]
  %v151 = vld [vmem:[%s2 + $0x1a8] sm:$0xff]
  %v152 = vld [vmem:[%s2 + $0x1b0] sm:$0xff]
  %v153 = vld [vmem:[%s2 + $0x1b8] sm:$0xff]
  %v154 = vld [vmem:[%s2 + $0x1c0] sm:$0xff]
  %v155 = vld [vmem:[%s2 + $0x1c8] sm:$0xff]
  %v156 = vld [vmem:[%s2 + $0x1d0] sm:$0xff]
  %v157 = vld [vmem:[%s2 + $0x1d8] sm:$0xff]
  %v158 = vld [vmem:[%s2 + $0x1e0] sm:$0xff]
  %v159 = vld [vmem:[%s2 + $0x1e8] sm:$0xff]
  %v160 = vld [vmem:[%s2 + $0x1f0] sm:$0xff]
  %v161 = vld [vmem:[%s2 + $0x1f8] sm:$0xff]
  %v162 = vld [vmem:[%s2 + $0x200] sm:$0xff]
  %v163 = vld [vmem:[%s2 + $0x208] sm:$0xff]
  %v164 = vld [vmem:[%s2 + $0x210] sm:$0xff]
  %v165 = vld [vmem:[%s2 + $0x218] sm:$0xff]
  %v166 = vld [vmem:[%s2 + $0x220] sm:$0xff]
  %v167 = vld [vmem:[%s2 + $0x228] sm:$0xff]
  %v168 = vld [vmem:[%s2 + $0x230] sm:$0xff]
  %v169 = vld [vmem:[%s2 + $0x238] sm:$0xff]
  %v170 = vld [vmem:[%s2 + $0x240] sm:$0xff]
  %v171 = vld [vmem:[%s2 + $0x248] sm:$0xff]
  %v172 = vld [vmem:[%s2 + $0x250] sm:$0xff]
  %v173 = vld [vmem:[%s2 + $0x258] sm:$0xff]
  %v174 = vld [vmem:[%s2 + $0x260] sm:$0xff]
  %v175 = vld [vmem:[%s2 + $0x268] sm:$0xff]
  %v176 = vld [vmem:[%s2 + $0x270] sm:$0xff]
  %v177 = vld [vmem:[%s2 + $0x278] sm:$0xff]
  %v178 = vld [vmem:[%s2 + $0x280] sm:$0xff]
  %v179 = vld [vmem:[%s2 + $0x288] sm:$0xff]
  %v180 = vld [vmem:[%s2 + $0x290] sm:$0xff]
  %v181 = vld [vmem:[%s2 + $0x298] sm:$0xff]
  %v182 = vld [vmem:[%s2 + $0x2a0] sm:$0xff]
  %v183 = vld [vmem:[%s2 + $0x2a8] sm:$0xff]
  %v184 = vld [vmem:[%s2 + $0x2b0] sm:$0xff]
  %v185 = vld [vmem:[%s2 + $0x2b8] sm:$0xff]
  %v186 = vld [vmem:[%s2 + $0x2c0] sm:$0xff]
  %v187 = vld [vmem:[%s2 + $0x2c8] sm:$0xff]
  %v188 = vld [vmem:[%s2 + $0x2d0] sm:$0xff]
  %v189 = vld [vmem:[%s2 + $0x2d8] sm:$0xff]
  %v190 = vld [vmem:[%s2 + $0x2e0] sm:$0xff]
  %v191 = vld [vmem:[%s2 + $0x2e8] sm:$0xff]
  %v192 = vld [vmem:[%s2 + $0x2f0] sm:$0xff]
  %v193 = vld [vmem:[%s2 + $0x2f8] sm:$0xff]
  %v194 = vld [vmem:[%s2 + $0x300] sm:$0xff]
  %v195 = vld [vmem:[%s2 + $0x308] sm:$0xff]
  %v196 = vld [vmem:[%s2 + $0x310] sm:$0xff]
  %v197 = vld [vmem:[%s2 + $0x318] sm:$0xff]
  %v198 = vld [vmem:[%s2 + $0x320] sm:$0xff]
  %v199 = vld [vmem:[%s2 + $0x328] sm:$0xff]
  %v200 = vld [vmem:[%s2 + $0x330] sm:$0xff]
  %v201 = vld [vmem:[%s2 + $0x338] sm:$0xff]
  %v202 = vld [vmem:[%s2 + $0x340] sm:$0xff]
  %v203 = vld [vmem:[%s2 + $0x348] sm:$0xff]
  %v204 = vld [vmem:[%s2 + $0x350] sm:$0xff]
  %v205 = vld [vmem:[%s2 + $0x358] sm:$0xff]
  %v206 = vld [vmem:[%s2 + $0x360] sm:$0xff]
  %v207 = vld [vmem:[%s2 + $0x368] sm:$0xff]
  %v208 = vld [vmem:[%s2 + $0x370] sm:$0xff]
  %v209 = vld [vmem:[%s2 + $0x378] sm:$0xff]
  %v210 = vld [vmem:[%s2 + $0x380] sm:$0xff]
  %v211 = vld [vmem:[%s2 + $0x388] sm:$0xff]
  %v212 = vld [vmem:[%s2 + $0x390] sm:$0xff]
  %v213 = vld [vmem:[%s2 + $0x398] sm:$0xff]
  %v214 = vld [vmem:[%s2 + $0x3a0] sm:$0xff]
  %v215 = vld [vmem:[%s2 + $0x3a8] sm:$0xff]
  %v216 = vld [vmem:[%s2 + $0x3b0] sm:$0xff]
  %v217 = vld [vmem:[%s2 + $0x3b8] sm:$0xff]
  %v218 = vld [vmem:[%s2 + $0x3c0] sm:$0xff]
  %v219 = vld [vmem:[%s2 + $0x3c8] sm:$0xff]
  %v220 = vld [vmem:[%s2 + $0x3d0] sm:$0xff]
  %v221 = vld [vmem:[%s2 + $0x3d8] sm:$0xff]
  %v222 = vld [vmem:[%s2 + $0x3e0] sm:$0xff]
  %v223 = vld [vmem:[%s2 + $0x3e8] sm:$0xff]
  %v224 = vld [vmem:[%s2 + $0x3f0] sm:$0xff]
  %v225 = vld [vmem:[%s2 + $0x3f8] sm:$0xff]
  %227 = vst [vmem:[#allocation1] ss:$4 sm:$0xff] %v47
  %s229 = scalar_lea.vmem [#allocation1], 32
  %230 = vst [vmem:[%s229] ss:$4 sm:$0xff] %v48
  %v231 = vld.sshfl [vmem:[#allocation1] sm:$0xff pattern:$0x73625140]
  %v232 = vld.sshfl [vmem:[#allocation1 + $0x8] sm:$0xff pattern:$0x73625140]
  %v233 = vld.sshfl [vmem:[#allocation1 + $0x10] sm:$0xff pattern:$0x73625140]
  %v234 = vld.sshfl [vmem:[#allocation1 + $0x18] sm:$0xff pattern:$0x73625140]
  %v235 = vld.sshfl [vmem:[#allocation1 + $0x20] sm:$0xff pattern:$0x73625140]
  %v236 = vld.sshfl [vmem:[#allocation1 + $0x28] sm:$0xff pattern:$0x73625140]
  %v237 = vld.sshfl [vmem:[#allocation1 + $0x30] sm:$0xff pattern:$0x73625140]
  %v238 = vld.sshfl [vmem:[#allocation1 + $0x38] sm:$0xff pattern:$0x73625140]
  %v375 = vunpack.c.l.b16 %v98
  %v376 = vunpack.c.h.b16 %v98
  %v377 = vunpack.c.l.b16 %v99
  %v378 = vunpack.c.h.b16 %v99
  %v379 = vunpack.c.l.b16 %v100
  %v380 = vunpack.c.h.b16 %v100
  %v381 = vunpack.c.l.b16 %v101
  %v382 = vunpack.c.h.b16 %v101
  %v383 = vunpack.c.l.b16 %v102
  %v384 = vunpack.c.h.b16 %v102
  %v385 = vunpack.c.l.b16 %v103
  %v386 = vunpack.c.h.b16 %v103
  %v387 = vunpack.c.l.b16 %v104
  %v388 = vunpack.c.h.b16 %v104
  %v389 = vunpack.c.l.b16 %v105
  %v390 = vunpack.c.h.b16 %v105
  %v391 = vunpack.c.l.b16 %v106
  %v392 = vunpack.c.h.b16 %v106
  %v393 = vunpack.c.l.b16 %v107
  %v394 = vunpack.c.h.b16 %v107
  %v395 = vunpack.c.l.b16 %v108
  %v396 = vunpack.c.h.b16 %v108
  %v397 = vunpack.c.l.b16 %v109
  %v398 = vunpack.c.h.b16 %v109
  %v399 = vunpack.c.l.b16 %v110
  %v400 = vunpack.c.h.b16 %v110
  %v401 = vunpack.c.l.b16 %v111
  %v402 = vunpack.c.h.b16 %v111
  %v403 = vunpack.c.l.b16 %v112
  %v404 = vunpack.c.h.b16 %v112
  %v405 = vunpack.c.l.b16 %v113
  %v406 = vunpack.c.h.b16 %v113
  %v407 = vunpack.c.l.b16 %v114
  %v408 = vunpack.c.h.b16 %v114
  %v409 = vunpack.c.l.b16 %v115
  %v410 = vunpack.c.h.b16 %v115
  %v411 = vunpack.c.l.b16 %v116
  %v412 = vunpack.c.h.b16 %v116
  %v413 = vunpack.c.l.b16 %v117
  %v414 = vunpack.c.h.b16 %v117
  %v415 = vunpack.c.l.b16 %v118
  %v416 = vunpack.c.h.b16 %v118
  %v417 = vunpack.c.l.b16 %v119
  %v418 = vunpack.c.h.b16 %v119
  %v419 = vunpack.c.l.b16 %v120
  %v420 = vunpack.c.h.b16 %v120
  %v421 = vunpack.c.l.b16 %v121
  %v422 = vunpack.c.h.b16 %v121
  %v423 = vunpack.c.l.b16 %v122
  %v424 = vunpack.c.h.b16 %v122
  %v425 = vunpack.c.l.b16 %v123
  %v426 = vunpack.c.h.b16 %v123
  %v427 = vunpack.c.l.b16 %v124
  %v428 = vunpack.c.h.b16 %v124
  %v429 = vunpack.c.l.b16 %v125
  %v430 = vunpack.c.h.b16 %v125
  %v431 = vunpack.c.l.b16 %v126
  %v432 = vunpack.c.h.b16 %v126
  %v433 = vunpack.c.l.b16 %v127
  %v434 = vunpack.c.h.b16 %v127
  %v435 = vunpack.c.l.b16 %v128
  %v436 = vunpack.c.h.b16 %v128
  %v437 = vunpack.c.l.b16 %v129
  %v438 = vunpack.c.h.b16 %v129
  %v439 = vunpack.c.l.b16 %v130
  %v440 = vunpack.c.h.b16 %v130
  %v441 = vunpack.c.l.b16 %v131
  %v442 = vunpack.c.h.b16 %v131
  %v443 = vunpack.c.l.b16 %v132
  %v444 = vunpack.c.h.b16 %v132
  %v445 = vunpack.c.l.b16 %v133
  %v446 = vunpack.c.h.b16 %v133
  %v447 = vunpack.c.l.b16 %v134
  %v448 = vunpack.c.h.b16 %v134
  %v449 = vunpack.c.l.b16 %v135
  %v450 = vunpack.c.h.b16 %v135
  %v451 = vunpack.c.l.b16 %v136
  %v452 = vunpack.c.h.b16 %v136
  %v453 = vunpack.c.l.b16 %v137
  %v454 = vunpack.c.h.b16 %v137
  %v455 = vunpack.c.l.b16 %v138
  %v456 = vunpack.c.h.b16 %v138
  %v457 = vunpack.c.l.b16 %v139
  %v458 = vunpack.c.h.b16 %v139
  %v459 = vunpack.c.l.b16 %v140
  %v460 = vunpack.c.h.b16 %v140
  %v461 = vunpack.c.l.b16 %v141
  %v462 = vunpack.c.h.b16 %v141
  %v463 = vunpack.c.l.b16 %v142
  %v464 = vunpack.c.h.b16 %v142
  %v465 = vunpack.c.l.b16 %v143
  %v466 = vunpack.c.h.b16 %v143
  %v467 = vunpack.c.l.b16 %v144
  %v468 = vunpack.c.h.b16 %v144
  %v469 = vunpack.c.l.b16 %v145
  %v470 = vunpack.c.h.b16 %v145
  %v471 = vunpack.c.l.b16 %v146
  %v472 = vunpack.c.h.b16 %v146
  %v473 = vunpack.c.l.b16 %v147
  %v474 = vunpack.c.h.b16 %v147
  %v475 = vunpack.c.l.b16 %v148
  %v476 = vunpack.c.h.b16 %v148
  %v477 = vunpack.c.l.b16 %v149
  %v478 = vunpack.c.h.b16 %v149
  %v479 = vunpack.c.l.b16 %v150
  %v480 = vunpack.c.h.b16 %v150
  %v481 = vunpack.c.l.b16 %v151
  %v482 = vunpack.c.h.b16 %v151
  %v483 = vunpack.c.l.b16 %v152
  %v484 = vunpack.c.h.b16 %v152
  %v485 = vunpack.c.l.b16 %v153
  %v486 = vunpack.c.h.b16 %v153
  %v487 = vunpack.c.l.b16 %v154
  %v488 = vunpack.c.h.b16 %v154
  %v489 = vunpack.c.l.b16 %v155
  %v490 = vunpack.c.h.b16 %v155
  %v491 = vunpack.c.l.b16 %v156
  %v492 = vunpack.c.h.b16 %v156
  %v493 = vunpack.c.l.b16 %v157
  %v494 = vunpack.c.h.b16 %v157
  %v495 = vunpack.c.l.b16 %v158
  %v496 = vunpack.c.h.b16 %v158
  %v497 = vunpack.c.l.b16 %v159
  %v498 = vunpack.c.h.b16 %v159
  %v499 = vunpack.c.l.b16 %v160
  %v500 = vunpack.c.h.b16 %v160
  %v501 = vunpack.c.l.b16 %v161
  %v502 = vunpack.c.h.b16 %v161
  %v503 = vunpack.c.l.b16 %v162
  %v504 = vunpack.c.h.b16 %v162
  %v505 = vunpack.c.l.b16 %v163
  %v506 = vunpack.c.h.b16 %v163
  %v507 = vunpack.c.l.b16 %v164
  %v508 = vunpack.c.h.b16 %v164
  %v509 = vunpack.c.l.b16 %v165
  %v510 = vunpack.c.h.b16 %v165
  %v511 = vunpack.c.l.b16 %v166
  %v512 = vunpack.c.h.b16 %v166
  %v513 = vunpack.c.l.b16 %v167
  %v514 = vunpack.c.h.b16 %v167
  %v515 = vunpack.c.l.b16 %v168
  %v516 = vunpack.c.h.b16 %v168
  %v517 = vunpack.c.l.b16 %v169
  %v518 = vunpack.c.h.b16 %v169
  %v519 = vunpack.c.l.b16 %v170
  %v520 = vunpack.c.h.b16 %v170
  %v521 = vunpack.c.l.b16 %v171
  %v522 = vunpack.c.h.b16 %v171
  %v523 = vunpack.c.l.b16 %v172
  %v524 = vunpack.c.h.b16 %v172
  %v525 = vunpack.c.l.b16 %v173
  %v526 = vunpack.c.h.b16 %v173
  %v527 = vunpack.c.l.b16 %v174
  %v528 = vunpack.c.h.b16 %v174
  %v529 = vunpack.c.l.b16 %v175
  %v530 = vunpack.c.h.b16 %v175
  %v531 = vunpack.c.l.b16 %v176
  %v532 = vunpack.c.h.b16 %v176
  %v533 = vunpack.c.l.b16 %v177
  %v534 = vunpack.c.h.b16 %v177
  %v535 = vunpack.c.l.b16 %v178
  %v536 = vunpack.c.h.b16 %v178
  %v537 = vunpack.c.l.b16 %v179
  %v538 = vunpack.c.h.b16 %v179
  %v539 = vunpack.c.l.b16 %v180
  %v540 = vunpack.c.h.b16 %v180
  %v541 = vunpack.c.l.b16 %v181
  %v542 = vunpack.c.h.b16 %v181
  %v543 = vunpack.c.l.b16 %v182
  %v544 = vunpack.c.h.b16 %v182
  %v545 = vunpack.c.l.b16 %v183
  %v546 = vunpack.c.h.b16 %v183
  %v547 = vunpack.c.l.b16 %v184
  %v548 = vunpack.c.h.b16 %v184
  %v549 = vunpack.c.l.b16 %v185
  %v550 = vunpack.c.h.b16 %v185
  %v551 = vunpack.c.l.b16 %v186
  %v552 = vunpack.c.h.b16 %v186
  %v553 = vunpack.c.l.b16 %v187
  %v554 = vunpack.c.h.b16 %v187
  %v555 = vunpack.c.l.b16 %v188
  %v556 = vunpack.c.h.b16 %v188
  %v557 = vunpack.c.l.b16 %v189
  %v558 = vunpack.c.h.b16 %v189
  %v559 = vunpack.c.l.b16 %v190
  %v560 = vunpack.c.h.b16 %v190
  %v561 = vunpack.c.l.b16 %v191
  %v562 = vunpack.c.h.b16 %v191
  %v563 = vunpack.c.l.b16 %v192
  %v564 = vunpack.c.h.b16 %v192
  %v565 = vunpack.c.l.b16 %v193
  %v566 = vunpack.c.h.b16 %v193
  %v567 = vunpack.c.l.b16 %v194
  %v568 = vunpack.c.h.b16 %v194
  %v569 = vunpack.c.l.b16 %v195
  %v570 = vunpack.c.h.b16 %v195
  %v571 = vunpack.c.l.b16 %v196
  %v572 = vunpack.c.h.b16 %v196
  %v573 = vunpack.c.l.b16 %v197
  %v574 = vunpack.c.h.b16 %v197
  %v575 = vunpack.c.l.b16 %v198
  %v576 = vunpack.c.h.b16 %v198
  %v577 = vunpack.c.l.b16 %v199
  %v578 = vunpack.c.h.b16 %v199
  %v579 = vunpack.c.l.b16 %v200
  %v580 = vunpack.c.h.b16 %v200
  %v581 = vunpack.c.l.b16 %v201
  %v582 = vunpack.c.h.b16 %v201
  %v583 = vunpack.c.l.b16 %v202
  %v584 = vunpack.c.h.b16 %v202
  %v585 = vunpack.c.l.b16 %v203
  %v586 = vunpack.c.h.b16 %v203
  %v587 = vunpack.c.l.b16 %v204
  %v588 = vunpack.c.h.b16 %v204
  %v589 = vunpack.c.l.b16 %v205
  %v590 = vunpack.c.h.b16 %v205
  %v591 = vunpack.c.l.b16 %v206
  %v592 = vunpack.c.h.b16 %v206
  %v593 = vunpack.c.l.b16 %v207
  %v594 = vunpack.c.h.b16 %v207
  %v595 = vunpack.c.l.b16 %v208
  %v596 = vunpack.c.h.b16 %v208
  %v597 = vunpack.c.l.b16 %v209
  %v598 = vunpack.c.h.b16 %v209
  %v599 = vunpack.c.l.b16 %v210
  %v600 = vunpack.c.h.b16 %v210
  %v601 = vunpack.c.l.b16 %v211
  %v602 = vunpack.c.h.b16 %v211
  %v603 = vunpack.c.l.b16 %v212
  %v604 = vunpack.c.h.b16 %v212
  %v605 = vunpack.c.l.b16 %v213
  %v606 = vunpack.c.h.b16 %v213
  %v607 = vunpack.c.l.b16 %v214
  %v608 = vunpack.c.h.b16 %v214
  %v609 = vunpack.c.l.b16 %v215
  %v610 = vunpack.c.h.b16 %v215
  %v611 = vunpack.c.l.b16 %v216
  %v612 = vunpack.c.h.b16 %v216
  %v613 = vunpack.c.l.b16 %v217
  %v614 = vunpack.c.h.b16 %v217
  %v615 = vunpack.c.l.b16 %v218
  %v616 = vunpack.c.h.b16 %v218
  %v617 = vunpack.c.l.b16 %v219
  %v618 = vunpack.c.h.b16 %v219
  %v619 = vunpack.c.l.b16 %v220
  %v620 = vunpack.c.h.b16 %v220
  %v621 = vunpack.c.l.b16 %v221
  %v622 = vunpack.c.h.b16 %v221
  %v623 = vunpack.c.l.b16 %v222
  %v624 = vunpack.c.h.b16 %v222
  %v625 = vunpack.c.l.b16 %v223
  %v626 = vunpack.c.h.b16 %v223
  %v627 = vunpack.c.l.b16 %v224
  %v628 = vunpack.c.h.b16 %v224
  %v629 = vunpack.c.l.b16 %v225
  %v630 = vunpack.c.h.b16 %v225
  %v631 = vpack.c.b16 %v377, %v375
  %v632 = vpack.c.b16 %v378, %v376
  %v633 = vpack.c.b16 %v381, %v379
  %v634 = vpack.c.b16 %v382, %v380
  %v635 = vpack.c.b16 %v385, %v383
  %v636 = vpack.c.b16 %v386, %v384
  %v637 = vpack.c.b16 %v389, %v387
  %v638 = vpack.c.b16 %v390, %v388
  %v639 = vpack.c.b16 %v393, %v391
  %v640 = vpack.c.b16 %v394, %v392
  %v641 = vpack.c.b16 %v397, %v395
  %v642 = vpack.c.b16 %v398, %v396
  %v643 = vpack.c.b16 %v401, %v399
  %v644 = vpack.c.b16 %v402, %v400
  %v645 = vpack.c.b16 %v405, %v403
  %v646 = vpack.c.b16 %v406, %v404
  %v647 = vpack.c.b16 %v409, %v407
  %v648 = vpack.c.b16 %v410, %v408
  %v649 = vpack.c.b16 %v413, %v411
  %v650 = vpack.c.b16 %v414, %v412
  %v651 = vpack.c.b16 %v417, %v415
  %v652 = vpack.c.b16 %v418, %v416
  %v653 = vpack.c.b16 %v421, %v419
  %v654 = vpack.c.b16 %v422, %v420
  %v655 = vpack.c.b16 %v425, %v423
  %v656 = vpack.c.b16 %v426, %v424
  %v657 = vpack.c.b16 %v429, %v427
  %v658 = vpack.c.b16 %v430, %v428
  %v659 = vpack.c.b16 %v433, %v431
  %v660 = vpack.c.b16 %v434, %v432
  %v661 = vpack.c.b16 %v437, %v435
  %v662 = vpack.c.b16 %v438, %v436
  %v663 = vpack.c.b16 %v441, %v439
  %v664 = vpack.c.b16 %v442, %v440
  %v665 = vpack.c.b16 %v445, %v443
  %v666 = vpack.c.b16 %v446, %v444
  %v667 = vpack.c.b16 %v449, %v447
  %v668 = vpack.c.b16 %v450, %v448
  %v669 = vpack.c.b16 %v453, %v451
  %v670 = vpack.c.b16 %v454, %v452
  %v671 = vpack.c.b16 %v457, %v455
  %v672 = vpack.c.b16 %v458, %v456
  %v673 = vpack.c.b16 %v461, %v459
  %v674 = vpack.c.b16 %v462, %v460
  %v675 = vpack.c.b16 %v465, %v463
  %v676 = vpack.c.b16 %v466, %v464
  %v677 = vpack.c.b16 %v469, %v467
  %v678 = vpack.c.b16 %v470, %v468
  %v679 = vpack.c.b16 %v473, %v471
  %v680 = vpack.c.b16 %v474, %v472
  %v681 = vpack.c.b16 %v477, %v475
  %v682 = vpack.c.b16 %v478, %v476
  %v683 = vpack.c.b16 %v481, %v479
  %v684 = vpack.c.b16 %v482, %v480
  %v685 = vpack.c.b16 %v485, %v483
  %v686 = vpack.c.b16 %v486, %v484
  %v687 = vpack.c.b16 %v489, %v487
  %v688 = vpack.c.b16 %v490, %v488
  %v689 = vpack.c.b16 %v493, %v491
  %v690 = vpack.c.b16 %v494, %v492
  %v691 = vpack.c.b16 %v497, %v495
  %v692 = vpack.c.b16 %v498, %v496
  %v693 = vpack.c.b16 %v501, %v499
  %v694 = vpack.c.b16 %v502, %v500
  %v695 = vpack.c.b16 %v505, %v503
  %v696 = vpack.c.b16 %v506, %v504
  %v697 = vpack.c.b16 %v509, %v507
  %v698 = vpack.c.b16 %v510, %v508
  %v699 = vpack.c.b16 %v513, %v511
  %v700 = vpack.c.b16 %v514, %v512
  %v701 = vpack.c.b16 %v517, %v515
  %v702 = vpack.c.b16 %v518, %v516
  %v703 = vpack.c.b16 %v521, %v519
  %v704 = vpack.c.b16 %v522, %v520
  %v705 = vpack.c.b16 %v525, %v523
  %v706 = vpack.c.b16 %v526, %v524
  %v707 = vpack.c.b16 %v529, %v527
  %v708 = vpack.c.b16 %v530, %v528
  %v709 = vpack.c.b16 %v533, %v531
  %v710 = vpack.c.b16 %v534, %v532
  %v711 = vpack.c.b16 %v537, %v535
  %v712 = vpack.c.b16 %v538, %v536
  %v713 = vpack.c.b16 %v541, %v539
  %v714 = vpack.c.b16 %v542, %v540
  %v715 = vpack.c.b16 %v545, %v543
  %v716 = vpack.c.b16 %v546, %v544
  %v717 = vpack.c.b16 %v549, %v547
  %v718 = vpack.c.b16 %v550, %v548
  %v719 = vpack.c.b16 %v553, %v551
  %v720 = vpack.c.b16 %v554, %v552
  %v721 = vpack.c.b16 %v557, %v555
  %v722 = vpack.c.b16 %v558, %v556
  %v723 = vpack.c.b16 %v561, %v559
  %v724 = vpack.c.b16 %v562, %v560
  %v725 = vpack.c.b16 %v565, %v563
  %v726 = vpack.c.b16 %v566, %v564
  %v727 = vpack.c.b16 %v569, %v567
  %v728 = vpack.c.b16 %v570, %v568
  %v729 = vpack.c.b16 %v573, %v571
  %v730 = vpack.c.b16 %v574, %v572
  %v731 = vpack.c.b16 %v577, %v575
  %v732 = vpack.c.b16 %v578, %v576
  %v733 = vpack.c.b16 %v581, %v579
  %v734 = vpack.c.b16 %v582, %v580
  %v735 = vpack.c.b16 %v585, %v583
  %v736 = vpack.c.b16 %v586, %v584
  %v737 = vpack.c.b16 %v589, %v587
  %v738 = vpack.c.b16 %v590, %v588
  %v739 = vpack.c.b16 %v593, %v591
  %v740 = vpack.c.b16 %v594, %v592
  %v741 = vpack.c.b16 %v597, %v595
  %v742 = vpack.c.b16 %v598, %v596
  %v743 = vpack.c.b16 %v601, %v599
  %v744 = vpack.c.b16 %v602, %v600
  %v745 = vpack.c.b16 %v605, %v603
  %v746 = vpack.c.b16 %v606, %v604
  %v747 = vpack.c.b16 %v609, %v607
  %v748 = vpack.c.b16 %v610, %v608
  %v749 = vpack.c.b16 %v613, %v611
  %v750 = vpack.c.b16 %v614, %v612
  %v751 = vpack.c.b16 %v617, %v615
  %v752 = vpack.c.b16 %v618, %v616
  %v753 = vpack.c.b16 %v621, %v619
  %v754 = vpack.c.b16 %v622, %v620
  %v755 = vpack.c.b16 %v625, %v623
  %v756 = vpack.c.b16 %v626, %v624
  %v757 = vpack.c.b16 %v629, %v627
  %v758 = vpack.c.b16 %v630, %v628
  %887 = vmatpush.bf16.msra.mxu0 %v645
  %888 = vmatpush.bf16.msra.mxu0 %v643
  %889 = vmatpush.bf16.msra.mxu0 %v641
  %890 = vmatpush.bf16.msra.mxu0 %v639
  %891 = vmatpush.bf16.msra.mxu0 %v637
  %892 = vmatpush.bf16.msra.mxu0 %v635
  %893 = vmatpush.bf16.msra.mxu0 %v633
  %894 = vmatpush.bf16.msra.mxu0 %v631
  %895 = vmatmul.bf16.gmra.mxu0 %v231
  %v896 = vpop.f32.mrf.mxu0
  %v897 = vadd.f32 0.0, %v896
  %v898 = vpop.f32.mrf.mxu0
  %899 = vdwg.mxu0
  %900 = vmatpush.bf16.msra.mxu0 %v661
  %901 = vmatpush.bf16.msra.mxu0 %v659
  %902 = vmatpush.bf16.msra.mxu0 %v657
  %903 = vmatpush.bf16.msra.mxu0 %v655
  %904 = vmatpush.bf16.msra.mxu0 %v653
  %905 = vmatpush.bf16.msra.mxu0 %v651
  %906 = vmatpush.bf16.msra.mxu0 %v649
  %907 = vmatpush.bf16.msra.mxu0 %v647
  %908 = vmatmul.bf16.gmra.mxu0 %v232
  %v909 = vpop.f32.mrf.mxu0
  %v910 = vadd.f32 %v897, %v909
  %v911 = vpop.f32.mrf.mxu0
  %912 = vdwg.mxu0
  %913 = vmatpush.bf16.msra.mxu0 %v677
  %914 = vmatpush.bf16.msra.mxu0 %v675
  %915 = vmatpush.bf16.msra.mxu0 %v673
  %916 = vmatpush.bf16.msra.mxu0 %v671
  %917 = vmatpush.bf16.msra.mxu0 %v669
  %918 = vmatpush.bf16.msra.mxu0 %v667
  %919 = vmatpush.bf16.msra.mxu0 %v665
  %920 = vmatpush.bf16.msra.mxu0 %v663
  %921 = vmatmul.bf16.gmra.mxu0 %v233
  %v922 = vpop.f32.mrf.mxu0
  %v923 = vadd.f32 %v910, %v922
  %v924 = vpop.f32.mrf.mxu0
  %925 = vdwg.mxu0
  %926 = vmatpush.bf16.msra.mxu0 %v693
  %927 = vmatpush.bf16.msra.mxu0 %v691
  %928 = vmatpush.bf16.msra.mxu0 %v689
  %929 = vmatpush.bf16.msra.mxu0 %v687
  %930 = vmatpush.bf16.msra.mxu0 %v685
  %931 = vmatpush.bf16.msra.mxu0 %v683
  %932 = vmatpush.bf16.msra.mxu0 %v681
  %933 = vmatpush.bf16.msra.mxu0 %v679
  %934 = vmatmul.bf16.gmra.mxu0 %v234
  %v935 = vpop.f32.mrf.mxu0
  %v936 = vadd.f32 %v923, %v935
  %v937 = vpop.f32.mrf.mxu0
  %938 = vdwg.mxu0
  %939 = vmatpush.bf16.msra.mxu0 %v709
  %940 = vmatpush.bf16.msra.mxu0 %v707
  %941 = vmatpush.bf16.msra.mxu0 %v705
  %942 = vmatpush.bf16.msra.mxu0 %v703
  %943 = vmatpush.bf16.msra.mxu0 %v701
  %944 = vmatpush.bf16.msra.mxu0 %v699
  %945 = vmatpush.bf16.msra.mxu0 %v697
  %946 = vmatpush.bf16.msra.mxu0 %v695
  %947 = vmatmul.bf16.gmra.mxu0 %v235
  %v948 = vpop.f32.mrf.mxu0
  %v949 = vadd.f32 %v936, %v948
  %v950 = vpop.f32.mrf.mxu0
  %951 = vdwg.mxu0
  %952 = vmatpush.bf16.msra.mxu0 %v725
  %953 = vmatpush.bf16.msra.mxu0 %v723
  %954 = vmatpush.bf16.msra.mxu0 %v721
  %955 = vmatpush.bf16.msra.mxu0 %v719
  %956 = vmatpush.bf16.msra.mxu0 %v717
  %957 = vmatpush.bf16.msra.mxu0 %v715
  %958 = vmatpush.bf16.msra.mxu0 %v713
  %959 = vmatpush.bf16.msra.mxu0 %v711
  %960 = vmatmul.bf16.gmra.mxu0 %v236
  %v961 = vpop.f32.mrf.mxu0
  %v962 = vadd.f32 %v949, %v961
  %v963 = vpop.f32.mrf.mxu0
  %964 = vdwg.mxu0
  %965 = vmatpush.bf16.msra.mxu0 %v741
  %966 = vmatpush.bf16.msra.mxu0 %v739
  %967 = vmatpush.bf16.msra.mxu0 %v737
  %968 = vmatpush.bf16.msra.mxu0 %v735
  %969 = vmatpush.bf16.msra.mxu0 %v733
  %970 = vmatpush.bf16.msra.mxu0 %v731
  %971 = vmatpush.bf16.msra.mxu0 %v729
  %972 = vmatpush.bf16.msra.mxu0 %v727
  %973 = vmatmul.bf16.gmra.mxu0 %v237
  %v974 = vpop.f32.mrf.mxu0
  %v975 = vadd.f32 %v962, %v974
  %v976 = vpop.f32.mrf.mxu0
  %977 = vdwg.mxu0
  %978 = vmatpush.bf16.msra.mxu0 %v757
  %979 = vmatpush.bf16.msra.mxu0 %v755
  %980 = vmatpush.bf16.msra.mxu0 %v753
  %981 = vmatpush.bf16.msra.mxu0 %v751
  %982 = vmatpush.bf16.msra.mxu0 %v749
  %983 = vmatpush.bf16.msra.mxu0 %v747
  %984 = vmatpush.bf16.msra.mxu0 %v745
  %985 = vmatpush.bf16.msra.mxu0 %v743
  %986 = vmatmul.bf16.gmra.mxu0 %v238
  %v987 = vpop.f32.mrf.mxu0
  %v988 = vadd.f32 %v975, %v987
  %v989 = vpop.f32.mrf.mxu0
  %990 = vdwg.mxu0
  %991 = vmatpush.bf16.msra.mxu0 %v646
  %992 = vmatpush.bf16.msra.mxu0 %v644
  %993 = vmatpush.bf16.msra.mxu0 %v642
  %994 = vmatpush.bf16.msra.mxu0 %v640
  %995 = vmatpush.bf16.msra.mxu0 %v638
  %996 = vmatpush.bf16.msra.mxu0 %v636
  %997 = vmatpush.bf16.msra.mxu0 %v634
  %998 = vmatpush.bf16.msra.mxu0 %v632
  %999 = vmatmul.bf16.gmra.mxu0 %v231
  %v1000 = vpop.f32.mrf.mxu0
  %v1001 = vadd.f32 0.0, %v1000
  %v1002 = vpop.f32.mrf.mxu0
  %1003 = vdwg.mxu0
  %1004 = vmatpush.bf16.msra.mxu0 %v662
  %1005 = vmatpush.bf16.msra.mxu0 %v660
  %1006 = vmatpush.bf16.msra.mxu0 %v658
  %1007 = vmatpush.bf16.msra.mxu0 %v656
  %1008 = vmatpush.bf16.msra.mxu0 %v654
  %1009 = vmatpush.bf16.msra.mxu0 %v652
  %1010 = vmatpush.bf16.msra.mxu0 %v650
  %1011 = vmatpush.bf16.msra.mxu0 %v648
  %1012 = vmatmul.bf16.gmra.mxu0 %v232
  %v1013 = vpop.f32.mrf.mxu0
  %v1014 = vadd.f32 %v1001, %v1013
  %v1015 = vpop.f32.mrf.mxu0
  %1016 = vdwg.mxu0
  %1017 = vmatpush.bf16.msra.mxu0 %v678
  %1018 = vmatpush.bf16.msra.mxu0 %v676
  %1019 = vmatpush.bf16.msra.mxu0 %v674
  %1020 = vmatpush.bf16.msra.mxu0 %v672
  %1021 = vmatpush.bf16.msra.mxu0 %v670
  %1022 = vmatpush.bf16.msra.mxu0 %v668
  %1023 = vmatpush.bf16.msra.mxu0 %v666
  %1024 = vmatpush.bf16.msra.mxu0 %v664
  %1025 = vmatmul.bf16.gmra.mxu0 %v233
  %v1026 = vpop.f32.mrf.mxu0
  %v1027 = vadd.f32 %v1014, %v1026
  %v1028 = vpop.f32.mrf.mxu0
  %1029 = vdwg.mxu0
  %1030 = vmatpush.bf16.msra.mxu0 %v694
  %1031 = vmatpush.bf16.msra.mxu0 %v692
  %1032 = vmatpush.bf16.msra.mxu0 %v690
  %1033 = vmatpush.bf16.msra.mxu0 %v688
  %1034 = vmatpush.bf16.msra.mxu0 %v686
  %1035 = vmatpush.bf16.msra.mxu0 %v684
  %1036 = vmatpush.bf16.msra.mxu0 %v682
  %1037 = vmatpush.bf16.msra.mxu0 %v680
  %1038 = vmatmul.bf16.gmra.mxu0 %v234
  %v1039 = vpop.f32.mrf.mxu0
  %v1040 = vadd.f32 %v1027, %v1039
  %v1041 = vpop.f32.mrf.mxu0
  %1042 = vdwg.mxu0
  %1043 = vmatpush.bf16.msra.mxu0 %v710
  %1044 = vmatpush.bf16.msra.mxu0 %v708
  %1045 = vmatpush.bf16.msra.mxu0 %v706
  %1046 = vmatpush.bf16.msra.mxu0 %v704
  %1047 = vmatpush.bf16.msra.mxu0 %v702
  %1048 = vmatpush.bf16.msra.mxu0 %v700
  %1049 = vmatpush.bf16.msra.mxu0 %v698
  %1050 = vmatpush.bf16.msra.mxu0 %v696
  %1051 = vmatmul.bf16.gmra.mxu0 %v235
  %v1052 = vpop.f32.mrf.mxu0
  %v1053 = vadd.f32 %v1040, %v1052
  %v1054 = vpop.f32.mrf.mxu0
  %1055 = vdwg.mxu0
  %1056 = vmatpush.bf16.msra.mxu0 %v726
  %1057 = vmatpush.bf16.msra.mxu0 %v724
  %1058 = vmatpush.bf16.msra.mxu0 %v722
  %1059 = vmatpush.bf16.msra.mxu0 %v720
  %1060 = vmatpush.bf16.msra.mxu0 %v718
  %1061 = vmatpush.bf16.msra.mxu0 %v716
  %1062 = vmatpush.bf16.msra.mxu0 %v714
  %1063 = vmatpush.bf16.msra.mxu0 %v712
  %1064 = vmatmul.bf16.gmra.mxu0 %v236
  %v1065 = vpop.f32.mrf.mxu0
  %v1066 = vadd.f32 %v1053, %v1065
  %v1067 = vpop.f32.mrf.mxu0
  %1068 = vdwg.mxu0
  %1069 = vmatpush.bf16.msra.mxu0 %v742
  %1070 = vmatpush.bf16.msra.mxu0 %v740
  %1071 = vmatpush.bf16.msra.mxu0 %v738
  %1072 = vmatpush.bf16.msra.mxu0 %v736
  %1073 = vmatpush.bf16.msra.mxu0 %v734
  %1074 = vmatpush.bf16.msra.mxu0 %v732
  %1075 = vmatpush.bf16.msra.mxu0 %v730
  %1076 = vmatpush.bf16.msra.mxu0 %v728
  %1077 = vmatmul.bf16.gmra.mxu0 %v237
  %v1078 = vpop.f32.mrf.mxu0
  %v1079 = vadd.f32 %v1066, %v1078
  %v1080 = vpop.f32.mrf.mxu0
  %1081 = vdwg.mxu0
  %1082 = vmatpush.bf16.msra.mxu0 %v758
  %1083 = vmatpush.bf16.msra.mxu0 %v756
  %1084 = vmatpush.bf16.msra.mxu0 %v754
  %1085 = vmatpush.bf16.msra.mxu0 %v752
  %1086 = vmatpush.bf16.msra.mxu0 %v750
  %1087 = vmatpush.bf16.msra.mxu0 %v748
  %1088 = vmatpush.bf16.msra.mxu0 %v746
  %1089 = vmatpush.bf16.msra.mxu0 %v744
  %1090 = vmatmul.bf16.gmra.mxu0 %v238
  %v1091 = vpop.f32.mrf.mxu0
  %v1092 = vadd.f32 %v1079, %v1091
  %v1093 = vpop.f32.mrf.mxu0
  %1094 = vdwg.mxu0
  %v1095 = vld [vmem:[%s3] sm:$0xff]
  %v1096 = vld [vmem:[%s3 + $0x8] sm:$0xff]
  %v1097 = vld [vmem:[%s3 + $0x10] sm:$0xff]
  %v1098 = vld [vmem:[%s3 + $0x18] sm:$0xff]
  %v1099 = vld [vmem:[%s3 + $0x20] sm:$0xff]
  %v1100 = vld [vmem:[%s3 + $0x28] sm:$0xff]
  %v1101 = vld [vmem:[%s3 + $0x30] sm:$0xff]
  %v1102 = vld [vmem:[%s3 + $0x38] sm:$0xff]
  %v1103 = vld [vmem:[%s3 + $0x40] sm:$0xff]
  %v1104 = vld [vmem:[%s3 + $0x48] sm:$0xff]
  %v1105 = vld [vmem:[%s3 + $0x50] sm:$0xff]
  %v1106 = vld [vmem:[%s3 + $0x58] sm:$0xff]
  %v1107 = vld [vmem:[%s3 + $0x60] sm:$0xff]
  %v1108 = vld [vmem:[%s3 + $0x68] sm:$0xff]
  %v1109 = vld [vmem:[%s3 + $0x70] sm:$0xff]
  %v1110 = vld [vmem:[%s3 + $0x78] sm:$0xff]
  %v1111 = vld [vmem:[%s3 + $0x80] sm:$0xff]
  %v1112 = vld [vmem:[%s3 + $0x88] sm:$0xff]
  %v1113 = vld [vmem:[%s3 + $0x90] sm:$0xff]
  %v1114 = vld [vmem:[%s3 + $0x98] sm:$0xff]
  %v1115 = vld [vmem:[%s3 + $0xa0] sm:$0xff]
  %v1116 = vld [vmem:[%s3 + $0xa8] sm:$0xff]
  %v1117 = vld [vmem:[%s3 + $0xb0] sm:$0xff]
  %v1118 = vld [vmem:[%s3 + $0xb8] sm:$0xff]
  %v1119 = vld [vmem:[%s3 + $0xc0] sm:$0xff]
  %v1120 = vld [vmem:[%s3 + $0xc8] sm:$0xff]
  %v1121 = vld [vmem:[%s3 + $0xd0] sm:$0xff]
  %v1122 = vld [vmem:[%s3 + $0xd8] sm:$0xff]
  %v1123 = vld [vmem:[%s3 + $0xe0] sm:$0xff]
  %v1124 = vld [vmem:[%s3 + $0xe8] sm:$0xff]
  %v1125 = vld [vmem:[%s3 + $0xf0] sm:$0xff]
  %v1126 = vld [vmem:[%s3 + $0xf8] sm:$0xff]
  %v1127 = vld [vmem:[%s3 + $0x100] sm:$0xff]
  %v1128 = vld [vmem:[%s3 + $0x108] sm:$0xff]
  %v1129 = vld [vmem:[%s3 + $0x110] sm:$0xff]
  %v1130 = vld [vmem:[%s3 + $0x118] sm:$0xff]
  %v1131 = vld [vmem:[%s3 + $0x120] sm:$0xff]
  %v1132 = vld [vmem:[%s3 + $0x128] sm:$0xff]
  %v1133 = vld [vmem:[%s3 + $0x130] sm:$0xff]
  %v1134 = vld [vmem:[%s3 + $0x138] sm:$0xff]
  %v1135 = vld [vmem:[%s3 + $0x140] sm:$0xff]
  %v1136 = vld [vmem:[%s3 + $0x148] sm:$0xff]
  %v1137 = vld [vmem:[%s3 + $0x150] sm:$0xff]
  %v1138 = vld [vmem:[%s3 + $0x158] sm:$0xff]
  %v1139 = vld [vmem:[%s3 + $0x160] sm:$0xff]
  %v1140 = vld [vmem:[%s3 + $0x168] sm:$0xff]
  %v1141 = vld [vmem:[%s3 + $0x170] sm:$0xff]
  %v1142 = vld [vmem:[%s3 + $0x178] sm:$0xff]
  %v1143 = vld [vmem:[%s3 + $0x180] sm:$0xff]
  %v1144 = vld [vmem:[%s3 + $0x188] sm:$0xff]
  %v1145 = vld [vmem:[%s3 + $0x190] sm:$0xff]
  %v1146 = vld [vmem:[%s3 + $0x198] sm:$0xff]
  %v1147 = vld [vmem:[%s3 + $0x1a0] sm:$0xff]
  %v1148 = vld [vmem:[%s3 + $0x1a8] sm:$0xff]
  %v1149 = vld [vmem:[%s3 + $0x1b0] sm:$0xff]
  %v1150 = vld [vmem:[%s3 + $0x1b8] sm:$0xff]
  %v1151 = vld [vmem:[%s3 + $0x1c0] sm:$0xff]
  %v1152 = vld [vmem:[%s3 + $0x1c8] sm:$0xff]
  %v1153 = vld [vmem:[%s3 + $0x1d0] sm:$0xff]
  %v1154 = vld [vmem:[%s3 + $0x1d8] sm:$0xff]
  %v1155 = vld [vmem:[%s3 + $0x1e0] sm:$0xff]
  %v1156 = vld [vmem:[%s3 + $0x1e8] sm:$0xff]
  %v1157 = vld [vmem:[%s3 + $0x1f0] sm:$0xff]
  %v1158 = vld [vmem:[%s3 + $0x1f8] sm:$0xff]
  %v1159 = vld [vmem:[%s3 + $0x200] sm:$0xff]
  %v1160 = vld [vmem:[%s3 + $0x208] sm:$0xff]
  %v1161 = vld [vmem:[%s3 + $0x210] sm:$0xff]
  %v1162 = vld [vmem:[%s3 + $0x218] sm:$0xff]
  %v1163 = vld [vmem:[%s3 + $0x220] sm:$0xff]
  %v1164 = vld [vmem:[%s3 + $0x228] sm:$0xff]
  %v1165 = vld [vmem:[%s3 + $0x230] sm:$0xff]
  %v1166 = vld [vmem:[%s3 + $0x238] sm:$0xff]
  %v1167 = vld [vmem:[%s3 + $0x240] sm:$0xff]
  %v1168 = vld [vmem:[%s3 + $0x248] sm:$0xff]
  %v1169 = vld [vmem:[%s3 + $0x250] sm:$0xff]
  %v1170 = vld [vmem:[%s3 + $0x258] sm:$0xff]
  %v1171 = vld [vmem:[%s3 + $0x260] sm:$0xff]
  %v1172 = vld [vmem:[%s3 + $0x268] sm:$0xff]
  %v1173 = vld [vmem:[%s3 + $0x270] sm:$0xff]
  %v1174 = vld [vmem:[%s3 + $0x278] sm:$0xff]
  %v1175 = vld [vmem:[%s3 + $0x280] sm:$0xff]
  %v1176 = vld [vmem:[%s3 + $0x288] sm:$0xff]
  %v1177 = vld [vmem:[%s3 + $0x290] sm:$0xff]
  %v1178 = vld [vmem:[%s3 + $0x298] sm:$0xff]
  %v1179 = vld [vmem:[%s3 + $0x2a0] sm:$0xff]
  %v1180 = vld [vmem:[%s3 + $0x2a8] sm:$0xff]
  %v1181 = vld [vmem:[%s3 + $0x2b0] sm:$0xff]
  %v1182 = vld [vmem:[%s3 + $0x2b8] sm:$0xff]
  %v1183 = vld [vmem:[%s3 + $0x2c0] sm:$0xff]
  %v1184 = vld [vmem:[%s3 + $0x2c8] sm:$0xff]
  %v1185 = vld [vmem:[%s3 + $0x2d0] sm:$0xff]
  %v1186 = vld [vmem:[%s3 + $0x2d8] sm:$0xff]
  %v1187 = vld [vmem:[%s3 + $0x2e0] sm:$0xff]
  %v1188 = vld [vmem:[%s3 + $0x2e8] sm:$0xff]
  %v1189 = vld [vmem:[%s3 + $0x2f0] sm:$0xff]
  %v1190 = vld [vmem:[%s3 + $0x2f8] sm:$0xff]
  %v1191 = vld [vmem:[%s3 + $0x300] sm:$0xff]
  %v1192 = vld [vmem:[%s3 + $0x308] sm:$0xff]
  %v1193 = vld [vmem:[%s3 + $0x310] sm:$0xff]
  %v1194 = vld [vmem:[%s3 + $0x318] sm:$0xff]
  %v1195 = vld [vmem:[%s3 + $0x320] sm:$0xff]
  %v1196 = vld [vmem:[%s3 + $0x328] sm:$0xff]
  %v1197 = vld [vmem:[%s3 + $0x330] sm:$0xff]
  %v1198 = vld [vmem:[%s3 + $0x338] sm:$0xff]
  %v1199 = vld [vmem:[%s3 + $0x340] sm:$0xff]
  %v1200 = vld [vmem:[%s3 + $0x348] sm:$0xff]
  %v1201 = vld [vmem:[%s3 + $0x350] sm:$0xff]
  %v1202 = vld [vmem:[%s3 + $0x358] sm:$0xff]
  %v1203 = vld [vmem:[%s3 + $0x360] sm:$0xff]
  %v1204 = vld [vmem:[%s3 + $0x368] sm:$0xff]
  %v1205 = vld [vmem:[%s3 + $0x370] sm:$0xff]
  %v1206 = vld [vmem:[%s3 + $0x378] sm:$0xff]
  %v1207 = vld [vmem:[%s3 + $0x380] sm:$0xff]
  %v1208 = vld [vmem:[%s3 + $0x388] sm:$0xff]
  %v1209 = vld [vmem:[%s3 + $0x390] sm:$0xff]
  %v1210 = vld [vmem:[%s3 + $0x398] sm:$0xff]
  %v1211 = vld [vmem:[%s3 + $0x3a0] sm:$0xff]
  %v1212 = vld [vmem:[%s3 + $0x3a8] sm:$0xff]
  %v1213 = vld [vmem:[%s3 + $0x3b0] sm:$0xff]
  %v1214 = vld [vmem:[%s3 + $0x3b8] sm:$0xff]
  %v1215 = vld [vmem:[%s3 + $0x3c0] sm:$0xff]
  %v1216 = vld [vmem:[%s3 + $0x3c8] sm:$0xff]
  %v1217 = vld [vmem:[%s3 + $0x3d0] sm:$0xff]
  %v1218 = vld [vmem:[%s3 + $0x3d8] sm:$0xff]
  %v1219 = vld [vmem:[%s3 + $0x3e0] sm:$0xff]
  %v1220 = vld [vmem:[%s3 + $0x3e8] sm:$0xff]
  %v1221 = vld [vmem:[%s3 + $0x3f0] sm:$0xff]
  %v1222 = vld [vmem:[%s3 + $0x3f8] sm:$0xff]
  %1224 = vst [vmem:[#allocation1] ss:$4 sm:$0xff] %v49
  %s1226 = scalar_lea.vmem [#allocation1], 32
  %1227 = vst [vmem:[%s1226] ss:$4 sm:$0xff] %v50
  %v1228 = vld.sshfl [vmem:[#allocation1] sm:$0xff pattern:$0x73625140]
  %v1229 = vld.sshfl [vmem:[#allocation1 + $0x8] sm:$0xff pattern:$0x73625140]
  %v1230 = vld.sshfl [vmem:[#allocation1 + $0x10] sm:$0xff pattern:$0x73625140]
  %v1231 = vld.sshfl [vmem:[#allocation1 + $0x18] sm:$0xff pattern:$0x73625140]
  %v1232 = vld.sshfl [vmem:[#allocation1 + $0x20] sm:$0xff pattern:$0x73625140]
  %v1233 = vld.sshfl [vmem:[#allocation1 + $0x28] sm:$0xff pattern:$0x73625140]
  %v1234 = vld.sshfl [vmem:[#allocation1 + $0x30] sm:$0xff pattern:$0x73625140]
  %v1235 = vld.sshfl [vmem:[#allocation1 + $0x38] sm:$0xff pattern:$0x73625140]
  %v1372 = vunpack.c.l.b16 %v1095
  %v1373 = vunpack.c.h.b16 %v1095
  %v1374 = vunpack.c.l.b16 %v1096
  %v1375 = vunpack.c.h.b16 %v1096
  %v1376 = vunpack.c.l.b16 %v1097
  %v1377 = vunpack.c.h.b16 %v1097
  %v1378 = vunpack.c.l.b16 %v1098
  %v1379 = vunpack.c.h.b16 %v1098
  %v1380 = vunpack.c.l.b16 %v1099
  %v1381 = vunpack.c.h.b16 %v1099
  %v1382 = vunpack.c.l.b16 %v1100
  %v1383 = vunpack.c.h.b16 %v1100
  %v1384 = vunpack.c.l.b16 %v1101
  %v1385 = vunpack.c.h.b16 %v1101
  %v1386 = vunpack.c.l.b16 %v1102
  %v1387 = vunpack.c.h.b16 %v1102
  %v1388 = vunpack.c.l.b16 %v1103
  %v1389 = vunpack.c.h.b16 %v1103
  %v1390 = vunpack.c.l.b16 %v1104
  %v1391 = vunpack.c.h.b16 %v1104
  %v1392 = vunpack.c.l.b16 %v1105
  %v1393 = vunpack.c.h.b16 %v1105
  %v1394 = vunpack.c.l.b16 %v1106
  %v1395 = vunpack.c.h.b16 %v1106
  %v1396 = vunpack.c.l.b16 %v1107
  %v1397 = vunpack.c.h.b16 %v1107
  %v1398 = vunpack.c.l.b16 %v1108
  %v1399 = vunpack.c.h.b16 %v1108
  %v1400 = vunpack.c.l.b16 %v1109
  %v1401 = vunpack.c.h.b16 %v1109
  %v1402 = vunpack.c.l.b16 %v1110
  %v1403 = vunpack.c.h.b16 %v1110
  %v1404 = vunpack.c.l.b16 %v1111
  %v1405 = vunpack.c.h.b16 %v1111
  %v1406 = vunpack.c.l.b16 %v1112
  %v1407 = vunpack.c.h.b16 %v1112
  %v1408 = vunpack.c.l.b16 %v1113
  %v1409 = vunpack.c.h.b16 %v1113
  %v1410 = vunpack.c.l.b16 %v1114
  %v1411 = vunpack.c.h.b16 %v1114
  %v1412 = vunpack.c.l.b16 %v1115
  %v1413 = vunpack.c.h.b16 %v1115
  %v1414 = vunpack.c.l.b16 %v1116
  %v1415 = vunpack.c.h.b16 %v1116
  %v1416 = vunpack.c.l.b16 %v1117
  %v1417 = vunpack.c.h.b16 %v1117
  %v1418 = vunpack.c.l.b16 %v1118
  %v1419 = vunpack.c.h.b16 %v1118
  %v1420 = vunpack.c.l.b16 %v1119
  %v1421 = vunpack.c.h.b16 %v1119
  %v1422 = vunpack.c.l.b16 %v1120
  %v1423 = vunpack.c.h.b16 %v1120
  %v1424 = vunpack.c.l.b16 %v1121
  %v1425 = vunpack.c.h.b16 %v1121
  %v1426 = vunpack.c.l.b16 %v1122
  %v1427 = vunpack.c.h.b16 %v1122
  %v1428 = vunpack.c.l.b16 %v1123
  %v1429 = vunpack.c.h.b16 %v1123
  %v1430 = vunpack.c.l.b16 %v1124
  %v1431 = vunpack.c.h.b16 %v1124
  %v1432 = vunpack.c.l.b16 %v1125
  %v1433 = vunpack.c.h.b16 %v1125
  %v1434 = vunpack.c.l.b16 %v1126
  %v1435 = vunpack.c.h.b16 %v1126
  %v1436 = vunpack.c.l.b16 %v1127
  %v1437 = vunpack.c.h.b16 %v1127
  %v1438 = vunpack.c.l.b16 %v1128
  %v1439 = vunpack.c.h.b16 %v1128
  %v1440 = vunpack.c.l.b16 %v1129
  %v1441 = vunpack.c.h.b16 %v1129
  %v1442 = vunpack.c.l.b16 %v1130
  %v1443 = vunpack.c.h.b16 %v1130
  %v1444 = vunpack.c.l.b16 %v1131
  %v1445 = vunpack.c.h.b16 %v1131
  %v1446 = vunpack.c.l.b16 %v1132
  %v1447 = vunpack.c.h.b16 %v1132
  %v1448 = vunpack.c.l.b16 %v1133
  %v1449 = vunpack.c.h.b16 %v1133
  %v1450 = vunpack.c.l.b16 %v1134
  %v1451 = vunpack.c.h.b16 %v1134
  %v1452 = vunpack.c.l.b16 %v1135
  %v1453 = vunpack.c.h.b16 %v1135
  %v1454 = vunpack.c.l.b16 %v1136
  %v1455 = vunpack.c.h.b16 %v1136
  %v1456 = vunpack.c.l.b16 %v1137
  %v1457 = vunpack.c.h.b16 %v1137
  %v1458 = vunpack.c.l.b16 %v1138
  %v1459 = vunpack.c.h.b16 %v1138
  %v1460 = vunpack.c.l.b16 %v1139
  %v1461 = vunpack.c.h.b16 %v1139
  %v1462 = vunpack.c.l.b16 %v1140
  %v1463 = vunpack.c.h.b16 %v1140
  %v1464 = vunpack.c.l.b16 %v1141
  %v1465 = vunpack.c.h.b16 %v1141
  %v1466 = vunpack.c.l.b16 %v1142
  %v1467 = vunpack.c.h.b16 %v1142
  %v1468 = vunpack.c.l.b16 %v1143
  %v1469 = vunpack.c.h.b16 %v1143
  %v1470 = vunpack.c.l.b16 %v1144
  %v1471 = vunpack.c.h.b16 %v1144
  %v1472 = vunpack.c.l.b16 %v1145
  %v1473 = vunpack.c.h.b16 %v1145
  %v1474 = vunpack.c.l.b16 %v1146
  %v1475 = vunpack.c.h.b16 %v1146
  %v1476 = vunpack.c.l.b16 %v1147
  %v1477 = vunpack.c.h.b16 %v1147
  %v1478 = vunpack.c.l.b16 %v1148
  %v1479 = vunpack.c.h.b16 %v1148
  %v1480 = vunpack.c.l.b16 %v1149
  %v1481 = vunpack.c.h.b16 %v1149
  %v1482 = vunpack.c.l.b16 %v1150
  %v1483 = vunpack.c.h.b16 %v1150
  %v1484 = vunpack.c.l.b16 %v1151
  %v1485 = vunpack.c.h.b16 %v1151
  %v1486 = vunpack.c.l.b16 %v1152
  %v1487 = vunpack.c.h.b16 %v1152
  %v1488 = vunpack.c.l.b16 %v1153
  %v1489 = vunpack.c.h.b16 %v1153
  %v1490 = vunpack.c.l.b16 %v1154
  %v1491 = vunpack.c.h.b16 %v1154
  %v1492 = vunpack.c.l.b16 %v1155
  %v1493 = vunpack.c.h.b16 %v1155
  %v1494 = vunpack.c.l.b16 %v1156
  %v1495 = vunpack.c.h.b16 %v1156
  %v1496 = vunpack.c.l.b16 %v1157
  %v1497 = vunpack.c.h.b16 %v1157
  %v1498 = vunpack.c.l.b16 %v1158
  %v1499 = vunpack.c.h.b16 %v1158
  %v1500 = vunpack.c.l.b16 %v1159
  %v1501 = vunpack.c.h.b16 %v1159
  %v1502 = vunpack.c.l.b16 %v1160
  %v1503 = vunpack.c.h.b16 %v1160
  %v1504 = vunpack.c.l.b16 %v1161
  %v1505 = vunpack.c.h.b16 %v1161
  %v1506 = vunpack.c.l.b16 %v1162
  %v1507 = vunpack.c.h.b16 %v1162
  %v1508 = vunpack.c.l.b16 %v1163
  %v1509 = vunpack.c.h.b16 %v1163
  %v1510 = vunpack.c.l.b16 %v1164
  %v1511 = vunpack.c.h.b16 %v1164
  %v1512 = vunpack.c.l.b16 %v1165
  %v1513 = vunpack.c.h.b16 %v1165
  %v1514 = vunpack.c.l.b16 %v1166
  %v1515 = vunpack.c.h.b16 %v1166
  %v1516 = vunpack.c.l.b16 %v1167
  %v1517 = vunpack.c.h.b16 %v1167
  %v1518 = vunpack.c.l.b16 %v1168
  %v1519 = vunpack.c.h.b16 %v1168
  %v1520 = vunpack.c.l.b16 %v1169
  %v1521 = vunpack.c.h.b16 %v1169
  %v1522 = vunpack.c.l.b16 %v1170
  %v1523 = vunpack.c.h.b16 %v1170
  %v1524 = vunpack.c.l.b16 %v1171
  %v1525 = vunpack.c.h.b16 %v1171
  %v1526 = vunpack.c.l.b16 %v1172
  %v1527 = vunpack.c.h.b16 %v1172
  %v1528 = vunpack.c.l.b16 %v1173
  %v1529 = vunpack.c.h.b16 %v1173
  %v1530 = vunpack.c.l.b16 %v1174
  %v1531 = vunpack.c.h.b16 %v1174
  %v1532 = vunpack.c.l.b16 %v1175
  %v1533 = vunpack.c.h.b16 %v1175
  %v1534 = vunpack.c.l.b16 %v1176
  %v1535 = vunpack.c.h.b16 %v1176
  %v1536 = vunpack.c.l.b16 %v1177
  %v1537 = vunpack.c.h.b16 %v1177
  %v1538 = vunpack.c.l.b16 %v1178
  %v1539 = vunpack.c.h.b16 %v1178
  %v1540 = vunpack.c.l.b16 %v1179
  %v1541 = vunpack.c.h.b16 %v1179
  %v1542 = vunpack.c.l.b16 %v1180
  %v1543 = vunpack.c.h.b16 %v1180
  %v1544 = vunpack.c.l.b16 %v1181
  %v1545 = vunpack.c.h.b16 %v1181
  %v1546 = vunpack.c.l.b16 %v1182
  %v1547 = vunpack.c.h.b16 %v1182
  %v1548 = vunpack.c.l.b16 %v1183
  %v1549 = vunpack.c.h.b16 %v1183
  %v1550 = vunpack.c.l.b16 %v1184
  %v1551 = vunpack.c.h.b16 %v1184
  %v1552 = vunpack.c.l.b16 %v1185
  %v1553 = vunpack.c.h.b16 %v1185
  %v1554 = vunpack.c.l.b16 %v1186
  %v1555 = vunpack.c.h.b16 %v1186
  %v1556 = vunpack.c.l.b16 %v1187
  %v1557 = vunpack.c.h.b16 %v1187
  %v1558 = vunpack.c.l.b16 %v1188
  %v1559 = vunpack.c.h.b16 %v1188
  %v1560 = vunpack.c.l.b16 %v1189
  %v1561 = vunpack.c.h.b16 %v1189
  %v1562 = vunpack.c.l.b16 %v1190
  %v1563 = vunpack.c.h.b16 %v1190
  %v1564 = vunpack.c.l.b16 %v1191
  %v1565 = vunpack.c.h.b16 %v1191
  %v1566 = vunpack.c.l.b16 %v1192
  %v1567 = vunpack.c.h.b16 %v1192
  %v1568 = vunpack.c.l.b16 %v1193
  %v1569 = vunpack.c.h.b16 %v1193
  %v1570 = vunpack.c.l.b16 %v1194
  %v1571 = vunpack.c.h.b16 %v1194
  %v1572 = vunpack.c.l.b16 %v1195
  %v1573 = vunpack.c.h.b16 %v1195
  %v1574 = vunpack.c.l.b16 %v1196
  %v1575 = vunpack.c.h.b16 %v1196
  %v1576 = vunpack.c.l.b16 %v1197
  %v1577 = vunpack.c.h.b16 %v1197
  %v1578 = vunpack.c.l.b16 %v1198
  %v1579 = vunpack.c.h.b16 %v1198
  %v1580 = vunpack.c.l.b16 %v1199
  %v1581 = vunpack.c.h.b16 %v1199
  %v1582 = vunpack.c.l.b16 %v1200
  %v1583 = vunpack.c.h.b16 %v1200
  %v1584 = vunpack.c.l.b16 %v1201
  %v1585 = vunpack.c.h.b16 %v1201
  %v1586 = vunpack.c.l.b16 %v1202
  %v1587 = vunpack.c.h.b16 %v1202
  %v1588 = vunpack.c.l.b16 %v1203
  %v1589 = vunpack.c.h.b16 %v1203
  %v1590 = vunpack.c.l.b16 %v1204
  %v1591 = vunpack.c.h.b16 %v1204
  %v1592 = vunpack.c.l.b16 %v1205
  %v1593 = vunpack.c.h.b16 %v1205
  %v1594 = vunpack.c.l.b16 %v1206
  %v1595 = vunpack.c.h.b16 %v1206
  %v1596 = vunpack.c.l.b16 %v1207
  %v1597 = vunpack.c.h.b16 %v1207
  %v1598 = vunpack.c.l.b16 %v1208
  %v1599 = vunpack.c.h.b16 %v1208
  %v1600 = vunpack.c.l.b16 %v1209
  %v1601 = vunpack.c.h.b16 %v1209
  %v1602 = vunpack.c.l.b16 %v1210
  %v1603 = vunpack.c.h.b16 %v1210
  %v1604 = vunpack.c.l.b16 %v1211
  %v1605 = vunpack.c.h.b16 %v1211
  %v1606 = vunpack.c.l.b16 %v1212
  %v1607 = vunpack.c.h.b16 %v1212
  %v1608 = vunpack.c.l.b16 %v1213
  %v1609 = vunpack.c.h.b16 %v1213
  %v1610 = vunpack.c.l.b16 %v1214
  %v1611 = vunpack.c.h.b16 %v1214
  %v1612 = vunpack.c.l.b16 %v1215
  %v1613 = vunpack.c.h.b16 %v1215
  %v1614 = vunpack.c.l.b16 %v1216
  %v1615 = vunpack.c.h.b16 %v1216
  %v1616 = vunpack.c.l.b16 %v1217
  %v1617 = vunpack.c.h.b16 %v1217
  %v1618 = vunpack.c.l.b16 %v1218
  %v1619 = vunpack.c.h.b16 %v1218
  %v1620 = vunpack.c.l.b16 %v1219
  %v1621 = vunpack.c.h.b16 %v1219
  %v1622 = vunpack.c.l.b16 %v1220
  %v1623 = vunpack.c.h.b16 %v1220
  %v1624 = vunpack.c.l.b16 %v1221
  %v1625 = vunpack.c.h.b16 %v1221
  %v1626 = vunpack.c.l.b16 %v1222
  %v1627 = vunpack.c.h.b16 %v1222
  %v1628 = vpack.c.b16 %v1374, %v1372
  %v1629 = vpack.c.b16 %v1375, %v1373
  %v1630 = vpack.c.b16 %v1378, %v1376
  %v1631 = vpack.c.b16 %v1379, %v1377
  %v1632 = vpack.c.b16 %v1382, %v1380
  %v1633 = vpack.c.b16 %v1383, %v1381
  %v1634 = vpack.c.b16 %v1386, %v1384
  %v1635 = vpack.c.b16 %v1387, %v1385
  %v1636 = vpack.c.b16 %v1390, %v1388
  %v1637 = vpack.c.b16 %v1391, %v1389
  %v1638 = vpack.c.b16 %v1394, %v1392
  %v1639 = vpack.c.b16 %v1395, %v1393
  %v1640 = vpack.c.b16 %v1398, %v1396
  %v1641 = vpack.c.b16 %v1399, %v1397
  %v1642 = vpack.c.b16 %v1402, %v1400
  %v1643 = vpack.c.b16 %v1403, %v1401
  %v1644 = vpack.c.b16 %v1406, %v1404
  %v1645 = vpack.c.b16 %v1407, %v1405
  %v1646 = vpack.c.b16 %v1410, %v1408
  %v1647 = vpack.c.b16 %v1411, %v1409
  %v1648 = vpack.c.b16 %v1414, %v1412
  %v1649 = vpack.c.b16 %v1415, %v1413
  %v1650 = vpack.c.b16 %v1418, %v1416
  %v1651 = vpack.c.b16 %v1419, %v1417
  %v1652 = vpack.c.b16 %v1422, %v1420
  %v1653 = vpack.c.b16 %v1423, %v1421
  %v1654 = vpack.c.b16 %v1426, %v1424
  %v1655 = vpack.c.b16 %v1427, %v1425
  %v1656 = vpack.c.b16 %v1430, %v1428
  %v1657 = vpack.c.b16 %v1431, %v1429
  %v1658 = vpack.c.b16 %v1434, %v1432
  %v1659 = vpack.c.b16 %v1435, %v1433
  %v1660 = vpack.c.b16 %v1438, %v1436
  %v1661 = vpack.c.b16 %v1439, %v1437
  %v1662 = vpack.c.b16 %v1442, %v1440
  %v1663 = vpack.c.b16 %v1443, %v1441
  %v1664 = vpack.c.b16 %v1446, %v1444
  %v1665 = vpack.c.b16 %v1447, %v1445
  %v1666 = vpack.c.b16 %v1450, %v1448
  %v1667 = vpack.c.b16 %v1451, %v1449
  %v1668 = vpack.c.b16 %v1454, %v1452
  %v1669 = vpack.c.b16 %v1455, %v1453
  %v1670 = vpack.c.b16 %v1458, %v1456
  %v1671 = vpack.c.b16 %v1459, %v1457
  %v1672 = vpack.c.b16 %v1462, %v1460
  %v1673 = vpack.c.b16 %v1463, %v1461
  %v1674 = vpack.c.b16 %v1466, %v1464
  %v1675 = vpack.c.b16 %v1467, %v1465
  %v1676 = vpack.c.b16 %v1470, %v1468
  %v1677 = vpack.c.b16 %v1471, %v1469
  %v1678 = vpack.c.b16 %v1474, %v1472
  %v1679 = vpack.c.b16 %v1475, %v1473
  %v1680 = vpack.c.b16 %v1478, %v1476
  %v1681 = vpack.c.b16 %v1479, %v1477
  %v1682 = vpack.c.b16 %v1482, %v1480
  %v1683 = vpack.c.b16 %v1483, %v1481
  %v1684 = vpack.c.b16 %v1486, %v1484
  %v1685 = vpack.c.b16 %v1487, %v1485
  %v1686 = vpack.c.b16 %v1490, %v1488
  %v1687 = vpack.c.b16 %v1491, %v1489
  %v1688 = vpack.c.b16 %v1494, %v1492
  %v1689 = vpack.c.b16 %v1495, %v1493
  %v1690 = vpack.c.b16 %v1498, %v1496
  %v1691 = vpack.c.b16 %v1499, %v1497
  %v1692 = vpack.c.b16 %v1502, %v1500
  %v1693 = vpack.c.b16 %v1503, %v1501
  %v1694 = vpack.c.b16 %v1506, %v1504
  %v1695 = vpack.c.b16 %v1507, %v1505
  %v1696 = vpack.c.b16 %v1510, %v1508
  %v1697 = vpack.c.b16 %v1511, %v1509
  %v1698 = vpack.c.b16 %v1514, %v1512
  %v1699 = vpack.c.b16 %v1515, %v1513
  %v1700 = vpack.c.b16 %v1518, %v1516
  %v1701 = vpack.c.b16 %v1519, %v1517
  %v1702 = vpack.c.b16 %v1522, %v1520
  %v1703 = vpack.c.b16 %v1523, %v1521
  %v1704 = vpack.c.b16 %v1526, %v1524
  %v1705 = vpack.c.b16 %v1527, %v1525
  %v1706 = vpack.c.b16 %v1530, %v1528
  %v1707 = vpack.c.b16 %v1531, %v1529
  %v1708 = vpack.c.b16 %v1534, %v1532
  %v1709 = vpack.c.b16 %v1535, %v1533
  %v1710 = vpack.c.b16 %v1538, %v1536
  %v1711 = vpack.c.b16 %v1539, %v1537
  %v1712 = vpack.c.b16 %v1542, %v1540
  %v1713 = vpack.c.b16 %v1543, %v1541
  %v1714 = vpack.c.b16 %v1546, %v1544
  %v1715 = vpack.c.b16 %v1547, %v1545
  %v1716 = vpack.c.b16 %v1550, %v1548
  %v1717 = vpack.c.b16 %v1551, %v1549
  %v1718 = vpack.c.b16 %v1554, %v1552
  %v1719 = vpack.c.b16 %v1555, %v1553
  %v1720 = vpack.c.b16 %v1558, %v1556
  %v1721 = vpack.c.b16 %v1559, %v1557
  %v1722 = vpack.c.b16 %v1562, %v1560
  %v1723 = vpack.c.b16 %v1563, %v1561
  %v1724 = vpack.c.b16 %v1566, %v1564
  %v1725 = vpack.c.b16 %v1567, %v1565
  %v1726 = vpack.c.b16 %v1570, %v1568
  %v1727 = vpack.c.b16 %v1571, %v1569
  %v1728 = vpack.c.b16 %v1574, %v1572
  %v1729 = vpack.c.b16 %v1575, %v1573
  %v1730 = vpack.c.b16 %v1578, %v1576
  %v1731 = vpack.c.b16 %v1579, %v1577
  %v1732 = vpack.c.b16 %v1582, %v1580
  %v1733 = vpack.c.b16 %v1583, %v1581
  %v1734 = vpack.c.b16 %v1586, %v1584
  %v1735 = vpack.c.b16 %v1587, %v1585
  %v1736 = vpack.c.b16 %v1590, %v1588
  %v1737 = vpack.c.b16 %v1591, %v1589
  %v1738 = vpack.c.b16 %v1594, %v1592
  %v1739 = vpack.c.b16 %v1595, %v1593
  %v1740 = vpack.c.b16 %v1598, %v1596
  %v1741 = vpack.c.b16 %v1599, %v1597
  %v1742 = vpack.c.b16 %v1602, %v1600
  %v1743 = vpack.c.b16 %v1603, %v1601
  %v1744 = vpack.c.b16 %v1606, %v1604
  %v1745 = vpack.c.b16 %v1607, %v1605
  %v1746 = vpack.c.b16 %v1610, %v1608
  %v1747 = vpack.c.b16 %v1611, %v1609
  %v1748 = vpack.c.b16 %v1614, %v1612
  %v1749 = vpack.c.b16 %v1615, %v1613
  %v1750 = vpack.c.b16 %v1618, %v1616
  %v1751 = vpack.c.b16 %v1619, %v1617
  %v1752 = vpack.c.b16 %v1622, %v1620
  %v1753 = vpack.c.b16 %v1623, %v1621
  %v1754 = vpack.c.b16 %v1626, %v1624
  %v1755 = vpack.c.b16 %v1627, %v1625
  %1884 = vmatpush.bf16.msra.mxu0 %v1642
  %1885 = vmatpush.bf16.msra.mxu0 %v1640
  %1886 = vmatpush.bf16.msra.mxu0 %v1638
  %1887 = vmatpush.bf16.msra.mxu0 %v1636
  %1888 = vmatpush.bf16.msra.mxu0 %v1634
  %1889 = vmatpush.bf16.msra.mxu0 %v1632
  %1890 = vmatpush.bf16.msra.mxu0 %v1630
  %1891 = vmatpush.bf16.msra.mxu0 %v1628
  %1892 = vmatmul.bf16.gmra.mxu0 %v1228
  %v1893 = vpop.f32.mrf.mxu0
  %v1894 = vadd.f32 0.0, %v1893
  %v1895 = vpop.f32.mrf.mxu0
  %1896 = vdwg.mxu0
  %1897 = vmatpush.bf16.msra.mxu0 %v1658
  %1898 = vmatpush.bf16.msra.mxu0 %v1656
  %1899 = vmatpush.bf16.msra.mxu0 %v1654
  %1900 = vmatpush.bf16.msra.mxu0 %v1652
  %1901 = vmatpush.bf16.msra.mxu0 %v1650
  %1902 = vmatpush.bf16.msra.mxu0 %v1648
  %1903 = vmatpush.bf16.msra.mxu0 %v1646
  %1904 = vmatpush.bf16.msra.mxu0 %v1644
  %1905 = vmatmul.bf16.gmra.mxu0 %v1229
  %v1906 = vpop.f32.mrf.mxu0
  %v1907 = vadd.f32 %v1894, %v1906
  %v1908 = vpop.f32.mrf.mxu0
  %1909 = vdwg.mxu0
  %1910 = vmatpush.bf16.msra.mxu0 %v1674
  %1911 = vmatpush.bf16.msra.mxu0 %v1672
  %1912 = vmatpush.bf16.msra.mxu0 %v1670
  %1913 = vmatpush.bf16.msra.mxu0 %v1668
  %1914 = vmatpush.bf16.msra.mxu0 %v1666
  %1915 = vmatpush.bf16.msra.mxu0 %v1664
  %1916 = vmatpush.bf16.msra.mxu0 %v1662
  %1917 = vmatpush.bf16.msra.mxu0 %v1660
  %1918 = vmatmul.bf16.gmra.mxu0 %v1230
  %v1919 = vpop.f32.mrf.mxu0
  %v1920 = vadd.f32 %v1907, %v1919
  %v1921 = vpop.f32.mrf.mxu0
  %1922 = vdwg.mxu0
  %1923 = vmatpush.bf16.msra.mxu0 %v1690
  %1924 = vmatpush.bf16.msra.mxu0 %v1688
  %1925 = vmatpush.bf16.msra.mxu0 %v1686
  %1926 = vmatpush.bf16.msra.mxu0 %v1684
  %1927 = vmatpush.bf16.msra.mxu0 %v1682
  %1928 = vmatpush.bf16.msra.mxu0 %v1680
  %1929 = vmatpush.bf16.msra.mxu0 %v1678
  %1930 = vmatpush.bf16.msra.mxu0 %v1676
  %1931 = vmatmul.bf16.gmra.mxu0 %v1231
  %v1932 = vpop.f32.mrf.mxu0
  %v1933 = vadd.f32 %v1920, %v1932
  %v1934 = vpop.f32.mrf.mxu0
  %1935 = vdwg.mxu0
  %1936 = vmatpush.bf16.msra.mxu0 %v1706
  %1937 = vmatpush.bf16.msra.mxu0 %v1704
  %1938 = vmatpush.bf16.msra.mxu0 %v1702
  %1939 = vmatpush.bf16.msra.mxu0 %v1700
  %1940 = vmatpush.bf16.msra.mxu0 %v1698
  %1941 = vmatpush.bf16.msra.mxu0 %v1696
  %1942 = vmatpush.bf16.msra.mxu0 %v1694
  %1943 = vmatpush.bf16.msra.mxu0 %v1692
  %1944 = vmatmul.bf16.gmra.mxu0 %v1232
  %v1945 = vpop.f32.mrf.mxu0
  %v1946 = vadd.f32 %v1933, %v1945
  %v1947 = vpop.f32.mrf.mxu0
  %1948 = vdwg.mxu0
  %1949 = vmatpush.bf16.msra.mxu0 %v1722
  %1950 = vmatpush.bf16.msra.mxu0 %v1720
  %1951 = vmatpush.bf16.msra.mxu0 %v1718
  %1952 = vmatpush.bf16.msra.mxu0 %v1716
  %1953 = vmatpush.bf16.msra.mxu0 %v1714
  %1954 = vmatpush.bf16.msra.mxu0 %v1712
  %1955 = vmatpush.bf16.msra.mxu0 %v1710
  %1956 = vmatpush.bf16.msra.mxu0 %v1708
  %1957 = vmatmul.bf16.gmra.mxu0 %v1233
  %v1958 = vpop.f32.mrf.mxu0
  %v1959 = vadd.f32 %v1946, %v1958
  %v1960 = vpop.f32.mrf.mxu0
  %1961 = vdwg.mxu0
  %1962 = vmatpush.bf16.msra.mxu0 %v1738
  %1963 = vmatpush.bf16.msra.mxu0 %v1736
  %1964 = vmatpush.bf16.msra.mxu0 %v1734
  %1965 = vmatpush.bf16.msra.mxu0 %v1732
  %1966 = vmatpush.bf16.msra.mxu0 %v1730
  %1967 = vmatpush.bf16.msra.mxu0 %v1728
  %1968 = vmatpush.bf16.msra.mxu0 %v1726
  %1969 = vmatpush.bf16.msra.mxu0 %v1724
  %1970 = vmatmul.bf16.gmra.mxu0 %v1234
  %v1971 = vpop.f32.mrf.mxu0
  %v1972 = vadd.f32 %v1959, %v1971
  %v1973 = vpop.f32.mrf.mxu0
  %1974 = vdwg.mxu0
  %1975 = vmatpush.bf16.msra.mxu0 %v1754
  %1976 = vmatpush.bf16.msra.mxu0 %v1752
  %1977 = vmatpush.bf16.msra.mxu0 %v1750
  %1978 = vmatpush.bf16.msra.mxu0 %v1748
  %1979 = vmatpush.bf16.msra.mxu0 %v1746
  %1980 = vmatpush.bf16.msra.mxu0 %v1744
  %1981 = vmatpush.bf16.msra.mxu0 %v1742
  %1982 = vmatpush.bf16.msra.mxu0 %v1740
  %1983 = vmatmul.bf16.gmra.mxu0 %v1235
  %v1984 = vpop.f32.mrf.mxu0
  %v1985 = vadd.f32 %v1972, %v1984
  %v1986 = vpop.f32.mrf.mxu0
  %1987 = vdwg.mxu0
  %1988 = vmatpush.bf16.msra.mxu0 %v1643
  %1989 = vmatpush.bf16.msra.mxu0 %v1641
  %1990 = vmatpush.bf16.msra.mxu0 %v1639
  %1991 = vmatpush.bf16.msra.mxu0 %v1637
  %1992 = vmatpush.bf16.msra.mxu0 %v1635
  %1993 = vmatpush.bf16.msra.mxu0 %v1633
  %1994 = vmatpush.bf16.msra.mxu0 %v1631
  %1995 = vmatpush.bf16.msra.mxu0 %v1629
  %1996 = vmatmul.bf16.gmra.mxu0 %v1228
  %v1997 = vpop.f32.mrf.mxu0
  %v1998 = vadd.f32 0.0, %v1997
  %v1999 = vpop.f32.mrf.mxu0
  %2000 = vdwg.mxu0
  %2001 = vmatpush.bf16.msra.mxu0 %v1659
  %2002 = vmatpush.bf16.msra.mxu0 %v1657
  %2003 = vmatpush.bf16.msra.mxu0 %v1655
  %2004 = vmatpush.bf16.msra.mxu0 %v1653
  %2005 = vmatpush.bf16.msra.mxu0 %v1651
  %2006 = vmatpush.bf16.msra.mxu0 %v1649
  %2007 = vmatpush.bf16.msra.mxu0 %v1647
  %2008 = vmatpush.bf16.msra.mxu0 %v1645
  %2009 = vmatmul.bf16.gmra.mxu0 %v1229
  %v2010 = vpop.f32.mrf.mxu0
  %v2011 = vadd.f32 %v1998, %v2010
  %v2012 = vpop.f32.mrf.mxu0
  %2013 = vdwg.mxu0
  %2014 = vmatpush.bf16.msra.mxu0 %v1675
  %2015 = vmatpush.bf16.msra.mxu0 %v1673
  %2016 = vmatpush.bf16.msra.mxu0 %v1671
  %2017 = vmatpush.bf16.msra.mxu0 %v1669
  %2018 = vmatpush.bf16.msra.mxu0 %v1667
  %2019 = vmatpush.bf16.msra.mxu0 %v1665
  %2020 = vmatpush.bf16.msra.mxu0 %v1663
  %2021 = vmatpush.bf16.msra.mxu0 %v1661
  %2022 = vmatmul.bf16.gmra.mxu0 %v1230
  %v2023 = vpop.f32.mrf.mxu0
  %v2024 = vadd.f32 %v2011, %v2023
  %v2025 = vpop.f32.mrf.mxu0
  %2026 = vdwg.mxu0
  %2027 = vmatpush.bf16.msra.mxu0 %v1691
  %2028 = vmatpush.bf16.msra.mxu0 %v1689
  %2029 = vmatpush.bf16.msra.mxu0 %v1687
  %2030 = vmatpush.bf16.msra.mxu0 %v1685
  %2031 = vmatpush.bf16.msra.mxu0 %v1683
  %2032 = vmatpush.bf16.msra.mxu0 %v1681
  %2033 = vmatpush.bf16.msra.mxu0 %v1679
  %2034 = vmatpush.bf16.msra.mxu0 %v1677
  %2035 = vmatmul.bf16.gmra.mxu0 %v1231
  %v2036 = vpop.f32.mrf.mxu0
  %v2037 = vadd.f32 %v2024, %v2036
  %v2038 = vpop.f32.mrf.mxu0
  %2039 = vdwg.mxu0
  %2040 = vmatpush.bf16.msra.mxu0 %v1707
  %2041 = vmatpush.bf16.msra.mxu0 %v1705
  %2042 = vmatpush.bf16.msra.mxu0 %v1703
  %2043 = vmatpush.bf16.msra.mxu0 %v1701
  %2044 = vmatpush.bf16.msra.mxu0 %v1699
  %2045 = vmatpush.bf16.msra.mxu0 %v1697
  %2046 = vmatpush.bf16.msra.mxu0 %v1695
  %2047 = vmatpush.bf16.msra.mxu0 %v1693
  %2048 = vmatmul.bf16.gmra.mxu0 %v1232
  %v2049 = vpop.f32.mrf.mxu0
  %v2050 = vadd.f32 %v2037, %v2049
  %v2051 = vpop.f32.mrf.mxu0
  %2052 = vdwg.mxu0
  %2053 = vmatpush.bf16.msra.mxu0 %v1723
  %2054 = vmatpush.bf16.msra.mxu0 %v1721
  %2055 = vmatpush.bf16.msra.mxu0 %v1719
  %2056 = vmatpush.bf16.msra.mxu0 %v1717
  %2057 = vmatpush.bf16.msra.mxu0 %v1715
  %2058 = vmatpush.bf16.msra.mxu0 %v1713
  %2059 = vmatpush.bf16.msra.mxu0 %v1711
  %2060 = vmatpush.bf16.msra.mxu0 %v1709
  %2061 = vmatmul.bf16.gmra.mxu0 %v1233
  %v2062 = vpop.f32.mrf.mxu0
  %v2063 = vadd.f32 %v2050, %v2062
  %v2064 = vpop.f32.mrf.mxu0
  %2065 = vdwg.mxu0
  %2066 = vmatpush.bf16.msra.mxu0 %v1739
  %2067 = vmatpush.bf16.msra.mxu0 %v1737
  %2068 = vmatpush.bf16.msra.mxu0 %v1735
  %2069 = vmatpush.bf16.msra.mxu0 %v1733
  %2070 = vmatpush.bf16.msra.mxu0 %v1731
  %2071 = vmatpush.bf16.msra.mxu0 %v1729
  %2072 = vmatpush.bf16.msra.mxu0 %v1727
  %2073 = vmatpush.bf16.msra.mxu0 %v1725
  %2074 = vmatmul.bf16.gmra.mxu0 %v1234
  %v2075 = vpop.f32.mrf.mxu0
  %v2076 = vadd.f32 %v2063, %v2075
  %v2077 = vpop.f32.mrf.mxu0
  %2078 = vdwg.mxu0
  %2079 = vmatpush.bf16.msra.mxu0 %v1755
  %2080 = vmatpush.bf16.msra.mxu0 %v1753
  %2081 = vmatpush.bf16.msra.mxu0 %v1751
  %2082 = vmatpush.bf16.msra.mxu0 %v1749
  %2083 = vmatpush.bf16.msra.mxu0 %v1747
  %2084 = vmatpush.bf16.msra.mxu0 %v1745
  %2085 = vmatpush.bf16.msra.mxu0 %v1743
  %2086 = vmatpush.bf16.msra.mxu0 %v1741
  %2087 = vmatmul.bf16.gmra.mxu0 %v1235
  %v2088 = vpop.f32.mrf.mxu0
  %v2089 = vadd.f32 %v2076, %v2088
  %v2090 = vpop.f32.mrf.mxu0
  %2091 = vdwg.mxu0
  %v2092 = vld [vmem:[%s4] sm:$0xff]
  %v2093 = vld [vmem:[%s4 + $0x8] sm:$0xff]
  %v2094 = vld [vmem:[%s4 + $0x10] sm:$0xff]
  %v2095 = vld [vmem:[%s4 + $0x18] sm:$0xff]
  %v2096 = vld [vmem:[%s4 + $0x20] sm:$0xff]
  %v2097 = vld [vmem:[%s4 + $0x28] sm:$0xff]
  %v2098 = vld [vmem:[%s4 + $0x30] sm:$0xff]
  %v2099 = vld [vmem:[%s4 + $0x38] sm:$0xff]
  %v2100 = vld [vmem:[%s4 + $0x40] sm:$0xff]
  %v2101 = vld [vmem:[%s4 + $0x48] sm:$0xff]
  %v2102 = vld [vmem:[%s4 + $0x50] sm:$0xff]
  %v2103 = vld [vmem:[%s4 + $0x58] sm:$0xff]
  %v2104 = vld [vmem:[%s4 + $0x60] sm:$0xff]
  %v2105 = vld [vmem:[%s4 + $0x68] sm:$0xff]
  %v2106 = vld [vmem:[%s4 + $0x70] sm:$0xff]
  %v2107 = vld [vmem:[%s4 + $0x78] sm:$0xff]
  %v2108 = vld [vmem:[%s4 + $0x80] sm:$0xff]
  %v2109 = vld [vmem:[%s4 + $0x88] sm:$0xff]
  %v2110 = vld [vmem:[%s4 + $0x90] sm:$0xff]
  %v2111 = vld [vmem:[%s4 + $0x98] sm:$0xff]
  %v2112 = vld [vmem:[%s4 + $0xa0] sm:$0xff]
  %v2113 = vld [vmem:[%s4 + $0xa8] sm:$0xff]
  %v2114 = vld [vmem:[%s4 + $0xb0] sm:$0xff]
  %v2115 = vld [vmem:[%s4 + $0xb8] sm:$0xff]
  %v2116 = vld [vmem:[%s4 + $0xc0] sm:$0xff]
  %v2117 = vld [vmem:[%s4 + $0xc8] sm:$0xff]
  %v2118 = vld [vmem:[%s4 + $0xd0] sm:$0xff]
  %v2119 = vld [vmem:[%s4 + $0xd8] sm:$0xff]
  %v2120 = vld [vmem:[%s4 + $0xe0] sm:$0xff]
  %v2121 = vld [vmem:[%s4 + $0xe8] sm:$0xff]
  %v2122 = vld [vmem:[%s4 + $0xf0] sm:$0xff]
  %v2123 = vld [vmem:[%s4 + $0xf8] sm:$0xff]
  %v2124 = vld [vmem:[%s4 + $0x100] sm:$0xff]
  %v2125 = vld [vmem:[%s4 + $0x108] sm:$0xff]
  %v2126 = vld [vmem:[%s4 + $0x110] sm:$0xff]
  %v2127 = vld [vmem:[%s4 + $0x118] sm:$0xff]
  %v2128 = vld [vmem:[%s4 + $0x120] sm:$0xff]
  %v2129 = vld [vmem:[%s4 + $0x128] sm:$0xff]
  %v2130 = vld [vmem:[%s4 + $0x130] sm:$0xff]
  %v2131 = vld [vmem:[%s4 + $0x138] sm:$0xff]
  %v2132 = vld [vmem:[%s4 + $0x140] sm:$0xff]
  %v2133 = vld [vmem:[%s4 + $0x148] sm:$0xff]
  %v2134 = vld [vmem:[%s4 + $0x150] sm:$0xff]
  %v2135 = vld [vmem:[%s4 + $0x158] sm:$0xff]
  %v2136 = vld [vmem:[%s4 + $0x160] sm:$0xff]
  %v2137 = vld [vmem:[%s4 + $0x168] sm:$0xff]
  %v2138 = vld [vmem:[%s4 + $0x170] sm:$0xff]
  %v2139 = vld [vmem:[%s4 + $0x178] sm:$0xff]
  %v2140 = vld [vmem:[%s4 + $0x180] sm:$0xff]
  %v2141 = vld [vmem:[%s4 + $0x188] sm:$0xff]
  %v2142 = vld [vmem:[%s4 + $0x190] sm:$0xff]
  %v2143 = vld [vmem:[%s4 + $0x198] sm:$0xff]
  %v2144 = vld [vmem:[%s4 + $0x1a0] sm:$0xff]
  %v2145 = vld [vmem:[%s4 + $0x1a8] sm:$0xff]
  %v2146 = vld [vmem:[%s4 + $0x1b0] sm:$0xff]
  %v2147 = vld [vmem:[%s4 + $0x1b8] sm:$0xff]
  %v2148 = vld [vmem:[%s4 + $0x1c0] sm:$0xff]
  %v2149 = vld [vmem:[%s4 + $0x1c8] sm:$0xff]
  %v2150 = vld [vmem:[%s4 + $0x1d0] sm:$0xff]
  %v2151 = vld [vmem:[%s4 + $0x1d8] sm:$0xff]
  %v2152 = vld [vmem:[%s4 + $0x1e0] sm:$0xff]
  %v2153 = vld [vmem:[%s4 + $0x1e8] sm:$0xff]
  %v2154 = vld [vmem:[%s4 + $0x1f0] sm:$0xff]
  %v2155 = vld [vmem:[%s4 + $0x1f8] sm:$0xff]
  %v2156 = vld [vmem:[%s4 + $0x200] sm:$0xff]
  %v2157 = vld [vmem:[%s4 + $0x208] sm:$0xff]
  %v2158 = vld [vmem:[%s4 + $0x210] sm:$0xff]
  %v2159 = vld [vmem:[%s4 + $0x218] sm:$0xff]
  %v2160 = vld [vmem:[%s4 + $0x220] sm:$0xff]
  %v2161 = vld [vmem:[%s4 + $0x228] sm:$0xff]
  %v2162 = vld [vmem:[%s4 + $0x230] sm:$0xff]
  %v2163 = vld [vmem:[%s4 + $0x238] sm:$0xff]
  %v2164 = vld [vmem:[%s4 + $0x240] sm:$0xff]
  %v2165 = vld [vmem:[%s4 + $0x248] sm:$0xff]
  %v2166 = vld [vmem:[%s4 + $0x250] sm:$0xff]
  %v2167 = vld [vmem:[%s4 + $0x258] sm:$0xff]
  %v2168 = vld [vmem:[%s4 + $0x260] sm:$0xff]
  %v2169 = vld [vmem:[%s4 + $0x268] sm:$0xff]
  %v2170 = vld [vmem:[%s4 + $0x270] sm:$0xff]
  %v2171 = vld [vmem:[%s4 + $0x278] sm:$0xff]
  %v2172 = vld [vmem:[%s4 + $0x280] sm:$0xff]
  %v2173 = vld [vmem:[%s4 + $0x288] sm:$0xff]
  %v2174 = vld [vmem:[%s4 + $0x290] sm:$0xff]
  %v2175 = vld [vmem:[%s4 + $0x298] sm:$0xff]
  %v2176 = vld [vmem:[%s4 + $0x2a0] sm:$0xff]
  %v2177 = vld [vmem:[%s4 + $0x2a8] sm:$0xff]
  %v2178 = vld [vmem:[%s4 + $0x2b0] sm:$0xff]
  %v2179 = vld [vmem:[%s4 + $0x2b8] sm:$0xff]
  %v2180 = vld [vmem:[%s4 + $0x2c0] sm:$0xff]
  %v2181 = vld [vmem:[%s4 + $0x2c8] sm:$0xff]
  %v2182 = vld [vmem:[%s4 + $0x2d0] sm:$0xff]
  %v2183 = vld [vmem:[%s4 + $0x2d8] sm:$0xff]
  %v2184 = vld [vmem:[%s4 + $0x2e0] sm:$0xff]
  %v2185 = vld [vmem:[%s4 + $0x2e8] sm:$0xff]
  %v2186 = vld [vmem:[%s4 + $0x2f0] sm:$0xff]
  %v2187 = vld [vmem:[%s4 + $0x2f8] sm:$0xff]
  %v2188 = vld [vmem:[%s4 + $0x300] sm:$0xff]
  %v2189 = vld [vmem:[%s4 + $0x308] sm:$0xff]
  %v2190 = vld [vmem:[%s4 + $0x310] sm:$0xff]
  %v2191 = vld [vmem:[%s4 + $0x318] sm:$0xff]
  %v2192 = vld [vmem:[%s4 + $0x320] sm:$0xff]
  %v2193 = vld [vmem:[%s4 + $0x328] sm:$0xff]
  %v2194 = vld [vmem:[%s4 + $0x330] sm:$0xff]
  %v2195 = vld [vmem:[%s4 + $0x338] sm:$0xff]
  %v2196 = vld [vmem:[%s4 + $0x340] sm:$0xff]
  %v2197 = vld [vmem:[%s4 + $0x348] sm:$0xff]
  %v2198 = vld [vmem:[%s4 + $0x350] sm:$0xff]
  %v2199 = vld [vmem:[%s4 + $0x358] sm:$0xff]
  %v2200 = vld [vmem:[%s4 + $0x360] sm:$0xff]
  %v2201 = vld [vmem:[%s4 + $0x368] sm:$0xff]
  %v2202 = vld [vmem:[%s4 + $0x370] sm:$0xff]
  %v2203 = vld [vmem:[%s4 + $0x378] sm:$0xff]
  %v2204 = vld [vmem:[%s4 + $0x380] sm:$0xff]
  %v2205 = vld [vmem:[%s4 + $0x388] sm:$0xff]
  %v2206 = vld [vmem:[%s4 + $0x390] sm:$0xff]
  %v2207 = vld [vmem:[%s4 + $0x398] sm:$0xff]
  %v2208 = vld [vmem:[%s4 + $0x3a0] sm:$0xff]
  %v2209 = vld [vmem:[%s4 + $0x3a8] sm:$0xff]
  %v2210 = vld [vmem:[%s4 + $0x3b0] sm:$0xff]
  %v2211 = vld [vmem:[%s4 + $0x3b8] sm:$0xff]
  %v2212 = vld [vmem:[%s4 + $0x3c0] sm:$0xff]
  %v2213 = vld [vmem:[%s4 + $0x3c8] sm:$0xff]
  %v2214 = vld [vmem:[%s4 + $0x3d0] sm:$0xff]
  %v2215 = vld [vmem:[%s4 + $0x3d8] sm:$0xff]
  %v2216 = vld [vmem:[%s4 + $0x3e0] sm:$0xff]
  %v2217 = vld [vmem:[%s4 + $0x3e8] sm:$0xff]
  %v2218 = vld [vmem:[%s4 + $0x3f0] sm:$0xff]
  %v2219 = vld [vmem:[%s4 + $0x3f8] sm:$0xff]
  %v2348 = vunpack.c.l.b16 %v2092
  %v2349 = vunpack.c.h.b16 %v2092
  %v2350 = vunpack.c.l.b16 %v2093
  %v2351 = vunpack.c.h.b16 %v2093
  %v2352 = vunpack.c.l.b16 %v2094
  %v2353 = vunpack.c.h.b16 %v2094
  %v2354 = vunpack.c.l.b16 %v2095
  %v2355 = vunpack.c.h.b16 %v2095
  %v2356 = vunpack.c.l.b16 %v2096
  %v2357 = vunpack.c.h.b16 %v2096
  %v2358 = vunpack.c.l.b16 %v2097
  %v2359 = vunpack.c.h.b16 %v2097
  %v2360 = vunpack.c.l.b16 %v2098
  %v2361 = vunpack.c.h.b16 %v2098
  %v2362 = vunpack.c.l.b16 %v2099
  %v2363 = vunpack.c.h.b16 %v2099
  %v2364 = vunpack.c.l.b16 %v2100
  %v2365 = vunpack.c.h.b16 %v2100
  %v2366 = vunpack.c.l.b16 %v2101
  %v2367 = vunpack.c.h.b16 %v2101
  %v2368 = vunpack.c.l.b16 %v2102
  %v2369 = vunpack.c.h.b16 %v2102
  %v2370 = vunpack.c.l.b16 %v2103
  %v2371 = vunpack.c.h.b16 %v2103
  %v2372 = vunpack.c.l.b16 %v2104
  %v2373 = vunpack.c.h.b16 %v2104
  %v2374 = vunpack.c.l.b16 %v2105
  %v2375 = vunpack.c.h.b16 %v2105
  %v2376 = vunpack.c.l.b16 %v2106
  %v2377 = vunpack.c.h.b16 %v2106
  %v2378 = vunpack.c.l.b16 %v2107
  %v2379 = vunpack.c.h.b16 %v2107
  %v2380 = vunpack.c.l.b16 %v2108
  %v2381 = vunpack.c.h.b16 %v2108
  %v2382 = vunpack.c.l.b16 %v2109
  %v2383 = vunpack.c.h.b16 %v2109
  %v2384 = vunpack.c.l.b16 %v2110
  %v2385 = vunpack.c.h.b16 %v2110
  %v2386 = vunpack.c.l.b16 %v2111
  %v2387 = vunpack.c.h.b16 %v2111
  %v2388 = vunpack.c.l.b16 %v2112
  %v2389 = vunpack.c.h.b16 %v2112
  %v2390 = vunpack.c.l.b16 %v2113
  %v2391 = vunpack.c.h.b16 %v2113
  %v2392 = vunpack.c.l.b16 %v2114
  %v2393 = vunpack.c.h.b16 %v2114
  %v2394 = vunpack.c.l.b16 %v2115
  %v2395 = vunpack.c.h.b16 %v2115
  %v2396 = vunpack.c.l.b16 %v2116
  %v2397 = vunpack.c.h.b16 %v2116
  %v2398 = vunpack.c.l.b16 %v2117
  %v2399 = vunpack.c.h.b16 %v2117
  %v2400 = vunpack.c.l.b16 %v2118
  %v2401 = vunpack.c.h.b16 %v2118
  %v2402 = vunpack.c.l.b16 %v2119
  %v2403 = vunpack.c.h.b16 %v2119
  %v2404 = vunpack.c.l.b16 %v2120
  %v2405 = vunpack.c.h.b16 %v2120
  %v2406 = vunpack.c.l.b16 %v2121
  %v2407 = vunpack.c.h.b16 %v2121
  %v2408 = vunpack.c.l.b16 %v2122
  %v2409 = vunpack.c.h.b16 %v2122
  %v2410 = vunpack.c.l.b16 %v2123
  %v2411 = vunpack.c.h.b16 %v2123
  %v2412 = vunpack.c.l.b16 %v2124
  %v2413 = vunpack.c.h.b16 %v2124
  %v2414 = vunpack.c.l.b16 %v2125
  %v2415 = vunpack.c.h.b16 %v2125
  %v2416 = vunpack.c.l.b16 %v2126
  %v2417 = vunpack.c.h.b16 %v2126
  %v2418 = vunpack.c.l.b16 %v2127
  %v2419 = vunpack.c.h.b16 %v2127
  %v2420 = vunpack.c.l.b16 %v2128
  %v2421 = vunpack.c.h.b16 %v2128
  %v2422 = vunpack.c.l.b16 %v2129
  %v2423 = vunpack.c.h.b16 %v2129
  %v2424 = vunpack.c.l.b16 %v2130
  %v2425 = vunpack.c.h.b16 %v2130
  %v2426 = vunpack.c.l.b16 %v2131
  %v2427 = vunpack.c.h.b16 %v2131
  %v2428 = vunpack.c.l.b16 %v2132
  %v2429 = vunpack.c.h.b16 %v2132
  %v2430 = vunpack.c.l.b16 %v2133
  %v2431 = vunpack.c.h.b16 %v2133
  %v2432 = vunpack.c.l.b16 %v2134
  %v2433 = vunpack.c.h.b16 %v2134
  %v2434 = vunpack.c.l.b16 %v2135
  %v2435 = vunpack.c.h.b16 %v2135
  %v2436 = vunpack.c.l.b16 %v2136
  %v2437 = vunpack.c.h.b16 %v2136
  %v2438 = vunpack.c.l.b16 %v2137
  %v2439 = vunpack.c.h.b16 %v2137
  %v2440 = vunpack.c.l.b16 %v2138
  %v2441 = vunpack.c.h.b16 %v2138
  %v2442 = vunpack.c.l.b16 %v2139
  %v2443 = vunpack.c.h.b16 %v2139
  %v2444 = vunpack.c.l.b16 %v2140
  %v2445 = vunpack.c.h.b16 %v2140
  %v2446 = vunpack.c.l.b16 %v2141
  %v2447 = vunpack.c.h.b16 %v2141
  %v2448 = vunpack.c.l.b16 %v2142
  %v2449 = vunpack.c.h.b16 %v2142
  %v2450 = vunpack.c.l.b16 %v2143
  %v2451 = vunpack.c.h.b16 %v2143
  %v2452 = vunpack.c.l.b16 %v2144
  %v2453 = vunpack.c.h.b16 %v2144
  %v2454 = vunpack.c.l.b16 %v2145
  %v2455 = vunpack.c.h.b16 %v2145
  %v2456 = vunpack.c.l.b16 %v2146
  %v2457 = vunpack.c.h.b16 %v2146
  %v2458 = vunpack.c.l.b16 %v2147
  %v2459 = vunpack.c.h.b16 %v2147
  %v2460 = vunpack.c.l.b16 %v2148
  %v2461 = vunpack.c.h.b16 %v2148
  %v2462 = vunpack.c.l.b16 %v2149
  %v2463 = vunpack.c.h.b16 %v2149
  %v2464 = vunpack.c.l.b16 %v2150
  %v2465 = vunpack.c.h.b16 %v2150
  %v2466 = vunpack.c.l.b16 %v2151
  %v2467 = vunpack.c.h.b16 %v2151
  %v2468 = vunpack.c.l.b16 %v2152
  %v2469 = vunpack.c.h.b16 %v2152
  %v2470 = vunpack.c.l.b16 %v2153
  %v2471 = vunpack.c.h.b16 %v2153
  %v2472 = vunpack.c.l.b16 %v2154
  %v2473 = vunpack.c.h.b16 %v2154
  %v2474 = vunpack.c.l.b16 %v2155
  %v2475 = vunpack.c.h.b16 %v2155
  %v2476 = vunpack.c.l.b16 %v2156
  %v2477 = vunpack.c.h.b16 %v2156
  %v2478 = vunpack.c.l.b16 %v2157
  %v2479 = vunpack.c.h.b16 %v2157
  %v2480 = vunpack.c.l.b16 %v2158
  %v2481 = vunpack.c.h.b16 %v2158
  %v2482 = vunpack.c.l.b16 %v2159
  %v2483 = vunpack.c.h.b16 %v2159
  %v2484 = vunpack.c.l.b16 %v2160
  %v2485 = vunpack.c.h.b16 %v2160
  %v2486 = vunpack.c.l.b16 %v2161
  %v2487 = vunpack.c.h.b16 %v2161
  %v2488 = vunpack.c.l.b16 %v2162
  %v2489 = vunpack.c.h.b16 %v2162
  %v2490 = vunpack.c.l.b16 %v2163
  %v2491 = vunpack.c.h.b16 %v2163
  %v2492 = vunpack.c.l.b16 %v2164
  %v2493 = vunpack.c.h.b16 %v2164
  %v2494 = vunpack.c.l.b16 %v2165
  %v2495 = vunpack.c.h.b16 %v2165
  %v2496 = vunpack.c.l.b16 %v2166
  %v2497 = vunpack.c.h.b16 %v2166
  %v2498 = vunpack.c.l.b16 %v2167
  %v2499 = vunpack.c.h.b16 %v2167
  %v2500 = vunpack.c.l.b16 %v2168
  %v2501 = vunpack.c.h.b16 %v2168
  %v2502 = vunpack.c.l.b16 %v2169
  %v2503 = vunpack.c.h.b16 %v2169
  %v2504 = vunpack.c.l.b16 %v2170
  %v2505 = vunpack.c.h.b16 %v2170
  %v2506 = vunpack.c.l.b16 %v2171
  %v2507 = vunpack.c.h.b16 %v2171
  %v2508 = vunpack.c.l.b16 %v2172
  %v2509 = vunpack.c.h.b16 %v2172
  %v2510 = vunpack.c.l.b16 %v2173
  %v2511 = vunpack.c.h.b16 %v2173
  %v2512 = vunpack.c.l.b16 %v2174
  %v2513 = vunpack.c.h.b16 %v2174
  %v2514 = vunpack.c.l.b16 %v2175
  %v2515 = vunpack.c.h.b16 %v2175
  %v2516 = vunpack.c.l.b16 %v2176
  %v2517 = vunpack.c.h.b16 %v2176
  %v2518 = vunpack.c.l.b16 %v2177
  %v2519 = vunpack.c.h.b16 %v2177
  %v2520 = vunpack.c.l.b16 %v2178
  %v2521 = vunpack.c.h.b16 %v2178
  %v2522 = vunpack.c.l.b16 %v2179
  %v2523 = vunpack.c.h.b16 %v2179
  %v2524 = vunpack.c.l.b16 %v2180
  %v2525 = vunpack.c.h.b16 %v2180
  %v2526 = vunpack.c.l.b16 %v2181
  %v2527 = vunpack.c.h.b16 %v2181
  %v2528 = vunpack.c.l.b16 %v2182
  %v2529 = vunpack.c.h.b16 %v2182
  %v2530 = vunpack.c.l.b16 %v2183
  %v2531 = vunpack.c.h.b16 %v2183
  %v2532 = vunpack.c.l.b16 %v2184
  %v2533 = vunpack.c.h.b16 %v2184
  %v2534 = vunpack.c.l.b16 %v2185
  %v2535 = vunpack.c.h.b16 %v2185
  %v2536 = vunpack.c.l.b16 %v2186
  %v2537 = vunpack.c.h.b16 %v2186
  %v2538 = vunpack.c.l.b16 %v2187
  %v2539 = vunpack.c.h.b16 %v2187
  %v2540 = vunpack.c.l.b16 %v2188
  %v2541 = vunpack.c.h.b16 %v2188
  %v2542 = vunpack.c.l.b16 %v2189
  %v2543 = vunpack.c.h.b16 %v2189
  %v2544 = vunpack.c.l.b16 %v2190
  %v2545 = vunpack.c.h.b16 %v2190
  %v2546 = vunpack.c.l.b16 %v2191
  %v2547 = vunpack.c.h.b16 %v2191
  %v2548 = vunpack.c.l.b16 %v2192
  %v2549 = vunpack.c.h.b16 %v2192
  %v2550 = vunpack.c.l.b16 %v2193
  %v2551 = vunpack.c.h.b16 %v2193
  %v2552 = vunpack.c.l.b16 %v2194
  %v2553 = vunpack.c.h.b16 %v2194
  %v2554 = vunpack.c.l.b16 %v2195
  %v2555 = vunpack.c.h.b16 %v2195
  %v2556 = vunpack.c.l.b16 %v2196
  %v2557 = vunpack.c.h.b16 %v2196
  %v2558 = vunpack.c.l.b16 %v2197
  %v2559 = vunpack.c.h.b16 %v2197
  %v2560 = vunpack.c.l.b16 %v2198
  %v2561 = vunpack.c.h.b16 %v2198
  %v2562 = vunpack.c.l.b16 %v2199
  %v2563 = vunpack.c.h.b16 %v2199
  %v2564 = vunpack.c.l.b16 %v2200
  %v2565 = vunpack.c.h.b16 %v2200
  %v2566 = vunpack.c.l.b16 %v2201
  %v2567 = vunpack.c.h.b16 %v2201
  %v2568 = vunpack.c.l.b16 %v2202
  %v2569 = vunpack.c.h.b16 %v2202
  %v2570 = vunpack.c.l.b16 %v2203
  %v2571 = vunpack.c.h.b16 %v2203
  %v2572 = vunpack.c.l.b16 %v2204
  %v2573 = vunpack.c.h.b16 %v2204
  %v2574 = vunpack.c.l.b16 %v2205
  %v2575 = vunpack.c.h.b16 %v2205
  %v2576 = vunpack.c.l.b16 %v2206
  %v2577 = vunpack.c.h.b16 %v2206
  %v2578 = vunpack.c.l.b16 %v2207
  %v2579 = vunpack.c.h.b16 %v2207
  %v2580 = vunpack.c.l.b16 %v2208
  %v2581 = vunpack.c.h.b16 %v2208
  %v2582 = vunpack.c.l.b16 %v2209
  %v2583 = vunpack.c.h.b16 %v2209
  %v2584 = vunpack.c.l.b16 %v2210
  %v2585 = vunpack.c.h.b16 %v2210
  %v2586 = vunpack.c.l.b16 %v2211
  %v2587 = vunpack.c.h.b16 %v2211
  %v2588 = vunpack.c.l.b16 %v2212
  %v2589 = vunpack.c.h.b16 %v2212
  %v2590 = vunpack.c.l.b16 %v2213
  %v2591 = vunpack.c.h.b16 %v2213
  %v2592 = vunpack.c.l.b16 %v2214
  %v2593 = vunpack.c.h.b16 %v2214
  %v2594 = vunpack.c.l.b16 %v2215
  %v2595 = vunpack.c.h.b16 %v2215
  %v2596 = vunpack.c.l.b16 %v2216
  %v2597 = vunpack.c.h.b16 %v2216
  %v2598 = vunpack.c.l.b16 %v2217
  %v2599 = vunpack.c.h.b16 %v2217
  %v2600 = vunpack.c.l.b16 %v2218
  %v2601 = vunpack.c.h.b16 %v2218
  %v2602 = vunpack.c.l.b16 %v2219
  %v2603 = vunpack.c.h.b16 %v2219
  %v2604 = vpack.c.b16 %v2350, %v2348
  %v2605 = vpack.c.b16 %v2351, %v2349
  %v2606 = vpack.c.b16 %v2354, %v2352
  %v2607 = vpack.c.b16 %v2355, %v2353
  %v2608 = vpack.c.b16 %v2358, %v2356
  %v2609 = vpack.c.b16 %v2359, %v2357
  %v2610 = vpack.c.b16 %v2362, %v2360
  %v2611 = vpack.c.b16 %v2363, %v2361
  %v2612 = vpack.c.b16 %v2366, %v2364
  %v2613 = vpack.c.b16 %v2367, %v2365
  %v2614 = vpack.c.b16 %v2370, %v2368
  %v2615 = vpack.c.b16 %v2371, %v2369
  %v2616 = vpack.c.b16 %v2374, %v2372
  %v2617 = vpack.c.b16 %v2375, %v2373
  %v2618 = vpack.c.b16 %v2378, %v2376
  %v2619 = vpack.c.b16 %v2379, %v2377
  %v2620 = vpack.c.b16 %v2382, %v2380
  %v2621 = vpack.c.b16 %v2383, %v2381
  %v2622 = vpack.c.b16 %v2386, %v2384
  %v2623 = vpack.c.b16 %v2387, %v2385
  %v2624 = vpack.c.b16 %v2390, %v2388
  %v2625 = vpack.c.b16 %v2391, %v2389
  %v2626 = vpack.c.b16 %v2394, %v2392
  %v2627 = vpack.c.b16 %v2395, %v2393
  %v2628 = vpack.c.b16 %v2398, %v2396
  %v2629 = vpack.c.b16 %v2399, %v2397
  %v2630 = vpack.c.b16 %v2402, %v2400
  %v2631 = vpack.c.b16 %v2403, %v2401
  %v2632 = vpack.c.b16 %v2406, %v2404
  %v2633 = vpack.c.b16 %v2407, %v2405
  %v2634 = vpack.c.b16 %v2410, %v2408
  %v2635 = vpack.c.b16 %v2411, %v2409
  %v2636 = vpack.c.b16 %v2414, %v2412
  %v2637 = vpack.c.b16 %v2415, %v2413
  %v2638 = vpack.c.b16 %v2418, %v2416
  %v2639 = vpack.c.b16 %v2419, %v2417
  %v2640 = vpack.c.b16 %v2422, %v2420
  %v2641 = vpack.c.b16 %v2423, %v2421
  %v2642 = vpack.c.b16 %v2426, %v2424
  %v2643 = vpack.c.b16 %v2427, %v2425
  %v2644 = vpack.c.b16 %v2430, %v2428
  %v2645 = vpack.c.b16 %v2431, %v2429
  %v2646 = vpack.c.b16 %v2434, %v2432
  %v2647 = vpack.c.b16 %v2435, %v2433
  %v2648 = vpack.c.b16 %v2438, %v2436
  %v2649 = vpack.c.b16 %v2439, %v2437
  %v2650 = vpack.c.b16 %v2442, %v2440
  %v2651 = vpack.c.b16 %v2443, %v2441
  %v2652 = vpack.c.b16 %v2446, %v2444
  %v2653 = vpack.c.b16 %v2447, %v2445
  %v2654 = vpack.c.b16 %v2450, %v2448
  %v2655 = vpack.c.b16 %v2451, %v2449
  %v2656 = vpack.c.b16 %v2454, %v2452
  %v2657 = vpack.c.b16 %v2455, %v2453
  %v2658 = vpack.c.b16 %v2458, %v2456
  %v2659 = vpack.c.b16 %v2459, %v2457
  %v2660 = vpack.c.b16 %v2462, %v2460
  %v2661 = vpack.c.b16 %v2463, %v2461
  %v2662 = vpack.c.b16 %v2466, %v2464
  %v2663 = vpack.c.b16 %v2467, %v2465
  %v2664 = vpack.c.b16 %v2470, %v2468
  %v2665 = vpack.c.b16 %v2471, %v2469
  %v2666 = vpack.c.b16 %v2474, %v2472
  %v2667 = vpack.c.b16 %v2475, %v2473
  %v2668 = vpack.c.b16 %v2478, %v2476
  %v2669 = vpack.c.b16 %v2479, %v2477
  %v2670 = vpack.c.b16 %v2482, %v2480
  %v2671 = vpack.c.b16 %v2483, %v2481
  %v2672 = vpack.c.b16 %v2486, %v2484
  %v2673 = vpack.c.b16 %v2487, %v2485
  %v2674 = vpack.c.b16 %v2490, %v2488
  %v2675 = vpack.c.b16 %v2491, %v2489
  %v2676 = vpack.c.b16 %v2494, %v2492
  %v2677 = vpack.c.b16 %v2495, %v2493
  %v2678 = vpack.c.b16 %v2498, %v2496
  %v2679 = vpack.c.b16 %v2499, %v2497
  %v2680 = vpack.c.b16 %v2502, %v2500
  %v2681 = vpack.c.b16 %v2503, %v2501
  %v2682 = vpack.c.b16 %v2506, %v2504
  %v2683 = vpack.c.b16 %v2507, %v2505
  %v2684 = vpack.c.b16 %v2510, %v2508
  %v2685 = vpack.c.b16 %v2511, %v2509
  %v2686 = vpack.c.b16 %v2514, %v2512
  %v2687 = vpack.c.b16 %v2515, %v2513
  %v2688 = vpack.c.b16 %v2518, %v2516
  %v2689 = vpack.c.b16 %v2519, %v2517
  %v2690 = vpack.c.b16 %v2522, %v2520
  %v2691 = vpack.c.b16 %v2523, %v2521
  %v2692 = vpack.c.b16 %v2526, %v2524
  %v2693 = vpack.c.b16 %v2527, %v2525
  %v2694 = vpack.c.b16 %v2530, %v2528
  %v2695 = vpack.c.b16 %v2531, %v2529
  %v2696 = vpack.c.b16 %v2534, %v2532
  %v2697 = vpack.c.b16 %v2535, %v2533
  %v2698 = vpack.c.b16 %v2538, %v2536
  %v2699 = vpack.c.b16 %v2539, %v2537
  %v2700 = vpack.c.b16 %v2542, %v2540
  %v2701 = vpack.c.b16 %v2543, %v2541
  %v2702 = vpack.c.b16 %v2546, %v2544
  %v2703 = vpack.c.b16 %v2547, %v2545
  %v2704 = vpack.c.b16 %v2550, %v2548
  %v2705 = vpack.c.b16 %v2551, %v2549
  %v2706 = vpack.c.b16 %v2554, %v2552
  %v2707 = vpack.c.b16 %v2555, %v2553
  %v2708 = vpack.c.b16 %v2558, %v2556
  %v2709 = vpack.c.b16 %v2559, %v2557
  %v2710 = vpack.c.b16 %v2562, %v2560
  %v2711 = vpack.c.b16 %v2563, %v2561
  %v2712 = vpack.c.b16 %v2566, %v2564
  %v2713 = vpack.c.b16 %v2567, %v2565
  %v2714 = vpack.c.b16 %v2570, %v2568
  %v2715 = vpack.c.b16 %v2571, %v2569
  %v2716 = vpack.c.b16 %v2574, %v2572
  %v2717 = vpack.c.b16 %v2575, %v2573
  %v2718 = vpack.c.b16 %v2578, %v2576
  %v2719 = vpack.c.b16 %v2579, %v2577
  %v2720 = vpack.c.b16 %v2582, %v2580
  %v2721 = vpack.c.b16 %v2583, %v2581
  %v2722 = vpack.c.b16 %v2586, %v2584
  %v2723 = vpack.c.b16 %v2587, %v2585
  %v2724 = vpack.c.b16 %v2590, %v2588
  %v2725 = vpack.c.b16 %v2591, %v2589
  %v2726 = vpack.c.b16 %v2594, %v2592
  %v2727 = vpack.c.b16 %v2595, %v2593
  %v2728 = vpack.c.b16 %v2598, %v2596
  %v2729 = vpack.c.b16 %v2599, %v2597
  %v2730 = vpack.c.b16 %v2602, %v2600
  %v2731 = vpack.c.b16 %v2603, %v2601
  %2860 = vmatpush.bf16.msra.mxu0 %v2618
  %2861 = vmatpush.bf16.msra.mxu0 %v2616
  %2862 = vmatpush.bf16.msra.mxu0 %v2614
  %2863 = vmatpush.bf16.msra.mxu0 %v2612
  %2864 = vmatpush.bf16.msra.mxu0 %v2610
  %2865 = vmatpush.bf16.msra.mxu0 %v2608
  %2866 = vmatpush.bf16.msra.mxu0 %v2606
  %2867 = vmatpush.bf16.msra.mxu0 %v2604
  %2868 = vmatmul.bf16.gmra.mxu0 %v90
  %v2869 = vpop.f32.mrf.mxu0
  %v2870 = vadd.f32 0.0, %v2869
  %v2871 = vpop.f32.mrf.mxu0
  %2872 = vdwg.mxu0
  %2873 = vmatpush.bf16.msra.mxu0 %v2634
  %2874 = vmatpush.bf16.msra.mxu0 %v2632
  %2875 = vmatpush.bf16.msra.mxu0 %v2630
  %2876 = vmatpush.bf16.msra.mxu0 %v2628
  %2877 = vmatpush.bf16.msra.mxu0 %v2626
  %2878 = vmatpush.bf16.msra.mxu0 %v2624
  %2879 = vmatpush.bf16.msra.mxu0 %v2622
  %2880 = vmatpush.bf16.msra.mxu0 %v2620
  %2881 = vmatmul.bf16.gmra.mxu0 %v91
  %v2882 = vpop.f32.mrf.mxu0
  %v2883 = vadd.f32 %v2870, %v2882
  %v2884 = vpop.f32.mrf.mxu0
  %2885 = vdwg.mxu0
  %2886 = vmatpush.bf16.msra.mxu0 %v2650
  %2887 = vmatpush.bf16.msra.mxu0 %v2648
  %2888 = vmatpush.bf16.msra.mxu0 %v2646
  %2889 = vmatpush.bf16.msra.mxu0 %v2644
  %2890 = vmatpush.bf16.msra.mxu0 %v2642
  %2891 = vmatpush.bf16.msra.mxu0 %v2640
  %2892 = vmatpush.bf16.msra.mxu0 %v2638
  %2893 = vmatpush.bf16.msra.mxu0 %v2636
  %2894 = vmatmul.bf16.gmra.mxu0 %v92
  %v2895 = vpop.f32.mrf.mxu0
  %v2896 = vadd.f32 %v2883, %v2895
  %v2897 = vpop.f32.mrf.mxu0
  %2898 = vdwg.mxu0
  %2899 = vmatpush.bf16.msra.mxu0 %v2666
  %2900 = vmatpush.bf16.msra.mxu0 %v2664
  %2901 = vmatpush.bf16.msra.mxu0 %v2662
  %2902 = vmatpush.bf16.msra.mxu0 %v2660
  %2903 = vmatpush.bf16.msra.mxu0 %v2658
  %2904 = vmatpush.bf16.msra.mxu0 %v2656
  %2905 = vmatpush.bf16.msra.mxu0 %v2654
  %2906 = vmatpush.bf16.msra.mxu0 %v2652
  %2907 = vmatmul.bf16.gmra.mxu0 %v93
  %v2908 = vpop.f32.mrf.mxu0
  %v2909 = vadd.f32 %v2896, %v2908
  %v2910 = vpop.f32.mrf.mxu0
  %2911 = vdwg.mxu0
  %2912 = vmatpush.bf16.msra.mxu0 %v2682
  %2913 = vmatpush.bf16.msra.mxu0 %v2680
  %2914 = vmatpush.bf16.msra.mxu0 %v2678
  %2915 = vmatpush.bf16.msra.mxu0 %v2676
  %2916 = vmatpush.bf16.msra.mxu0 %v2674
  %2917 = vmatpush.bf16.msra.mxu0 %v2672
  %2918 = vmatpush.bf16.msra.mxu0 %v2670
  %2919 = vmatpush.bf16.msra.mxu0 %v2668
  %2920 = vmatmul.bf16.gmra.mxu0 %v94
  %v2921 = vpop.f32.mrf.mxu0
  %v2922 = vadd.f32 %v2909, %v2921
  %v2923 = vpop.f32.mrf.mxu0
  %2924 = vdwg.mxu0
  %2925 = vmatpush.bf16.msra.mxu0 %v2698
  %2926 = vmatpush.bf16.msra.mxu0 %v2696
  %2927 = vmatpush.bf16.msra.mxu0 %v2694
  %2928 = vmatpush.bf16.msra.mxu0 %v2692
  %2929 = vmatpush.bf16.msra.mxu0 %v2690
  %2930 = vmatpush.bf16.msra.mxu0 %v2688
  %2931 = vmatpush.bf16.msra.mxu0 %v2686
  %2932 = vmatpush.bf16.msra.mxu0 %v2684
  %2933 = vmatmul.bf16.gmra.mxu0 %v95
  %v2934 = vpop.f32.mrf.mxu0
  %v2935 = vadd.f32 %v2922, %v2934
  %v2936 = vpop.f32.mrf.mxu0
  %2937 = vdwg.mxu0
  %2938 = vmatpush.bf16.msra.mxu0 %v2714
  %2939 = vmatpush.bf16.msra.mxu0 %v2712
  %2940 = vmatpush.bf16.msra.mxu0 %v2710
  %2941 = vmatpush.bf16.msra.mxu0 %v2708
  %2942 = vmatpush.bf16.msra.mxu0 %v2706
  %2943 = vmatpush.bf16.msra.mxu0 %v2704
  %2944 = vmatpush.bf16.msra.mxu0 %v2702
  %2945 = vmatpush.bf16.msra.mxu0 %v2700
  %2946 = vmatmul.bf16.gmra.mxu0 %v96
  %v2947 = vpop.f32.mrf.mxu0
  %v2948 = vadd.f32 %v2935, %v2947
  %v2949 = vpop.f32.mrf.mxu0
  %2950 = vdwg.mxu0
  %2951 = vmatpush.bf16.msra.mxu0 %v2730
  %2952 = vmatpush.bf16.msra.mxu0 %v2728
  %2953 = vmatpush.bf16.msra.mxu0 %v2726
  %2954 = vmatpush.bf16.msra.mxu0 %v2724
  %2955 = vmatpush.bf16.msra.mxu0 %v2722
  %2956 = vmatpush.bf16.msra.mxu0 %v2720
  %2957 = vmatpush.bf16.msra.mxu0 %v2718
  %2958 = vmatpush.bf16.msra.mxu0 %v2716
  %2959 = vmatmul.bf16.gmra.mxu0 %v97
  %v2960 = vpop.f32.mrf.mxu0
  %v2961 = vadd.f32 %v2948, %v2960
  %v2962 = vpop.f32.mrf.mxu0
  %2963 = vdwg.mxu0
  %2964 = vmatpush.bf16.msra.mxu0 %v2619
  %2965 = vmatpush.bf16.msra.mxu0 %v2617
  %2966 = vmatpush.bf16.msra.mxu0 %v2615
  %2967 = vmatpush.bf16.msra.mxu0 %v2613
  %2968 = vmatpush.bf16.msra.mxu0 %v2611
  %2969 = vmatpush.bf16.msra.mxu0 %v2609
  %2970 = vmatpush.bf16.msra.mxu0 %v2607
  %2971 = vmatpush.bf16.msra.mxu0 %v2605
  %2972 = vmatmul.bf16.gmra.mxu0 %v90
  %v2973 = vpop.f32.mrf.mxu0
  %v2974 = vadd.f32 0.0, %v2973
  %v2975 = vpop.f32.mrf.mxu0
  %2976 = vdwg.mxu0
  %2977 = vmatpush.bf16.msra.mxu0 %v2635
  %2978 = vmatpush.bf16.msra.mxu0 %v2633
  %2979 = vmatpush.bf16.msra.mxu0 %v2631
  %2980 = vmatpush.bf16.msra.mxu0 %v2629
  %2981 = vmatpush.bf16.msra.mxu0 %v2627
  %2982 = vmatpush.bf16.msra.mxu0 %v2625
  %2983 = vmatpush.bf16.msra.mxu0 %v2623
  %2984 = vmatpush.bf16.msra.mxu0 %v2621
  %2985 = vmatmul.bf16.gmra.mxu0 %v91
  %v2986 = vpop.f32.mrf.mxu0
  %v2987 = vadd.f32 %v2974, %v2986
  %v2988 = vpop.f32.mrf.mxu0
  %2989 = vdwg.mxu0
  %2990 = vmatpush.bf16.msra.mxu0 %v2651
  %2991 = vmatpush.bf16.msra.mxu0 %v2649
  %2992 = vmatpush.bf16.msra.mxu0 %v2647
  %2993 = vmatpush.bf16.msra.mxu0 %v2645
  %2994 = vmatpush.bf16.msra.mxu0 %v2643
  %2995 = vmatpush.bf16.msra.mxu0 %v2641
  %2996 = vmatpush.bf16.msra.mxu0 %v2639
  %2997 = vmatpush.bf16.msra.mxu0 %v2637
  %2998 = vmatmul.bf16.gmra.mxu0 %v92
  %v2999 = vpop.f32.mrf.mxu0
  %v3000 = vadd.f32 %v2987, %v2999
  %v3001 = vpop.f32.mrf.mxu0
  %3002 = vdwg.mxu0
  %3003 = vmatpush.bf16.msra.mxu0 %v2667
  %3004 = vmatpush.bf16.msra.mxu0 %v2665
  %3005 = vmatpush.bf16.msra.mxu0 %v2663
  %3006 = vmatpush.bf16.msra.mxu0 %v2661
  %3007 = vmatpush.bf16.msra.mxu0 %v2659
  %3008 = vmatpush.bf16.msra.mxu0 %v2657
  %3009 = vmatpush.bf16.msra.mxu0 %v2655
  %3010 = vmatpush.bf16.msra.mxu0 %v2653
  %3011 = vmatmul.bf16.gmra.mxu0 %v93
  %v3012 = vpop.f32.mrf.mxu0
  %v3013 = vadd.f32 %v3000, %v3012
  %v3014 = vpop.f32.mrf.mxu0
  %3015 = vdwg.mxu0
  %3016 = vmatpush.bf16.msra.mxu0 %v2683
  %3017 = vmatpush.bf16.msra.mxu0 %v2681
  %3018 = vmatpush.bf16.msra.mxu0 %v2679
  %3019 = vmatpush.bf16.msra.mxu0 %v2677
  %3020 = vmatpush.bf16.msra.mxu0 %v2675
  %3021 = vmatpush.bf16.msra.mxu0 %v2673
  %3022 = vmatpush.bf16.msra.mxu0 %v2671
  %3023 = vmatpush.bf16.msra.mxu0 %v2669
  %3024 = vmatmul.bf16.gmra.mxu0 %v94
  %v3025 = vpop.f32.mrf.mxu0
  %v3026 = vadd.f32 %v3013, %v3025
  %v3027 = vpop.f32.mrf.mxu0
  %3028 = vdwg.mxu0
  %3029 = vmatpush.bf16.msra.mxu0 %v2699
  %3030 = vmatpush.bf16.msra.mxu0 %v2697
  %3031 = vmatpush.bf16.msra.mxu0 %v2695
  %3032 = vmatpush.bf16.msra.mxu0 %v2693
  %3033 = vmatpush.bf16.msra.mxu0 %v2691
  %3034 = vmatpush.bf16.msra.mxu0 %v2689
  %3035 = vmatpush.bf16.msra.mxu0 %v2687
  %3036 = vmatpush.bf16.msra.mxu0 %v2685
  %3037 = vmatmul.bf16.gmra.mxu0 %v95
  %v3038 = vpop.f32.mrf.mxu0
  %v3039 = vadd.f32 %v3026, %v3038
  %v3040 = vpop.f32.mrf.mxu0
  %3041 = vdwg.mxu0
  %3042 = vmatpush.bf16.msra.mxu0 %v2715
  %3043 = vmatpush.bf16.msra.mxu0 %v2713
  %3044 = vmatpush.bf16.msra.mxu0 %v2711
  %3045 = vmatpush.bf16.msra.mxu0 %v2709
  %3046 = vmatpush.bf16.msra.mxu0 %v2707
  %3047 = vmatpush.bf16.msra.mxu0 %v2705
  %3048 = vmatpush.bf16.msra.mxu0 %v2703
  %3049 = vmatpush.bf16.msra.mxu0 %v2701
  %3050 = vmatmul.bf16.gmra.mxu0 %v96
  %v3051 = vpop.f32.mrf.mxu0
  %v3052 = vadd.f32 %v3039, %v3051
  %v3053 = vpop.f32.mrf.mxu0
  %3054 = vdwg.mxu0
  %3055 = vmatpush.bf16.msra.mxu0 %v2731
  %3056 = vmatpush.bf16.msra.mxu0 %v2729
  %3057 = vmatpush.bf16.msra.mxu0 %v2727
  %3058 = vmatpush.bf16.msra.mxu0 %v2725
  %3059 = vmatpush.bf16.msra.mxu0 %v2723
  %3060 = vmatpush.bf16.msra.mxu0 %v2721
  %3061 = vmatpush.bf16.msra.mxu0 %v2719
  %3062 = vmatpush.bf16.msra.mxu0 %v2717
  %3063 = vmatmul.bf16.gmra.mxu0 %v97
  %v3064 = vpop.f32.mrf.mxu0
  %v3065 = vadd.f32 %v3052, %v3064
  %v3066 = vpop.f32.mrf.mxu0
  %3067 = vdwg.mxu0
  %v3068 = vsub.f32 %v988, %v1985
  %v3069 = vsub.f32 %v1092, %v2089
  %v3070 = vld [vmem:[%s5] sm:$0x3]
  %v3072 = vperm.slane %v3070, 0
  %v3073 = vperm.slane %v3070, 1
  %v3076 = vadd.f32 %v3068, %v3072
  %v3077 = vadd.f32 %v3069, %v3073
  %v3078 = vmax.f32 %v3076, 0.0
  %v3079 = vmax.f32 %v3077, 0.0
  %v3080 = vpack.c.bf16 %v3078, %v3078
  %v3081 = vpack.c.bf16 %v3079, %v3079
  %v3082 = vsub.f32 %v2961, %v988
  %v3083 = vsub.f32 %v3065, %v1092
  %v3084 = vsub.f32 %v3082, %v1985
  %v3085 = vsub.f32 %v3083, %v2089
  %v3086 = vld [vmem:[%s6] sm:$0x3]
  %v3088 = vperm.slane %v3086, 0
  %v3089 = vperm.slane %v3086, 1
  %v3092 = vadd.f32 %v3084, %v3088
  %v3093 = vadd.f32 %v3085, %v3089
  %v3094 = vmax.f32 %v3092, 0.0
  %v3095 = vmax.f32 %v3093, 0.0
  %v3096 = vpack.c.bf16 %v3094, %v3094
  %v3097 = vpack.c.bf16 %v3095, %v3095
  %v3098 = vld [vmem:[%s7] sm:$0xf]
  %v3099 = vld [vmem:[%s7 + $0x4] sm:$0xf]
  %v3100 = vld [vmem:[%s7 + $0x8] sm:$0xf]
  %v3101 = vld [vmem:[%s7 + $0xc] sm:$0xf]
  %v3102 = vld [vmem:[%s7 + $0x10] sm:$0xf]
  %v3103 = vld [vmem:[%s7 + $0x14] sm:$0xf]
  %v3104 = vld [vmem:[%s7 + $0x18] sm:$0xf]
  %v3105 = vld [vmem:[%s7 + $0x1c] sm:$0xf]
  %v3106 = vld [vmem:[%s7 + $0x20] sm:$0xf]
  %v3107 = vld [vmem:[%s7 + $0x24] sm:$0xf]
  %v3108 = vld [vmem:[%s7 + $0x28] sm:$0xf]
  %v3109 = vld [vmem:[%s7 + $0x2c] sm:$0xf]
  %v3110 = vld [vmem:[%s7 + $0x30] sm:$0xf]
  %v3111 = vld [vmem:[%s7 + $0x34] sm:$0xf]
  %v3112 = vld [vmem:[%s7 + $0x38] sm:$0xf]
  %v3113 = vld [vmem:[%s7 + $0x3c] sm:$0xf]
  %v3114 = vld [vmem:[%s7 + $0x40] sm:$0xf]
  %v3115 = vld [vmem:[%s7 + $0x44] sm:$0xf]
  %v3116 = vld [vmem:[%s7 + $0x48] sm:$0xf]
  %v3117 = vld [vmem:[%s7 + $0x4c] sm:$0xf]
  %v3118 = vld [vmem:[%s7 + $0x50] sm:$0xf]
  %v3119 = vld [vmem:[%s7 + $0x54] sm:$0xf]
  %v3120 = vld [vmem:[%s7 + $0x58] sm:$0xf]
  %v3121 = vld [vmem:[%s7 + $0x5c] sm:$0xf]
  %v3122 = vld [vmem:[%s7 + $0x60] sm:$0xf]
  %v3123 = vld [vmem:[%s7 + $0x64] sm:$0xf]
  %v3124 = vld [vmem:[%s7 + $0x68] sm:$0xf]
  %v3125 = vld [vmem:[%s7 + $0x6c] sm:$0xf]
  %v3126 = vld [vmem:[%s7 + $0x70] sm:$0xf]
  %v3127 = vld [vmem:[%s7 + $0x74] sm:$0xf]
  %v3128 = vld [vmem:[%s7 + $0x78] sm:$0xf]
  %v3129 = vld [vmem:[%s7 + $0x7c] sm:$0xf]
  %v3130 = vld [vmem:[%s8] sm:$0xf]
  %v3131 = vld [vmem:[%s8 + $0x4] sm:$0xf]
  %v3132 = vld [vmem:[%s8 + $0x8] sm:$0xf]
  %v3133 = vld [vmem:[%s8 + $0xc] sm:$0xf]
  %v3134 = vld [vmem:[%s8 + $0x10] sm:$0xf]
  %v3135 = vld [vmem:[%s8 + $0x14] sm:$0xf]
  %v3136 = vld [vmem:[%s8 + $0x18] sm:$0xf]
  %v3137 = vld [vmem:[%s8 + $0x1c] sm:$0xf]
  %v3138 = vld [vmem:[%s8 + $0x20] sm:$0xf]
  %v3139 = vld [vmem:[%s8 + $0x24] sm:$0xf]
  %v3140 = vld [vmem:[%s8 + $0x28] sm:$0xf]
  %v3141 = vld [vmem:[%s8 + $0x2c] sm:$0xf]
  %v3142 = vld [vmem:[%s8 + $0x30] sm:$0xf]
  %v3143 = vld [vmem:[%s8 + $0x34] sm:$0xf]
  %v3144 = vld [vmem:[%s8 + $0x38] sm:$0xf]
  %v3145 = vld [vmem:[%s8 + $0x3c] sm:$0xf]
  %v3146 = vld [vmem:[%s8 + $0x40] sm:$0xf]
  %v3147 = vld [vmem:[%s8 + $0x44] sm:$0xf]
  %v3148 = vld [vmem:[%s8 + $0x48] sm:$0xf]
  %v3149 = vld [vmem:[%s8 + $0x4c] sm:$0xf]
  %v3150 = vld [vmem:[%s8 + $0x50] sm:$0xf]
  %v3151 = vld [vmem:[%s8 + $0x54] sm:$0xf]
  %v3152 = vld [vmem:[%s8 + $0x58] sm:$0xf]
  %v3153 = vld [vmem:[%s8 + $0x5c] sm:$0xf]
  %v3154 = vld [vmem:[%s8 + $0x60] sm:$0xf]
  %v3155 = vld [vmem:[%s8 + $0x64] sm:$0xf]
  %v3156 = vld [vmem:[%s8 + $0x68] sm:$0xf]
  %v3157 = vld [vmem:[%s8 + $0x6c] sm:$0xf]
  %v3158 = vld [vmem:[%s8 + $0x70] sm:$0xf]
  %v3159 = vld [vmem:[%s8 + $0x74] sm:$0xf]
  %v3160 = vld [vmem:[%s8 + $0x78] sm:$0xf]
  %v3161 = vld [vmem:[%s8 + $0x7c] sm:$0xf]
  %v3194 = vunpack.c.l.b16 %v3130
  %v3195 = vunpack.c.l.b16 %v3131
  %v3196 = vunpack.c.l.b16 %v3132
  %v3197 = vunpack.c.l.b16 %v3133
  %v3198 = vunpack.c.l.b16 %v3134
  %v3199 = vunpack.c.l.b16 %v3135
  %v3200 = vunpack.c.l.b16 %v3136
  %v3201 = vunpack.c.l.b16 %v3137
  %v3202 = vunpack.c.l.b16 %v3138
  %v3203 = vunpack.c.l.b16 %v3139
  %v3204 = vunpack.c.l.b16 %v3140
  %v3205 = vunpack.c.l.b16 %v3141
  %v3206 = vunpack.c.l.b16 %v3142
  %v3207 = vunpack.c.l.b16 %v3143
  %v3208 = vunpack.c.l.b16 %v3144
  %v3209 = vunpack.c.l.b16 %v3145
  %v3210 = vunpack.c.l.b16 %v3146
  %v3211 = vunpack.c.l.b16 %v3147
  %v3212 = vunpack.c.l.b16 %v3148
  %v3213 = vunpack.c.l.b16 %v3149
  %v3214 = vunpack.c.l.b16 %v3150
  %v3215 = vunpack.c.l.b16 %v3151
  %v3216 = vunpack.c.l.b16 %v3152
  %v3217 = vunpack.c.l.b16 %v3153
  %v3218 = vunpack.c.l.b16 %v3154
  %v3219 = vunpack.c.l.b16 %v3155
  %v3220 = vunpack.c.l.b16 %v3156
  %v3221 = vunpack.c.l.b16 %v3157
  %v3222 = vunpack.c.l.b16 %v3158
  %v3223 = vunpack.c.l.b16 %v3159
  %v3224 = vunpack.c.l.b16 %v3160
  %v3225 = vunpack.c.l.b16 %v3161
  %v3226 = vpack.c.b16 %v3195, %v3194
  %v3227 = vpack.c.b16 %v3197, %v3196
  %v3228 = vpack.c.b16 %v3199, %v3198
  %v3229 = vpack.c.b16 %v3201, %v3200
  %v3230 = vpack.c.b16 %v3203, %v3202
  %v3231 = vpack.c.b16 %v3205, %v3204
  %v3232 = vpack.c.b16 %v3207, %v3206
  %v3233 = vpack.c.b16 %v3209, %v3208
  %v3234 = vpack.c.b16 %v3211, %v3210
  %v3235 = vpack.c.b16 %v3213, %v3212
  %v3236 = vpack.c.b16 %v3215, %v3214
  %v3237 = vpack.c.b16 %v3217, %v3216
  %v3238 = vpack.c.b16 %v3219, %v3218
  %v3239 = vpack.c.b16 %v3221, %v3220
  %v3240 = vpack.c.b16 %v3223, %v3222
  %v3241 = vpack.c.b16 %v3225, %v3224
  %3258 = vmatpush.bf16.msra.mxu0 %v3233
  %3259 = vmatpush.bf16.msra.mxu0 %v3232
  %3260 = vmatpush.bf16.msra.mxu0 %v3231
  %3261 = vmatpush.bf16.msra.mxu0 %v3230
  %3262 = vmatpush.bf16.msra.mxu0 %v3229
  %3263 = vmatpush.bf16.msra.mxu0 %v3228
  %3264 = vmatpush.bf16.msra.mxu0 %v3227
  %3265 = vmatpush.bf16.msra.mxu0 %v3226
  %3266 = vmatmul.bf16.gmra.mxu0 %v3096
  %v3267 = vpop.f32.mrf.mxu0
  %v3268 = vadd.f32 0.0, %v3267
  %v3269 = vpop.f32.mrf.mxu0
  %3270 = vdwg.mxu0
  %3271 = vmatpush.bf16.msra.mxu0 %v3241
  %3272 = vmatpush.bf16.msra.mxu0 %v3240
  %3273 = vmatpush.bf16.msra.mxu0 %v3239
  %3274 = vmatpush.bf16.msra.mxu0 %v3238
  %3275 = vmatpush.bf16.msra.mxu0 %v3237
  %3276 = vmatpush.bf16.msra.mxu0 %v3236
  %3277 = vmatpush.bf16.msra.mxu0 %v3235
  %3278 = vmatpush.bf16.msra.mxu0 %v3234
  %3279 = vmatmul.bf16.gmra.mxu0 %v3097
  %v3280 = vpop.f32.mrf.mxu0
  %v3281 = vadd.f32 %v3268, %v3280
  %v3282 = vpop.f32.mrf.mxu0
  %3283 = vdwg.mxu0
  %v3316 = vunpack.c.l.b16 %v3098
  %v3317 = vunpack.c.l.b16 %v3099
  %v3318 = vunpack.c.l.b16 %v3100
  %v3319 = vunpack.c.l.b16 %v3101
  %v3320 = vunpack.c.l.b16 %v3102
  %v3321 = vunpack.c.l.b16 %v3103
  %v3322 = vunpack.c.l.b16 %v3104
  %v3323 = vunpack.c.l.b16 %v3105
  %v3324 = vunpack.c.l.b16 %v3106
  %v3325 = vunpack.c.l.b16 %v3107
  %v3326 = vunpack.c.l.b16 %v3108
  %v3327 = vunpack.c.l.b16 %v3109
  %v3328 = vunpack.c.l.b16 %v3110
  %v3329 = vunpack.c.l.b16 %v3111
  %v3330 = vunpack.c.l.b16 %v3112
  %v3331 = vunpack.c.l.b16 %v3113
  %v3332 = vunpack.c.l.b16 %v3114
  %v3333 = vunpack.c.l.b16 %v3115
  %v3334 = vunpack.c.l.b16 %v3116
  %v3335 = vunpack.c.l.b16 %v3117
  %v3336 = vunpack.c.l.b16 %v3118
  %v3337 = vunpack.c.l.b16 %v3119
  %v3338 = vunpack.c.l.b16 %v3120
  %v3339 = vunpack.c.l.b16 %v3121
  %v3340 = vunpack.c.l.b16 %v3122
  %v3341 = vunpack.c.l.b16 %v3123
  %v3342 = vunpack.c.l.b16 %v3124
  %v3343 = vunpack.c.l.b16 %v3125
  %v3344 = vunpack.c.l.b16 %v3126
  %v3345 = vunpack.c.l.b16 %v3127
  %v3346 = vunpack.c.l.b16 %v3128
  %v3347 = vunpack.c.l.b16 %v3129
  %v3348 = vpack.c.b16 %v3317, %v3316
  %v3349 = vpack.c.b16 %v3319, %v3318
  %v3350 = vpack.c.b16 %v3321, %v3320
  %v3351 = vpack.c.b16 %v3323, %v3322
  %v3352 = vpack.c.b16 %v3325, %v3324
  %v3353 = vpack.c.b16 %v3327, %v3326
  %v3354 = vpack.c.b16 %v3329, %v3328
  %v3355 = vpack.c.b16 %v3331, %v3330
  %v3356 = vpack.c.b16 %v3333, %v3332
  %v3357 = vpack.c.b16 %v3335, %v3334
  %v3358 = vpack.c.b16 %v3337, %v3336
  %v3359 = vpack.c.b16 %v3339, %v3338
  %v3360 = vpack.c.b16 %v3341, %v3340
  %v3361 = vpack.c.b16 %v3343, %v3342
  %v3362 = vpack.c.b16 %v3345, %v3344
  %v3363 = vpack.c.b16 %v3347, %v3346
  %3380 = vmatpush.bf16.msra.mxu0 %v3355
  %3381 = vmatpush.bf16.msra.mxu0 %v3354
  %3382 = vmatpush.bf16.msra.mxu0 %v3353
  %3383 = vmatpush.bf16.msra.mxu0 %v3352
  %3384 = vmatpush.bf16.msra.mxu0 %v3351
  %3385 = vmatpush.bf16.msra.mxu0 %v3350
  %3386 = vmatpush.bf16.msra.mxu0 %v3349
  %3387 = vmatpush.bf16.msra.mxu0 %v3348
  %3388 = vmatmul.bf16.gmra.mxu0 %v3080
  %v3389 = vpop.f32.mrf.mxu0
  %v3390 = vadd.f32 %v3281, %v3389
  %v3391 = vpop.f32.mrf.mxu0
  %3392 = vdwg.mxu0
  %3393 = vmatpush.bf16.msra.mxu0 %v3363
  %3394 = vmatpush.bf16.msra.mxu0 %v3362
  %3395 = vmatpush.bf16.msra.mxu0 %v3361
  %3396 = vmatpush.bf16.msra.mxu0 %v3360
  %3397 = vmatpush.bf16.msra.mxu0 %v3359
  %3398 = vmatpush.bf16.msra.mxu0 %v3358
  %3399 = vmatpush.bf16.msra.mxu0 %v3357
  %3400 = vmatpush.bf16.msra.mxu0 %v3356
  %3401 = vmatmul.bf16.gmra.mxu0 %v3081
  %v3402 = vpop.f32.mrf.mxu0
  %v3403 = vadd.f32 %v3390, %v3402
  %v3404 = vpop.f32.mrf.mxu0
  %3405 = vdwg.mxu0
  %v3406 = vld [vmem:[%s9] sm:$0x1]
  %v3408 = vperm.slane %v3406, 0
  %v3410 = vadd.f32 %v3403, %v3408
  %v3411 = vmax.f32 %v3410, 0.0
  %v3412 = vpack.c.bf16 %v3411, %v3411
  %v3413 = vld [vmem:[%s10] sm:$0xf]
  %v3414 = vld [vmem:[%s10 + $0x4] sm:$0xf]
  %v3415 = vld [vmem:[%s10 + $0x8] sm:$0xf]
  %v3416 = vld [vmem:[%s10 + $0xc] sm:$0xf]
  %v3417 = vld [vmem:[%s10 + $0x10] sm:$0xf]
  %v3418 = vld [vmem:[%s10 + $0x14] sm:$0xf]
  %v3419 = vld [vmem:[%s10 + $0x18] sm:$0xf]
  %v3420 = vld [vmem:[%s10 + $0x1c] sm:$0xf]
  %v3421 = vld [vmem:[%s10 + $0x20] sm:$0xf]
  %v3422 = vld [vmem:[%s10 + $0x24] sm:$0xf]
  %v3423 = vld [vmem:[%s10 + $0x28] sm:$0xf]
  %v3424 = vld [vmem:[%s10 + $0x2c] sm:$0xf]
  %v3425 = vld [vmem:[%s10 + $0x30] sm:$0xf]
  %v3426 = vld [vmem:[%s10 + $0x34] sm:$0xf]
  %v3427 = vld [vmem:[%s10 + $0x38] sm:$0xf]
  %v3428 = vld [vmem:[%s10 + $0x3c] sm:$0xf]
  %v3429 = vld [vmem:[%s11] sm:$0x1]
  %v3431 = vperm.slane %v3429, 0
  %v3449 = vunpack.c.l.b16 %v3413
  %v3450 = vunpack.c.l.b16 %v3414
  %v3451 = vunpack.c.l.b16 %v3415
  %v3452 = vunpack.c.l.b16 %v3416
  %v3453 = vunpack.c.l.b16 %v3417
  %v3454 = vunpack.c.l.b16 %v3418
  %v3455 = vunpack.c.l.b16 %v3419
  %v3456 = vunpack.c.l.b16 %v3420
  %v3457 = vunpack.c.l.b16 %v3421
  %v3458 = vunpack.c.l.b16 %v3422
  %v3459 = vunpack.c.l.b16 %v3423
  %v3460 = vunpack.c.l.b16 %v3424
  %v3461 = vunpack.c.l.b16 %v3425
  %v3462 = vunpack.c.l.b16 %v3426
  %v3463 = vunpack.c.l.b16 %v3427
  %v3464 = vunpack.c.l.b16 %v3428
  %v3465 = vpack.c.b16 %v3450, %v3449
  %v3466 = vpack.c.b16 %v3452, %v3451
  %v3467 = vpack.c.b16 %v3454, %v3453
  %v3468 = vpack.c.b16 %v3456, %v3455
  %v3469 = vpack.c.b16 %v3458, %v3457
  %v3470 = vpack.c.b16 %v3460, %v3459
  %v3471 = vpack.c.b16 %v3462, %v3461
  %v3472 = vpack.c.b16 %v3464, %v3463
  %3481 = vmatpush.bf16.msra.mxu0 %v3472
  %3482 = vmatpush.bf16.msra.mxu0 %v3471
  %3483 = vmatpush.bf16.msra.mxu0 %v3470
  %3484 = vmatpush.bf16.msra.mxu0 %v3469
  %3485 = vmatpush.bf16.msra.mxu0 %v3468
  %3486 = vmatpush.bf16.msra.mxu0 %v3467
  %3487 = vmatpush.bf16.msra.mxu0 %v3466
  %3488 = vmatpush.bf16.msra.mxu0 %v3465
  %3489 = vmatmul.bf16.gmra.mxu0 %v3412
  %v3490 = vpop.f32.mrf.mxu0
  %v3491 = vadd.f32 %v3431, %v3490
  %v3492 = vpop.f32.mrf.mxu0
  %3493 = vdwg.mxu0
  %v3494 = vmax.f32 %v3491, 0.0
  %v3495 = vld [vmem:[%s12] sm:$0x3]
  %v3496 = vperm.slane %v3495, 0
  %v3497 = vmul.f32 %v3494, %v3496
  %vm3498 = vcmask 257024
  %v3499 = vsel %vm3498, %v3497, 0.0
  %3500 = vadd.xlane.f32.xlu0 %v3499
  %v3501 = vpop.xlane.xlu0 %3500
  %v3502 = vperm.slane %v3495, 1
  %v3503 = vmul.f32 %v3494, %v3502
  %v3504 = vsel %vm3498, %v3503, 0.0
  %3505 = vadd.xlane.f32.xlu0 %v3504
  %v3506 = vpop.xlane.xlu0 %3505
  %vm3507 = vcmask 7168
  %v3508 = vsel %vm3507, %v3501, %v3506
  %v3509 = vld [vmem:[%s13] sm:$0x1]
  %v3511 = vperm.slane %v3509, 0
  %v3513 = vadd.f32 %v3508, %v3511
  %vm3514 = vcmask 11264
  %3515 = vst.msk [vmem:[%s14] sm:$0xf] %vm3514, %v3513
  // Predicated region
  $region58: #{fmcw_cmlp_forward.1} parent=0 // pred_check
    _
  $region59: #{fmcw_cmlp_forward.1} parent=0 // pred_check_branch
    %3517 = sbr.rel (0) target = $region61
  $region60: #{fmcw_cmlp_forward.1} parent=0 // pred_region
    _
  $region61: #{fmcw_cmlp_forward.1} parent=0 // pred_fallthru
    _
  // Predicated region
  $region62: #{fmcw_cmlp_forward.1} parent=0 // pred_check
    _
  $region63: #{fmcw_cmlp_forward.1} parent=0 // pred_check_branch
    %3519 = sbr.rel (0) target = $region65
  $region64: #{fmcw_cmlp_forward.1} parent=0 // pred_region
    _
  $region65: #{fmcw_cmlp_forward.1} parent=0 // pred_fallthru
    _

</llo_original>
